<compile_context>
chip_gen: v7x
topology: tpu7x:2x2x1
jax: 0.10.0
libtpu: 0.0.40
codegen_flags: <defaults>
</compile_context>

<pallas_src>
import functools

import jax
import jax.numpy as jnp
from jax.experimental import pallas as pl
from jax.experimental.pallas import tpu as pltpu


def _round_up(n, m):
    return ((n + m - 1) // m) * m


def _vmem_limit_bytes():
    # Raise the scoped-VMEM cap above the 16/32 MiB defaults; stay well below
    # physical VMEM (64 MiB per TensorCore on v7x, 128 MiB on v5e/v6e).
    try:
        cap = pltpu.get_tpu_info().vmem_capacity_bytes
    except Exception:
        cap = 64 * 1024 * 1024
    return int(min(cap * 3 // 4, 100 * 1024 * 1024))


def _choose_row_tile(rows, feat, g4, gate_bytes):
    """Largest multiple-of-8 divisor of `rows` that fits a VMEM double-buffer budget."""
    per_row = 2 * (feat * 4 + g4 * gate_bytes)      # 2x for double buffering
    budget = 24 * 1024 * 1024
    target = max(64, min(1024, (budget // per_row) // 8 * 8))
    for cand in range(min(rows, target), 0, -8):
        if rows % cand == 0:
            return cand
    return rows


def _choose_b_tile(bp):
    """Default batch tile: split Bp when possible so the parallel axis has >=2 tiles."""
    if bp < 16:
        return bp
    start = (bp // 2) - ((bp // 2) % 8)
    for cand in range(start, 7, -8):
        if cand and bp % cand == 0:
            return cand
    return bp


# -------------------- hoisted input projection (one big matmul) --------------------
def _proj_kernel(x_ref, w_ref, b_ref, o_ref):
    # (RT, F) @ (F, 4Hp): bf16 (or f32) operands, f32 accumulate, f32 bias add,
    # single rounding into the (bf16) gates_in slab.
    x = x_ref[...].astype(w_ref.dtype)
    acc = jnp.dot(x, w_ref[...], preferred_element_type=jnp.float32)
    o_ref[...] = (acc + b_ref[...]).astype(o_ref.dtype)


def _input_projection(x2d, w_fold, b_fold, row_tile, *, out_dtype, vmem_limit):
    rows, feat = x2d.shape
    g4 = w_fold.shape[1]
    return pl.pallas_call(
        _proj_kernel,
        grid_spec=pltpu.PrefetchScalarGridSpec(
            num_scalar_prefetch=0,
            grid=(rows // row_tile,),
            in_specs=[
                pl.BlockSpec((row_tile, feat), lambda i: (i, 0)),
                pl.BlockSpec((feat, g4), lambda i: (0, 0)),
                pl.BlockSpec((1, g4), lambda i: (0, 0)),
            ],
            out_specs=pl.BlockSpec((row_tile, g4), lambda i: (i, 0)),
        ),
        out_shape=jax.ShapeDtypeStruct((rows, g4), out_dtype),
        compiler_params=pltpu.CompilerParams(
            dimension_semantics=("parallel",),
            vmem_limit_bytes=vmem_limit),
    )(x2d, w_fold, b_fold)


# --------------------------- sequential LSTM recurrence -----------------------------
def _lstm_kernel(tmax_ref, g_ref, whh_ref, len_ref, y_ref, hn_ref, cn_ref):
    # grid = (batch_tiles [parallel], time_tiles [arbitrary / sequential]).
    # tmax_ref: SMEM scalar-prefetch, per-batch-tile max sequence length.
    bt = pl.program_id(0)
    ti = pl.program_id(1)
    TT = g_ref.shape[0]
    Hp = hn_ref.shape[1]
    t_base = ti * TT

    @pl.when(ti == 0)
    def _init():
        hn_ref[...] = jnp.zeros_like(hn_ref)
        cn_ref[...] = jnp.zeros_like(cn_ref)

    tile_alive = tmax_ref[bt] > t_base

    @pl.when(tile_alive)
    def _run():
        lengths = len_ref[...]          # (b_tile, 1) int32
        h0 = hn_ref[...]                # resident state, read once per tile
        c0 = cn_ref[...]

        def step(s, carry):
            h, c = carry
            # Input projection + bias were precomputed (bf16 slab); only the
            # bf16 recurrent matmul remains on the serial critical path.
            gates = g_ref[s].astype(jnp.float32) + jnp.dot(
                h.astype(whh_ref.dtype), whh_ref[...],
                preferred_element_type=jnp.float32)
            # PyTorch gate order i, f, g, o; each gate block is 128-lane aligned.
            i_g = jax.nn.sigmoid(gates[:, 0 * Hp:1 * Hp])
            f_g = jax.nn.sigmoid(gates[:, 1 * Hp:2 * Hp])
            g_g = jnp.tanh(gates[:, 2 * Hp:3 * Hp])
            o_g = jax.nn.sigmoid(gates[:, 3 * Hp:4 * Hp])
            c_new = f_g * c + i_g * g_g
            h_new = o_g * jnp.tanh(c_new)

            valid = lengths > (t_base + s)          # (b_tile, 1)
            h = jnp.where(valid, h_new, h)          # state stays in vregs
            c = jnp.where(valid, c_new, c)
            y_ref[s] = jnp.where(valid, h_new, 0.0)  # padded positions -> 0
            return (h, c)

        h, c = jax.lax.fori_loop(0, TT, step, (h0, c0), unroll=True)
        hn_ref[...] = h                 # written once per time tile
        cn_ref[...] = c

    @pl.when(jnp.logical_not(tile_alive))
    def _skip():
        # Entire tile is beyond every row's length: outputs are all padding.
        y_ref[...] = jnp.zeros_like(y_ref)


def _lstm_recurrence(gates_tm, whh_t, lens_col, tile_max, *, tt, b_tile, vmem_limit):
    Tp, Bp, g4 = gates_tm.shape
    Hp = g4 // 4
    assert Bp % b_tile == 0 and Tp % tt == 0
    grid = (Bp // b_tile, Tp // tt)
    return pl.pallas_call(
        _lstm_kernel,
        grid_spec=pltpu.PrefetchScalarGridSpec(
            num_scalar_prefetch=1,
            grid=grid,
            in_specs=[
                pl.BlockSpec((tt, b_tile, g4), lambda bt, ti, tmax: (ti, bt, 0)),
                pl.BlockSpec((Hp, g4), lambda bt, ti, tmax: (0, 0)),
                pl.BlockSpec((b_tile, 1), lambda bt, ti, tmax: (bt, 0)),
            ],
            out_specs=[
                pl.BlockSpec((tt, b_tile, Hp), lambda bt, ti, tmax: (ti, bt, 0)),
                pl.BlockSpec((b_tile, Hp), lambda bt, ti, tmax: (bt, 0)),
                pl.BlockSpec((b_tile, Hp), lambda bt, ti, tmax: (bt, 0)),
            ],
        ),
        out_shape=(
            jax.ShapeDtypeStruct((Tp, Bp, Hp), jnp.float32),
            jax.ShapeDtypeStruct((Bp, Hp), jnp.float32),
            jax.ShapeDtypeStruct((Bp, Hp), jnp.float32),
        ),
        compiler_params=pltpu.CompilerParams(
            dimension_semantics=("parallel", "arbitrary"),
            vmem_limit_bytes=vmem_limit),
    )(tile_max, gates_tm, whh_t, lens_col)


# ------------------------------ module-level wrapper --------------------------------
@functools.partial(jax.jit, static_argnames=("tt", "b_tile", "param_dtype"))
def rnn_with_bn_forward(x, output_lengths, params, *, tt=8, b_tile=None,
                        param_dtype=jnp.bfloat16):
    """Equivalent of RNNwithBN.forward(x, output_lengths, h=None).

    x: (B, T, input_size) f32; output_lengths: (B,) int32.
    param_dtype=jnp.bfloat16 (default) gives single-pass MXU matmuls and halves
    weight / gates_in traffic; use jnp.float32 for bit-tighter numerics.
    Returns (y, (h_n, c_n)).
    """
    B, T, F = x.shape
    H = params["w_hh"].shape[1]
    # Per-gate hidden padded to 128 lanes so gate slices are vreg-aligned.
    # NOTE: for H < 128 this over-pads the recurrent matmul by (Hp/H)^2 MACs;
    # accepted (exact numerics: padded units stay 0).
    Hp = _round_up(H, 128)
    Bp = _round_up(B, 8)
    Tp = _round_up(T, tt)
    if b_tile is None:
        b_tile = _choose_b_tile(Bp)
    else:
        b_tile = _round_up(int(b_tile), 8)
        Bp = _round_up(Bp, b_tile)      # never silently drop trailing rows
    assert Bp % b_tile == 0 and Tp % tt == 0
    vmem_limit = _vmem_limit_bytes()
    g_bytes = jnp.dtype(param_dtype).itemsize

    x = x.astype(jnp.float32)

    # --- BatchNorm (training-mode batch stats over all B*T, as in the module,
    #     including padded timesteps since BN runs before packing) folded into
    #     the input projection: BN(x) = x*scale + shift per feature. ---
    x2 = x.reshape(B * T, F)
    mean = jnp.mean(x2, axis=0)
    var = jnp.mean(jnp.square(x2 - mean), axis=0)          # biased, eps=1e-5
    scale = params["bn_gamma"].astype(jnp.float32) * jax.lax.rsqrt(var + 1e-5)
    shift = params["bn_beta"].astype(jnp.float32) - mean * scale

    # --- pad gate weights per gate block to Hp (padded units stay 0) ---
    wih4 = params["w_ih"].reshape(4, H, F).astype(jnp.float32)
    whh4 = params["w_hh"].reshape(4, H, H).astype(jnp.float32)
    b4 = (params["b_ih"] + params["b_hh"]).reshape(4, H).astype(jnp.float32)
    wih_p = jnp.zeros((4, Hp, F), jnp.float32).at[:, :H, :].set(wih4).reshape(4 * Hp, F)
    whh_p = jnp.zeros((4, Hp, Hp), jnp.float32).at[:, :H, :H].set(whh4).reshape(4 * Hp, Hp)
    b_p = jnp.zeros((4, Hp), jnp.float32).at[:, :H].set(b4).reshape(4 * Hp)

    # Fold BN affine into W_ih^T (f32 fold, then one cast to param_dtype); bias
    # stays f32 and is added after the f32 accumulation in the projection.
    w_fold = (wih_p.T * scale[:, None]).astype(param_dtype)        # (F, 4Hp)
    b_fold = (shift @ wih_p.T + b_p).reshape(1, 4 * Hp)            # (1, 4Hp) f32
    whh_t = whh_p.T.astype(param_dtype)                            # (Hp, 4Hp)

    # --- pad input to time-major (Tp, Bp, F); padded rows are masked out ---
    x_tm = jnp.zeros((Tp, Bp, F), jnp.float32).at[:T, :B, :].set(
        jnp.transpose(x, (1, 0, 2)))
    lens = jnp.zeros((Bp,), jnp.int32).at[:B].set(output_lengths.astype(jnp.int32))
    lens_col = lens.reshape(Bp, 1)
    # Per-batch-tile max length (scalar-prefetched) -> dead-time-tile skipping.
    tile_max = jnp.max(lens.reshape(Bp // b_tile, b_tile), axis=1).astype(jnp.int32)

    # --- hoisted input projection: one big tiled matmul over all timesteps,
    #     emitted as a bf16 (param_dtype) gates slab to halve its HBM round trip ---
    rows = Tp * Bp
    row_tile = _choose_row_tile(rows, F, 4 * Hp, g_bytes)
    gates_in = _input_projection(x_tm.reshape(rows, F), w_fold, b_fold, row_tile,
                                 out_dtype=param_dtype, vmem_limit=vmem_limit)
    gates_in = gates_in.reshape(Tp, Bp, 4 * Hp)

    # --- sequential recurrence (only h @ W_hh^T + gate math per step) ---
    y_p, h_p, c_p = _lstm_recurrence(gates_in, whh_t, lens_col, tile_max,
                                     tt=tt, b_tile=b_tile, vmem_limit=vmem_limit)

    # One fused XLA transpose-copy back to batch-major (slice first so it moves
    # exactly B*T*H elements). Kept in the wrapper for lowering robustness.
    y = jnp.transpose(y_p[:T, :B, :H], (1, 0, 2))
    h_n = h_p[:B, :H][None]      # (num_layers * num_directions = 1, B, H)
    c_n = c_p[:B, :H][None]
    return y, (h_n, c_n)


# --------------------------------- pure-JAX reference -------------------------------
def _reference(x, lengths, params):
    B, T, F = x.shape
    H = params["w_hh"].shape[1]
    x2 = x.reshape(B * T, F)
    mean = x2.mean(0, keepdims=True)
    var = ((x2 - mean) ** 2).mean(0, keepdims=True)
    xbn = ((x2 - mean) / jnp.sqrt(var + 1e-5) * params["bn_gamma"]
           + params["bn_beta"]).reshape(B, T, F)

    wih, whh = params["w_ih"], params["w_hh"]
    bias = params["b_ih"] + params["b_hh"]

    def step(carry, inp):
        h, c = carry
        x_t, t = inp
        gates = x_t @ wih.T + h @ whh.T + bias
        i_g = jax.nn.sigmoid(gates[:, 0 * H:1 * H])
        f_g = jax.nn.sigmoid(gates[:, 1 * H:2 * H])
        g_g = jnp.tanh(gates[:, 2 * H:3 * H])
        o_g = jax.nn.sigmoid(gates[:, 3 * H:4 * H])
        c_new = f_g * c + i_g * g_g
        h_new = o_g * jnp.tanh(c_new)
        m = (lengths > t)[:, None]
        h = jnp.where(m, h_new, h)
        c = jnp.where(m, c_new, c)
        y = jnp.where(m, h_new, 0.0)
        return (h, c), y

    init = (jnp.zeros((B, H)), jnp.zeros((B, H)))
    (h_n, c_n), y_tm = jax.lax.scan(
        step, init, (jnp.transpose(xbn, (1, 0, 2)), jnp.arange(T)))
    return jnp.transpose(y_tm, (1, 0, 2)), (h_n[None], c_n[None])


# ----------------------------------------- main -------------------------------------
if __name__ == "__main__":
    B, T = 4, 10
    INPUT_SIZE, HIDDEN = 32, 32

    key = jax.random.PRNGKey(0)
    kx, k1, k2, k3, k4, k5, k6 = jax.random.split(key, 7)

    x = jax.random.normal(kx, (B, T, INPUT_SIZE), dtype=jnp.float32)
    # pack_padded_sequence default requires lengths sorted descending.
    output_lengths = jnp.array([10, 7, 5, 3], dtype=jnp.int32)

    bound = 1.0 / (HIDDEN ** 0.5)   # PyTorch LSTM default uniform init bound
    params = {
        "bn_gamma": jax.random.uniform(k1, (INPUT_SIZE,), jnp.float32, 0.5, 1.5),
        "bn_beta": jax.random.uniform(k2, (INPUT_SIZE,), jnp.float32, -0.5, 0.5),
        "w_ih": jax.random.uniform(k3, (4 * HIDDEN, INPUT_SIZE), jnp.float32,
                                   -bound, bound),
        "w_hh": jax.random.uniform(k4, (4 * HIDDEN, HIDDEN), jnp.float32,
                                   -bound, bound),
        "b_ih": jax.random.uniform(k5, (4 * HIDDEN,), jnp.float32, -bound, bound),
        "b_hh": jax.random.uniform(k6, (4 * HIDDEN,), jnp.float32, -bound, bound),
    }

    y_ref, (h_ref, c_ref) = _reference(x, output_lengths, params)

    # f32 parameter path: tight exact-semantics check.
    y32, (h32, c32) = rnn_with_bn_forward(x, output_lengths, params,
                                          param_dtype=jnp.float32)
    jax.block_until_ready((y32, h32, c32))
    assert y32.shape == (B, T, HIDDEN)
    assert h32.shape == (1, B, HIDDEN) and c32.shape == (1, B, HIDDEN)
    assert jnp.allclose(y32, y_ref, atol=2e-3, rtol=2e-3), \
        float(jnp.max(jnp.abs(y32 - y_ref)))
    assert jnp.allclose(h32, h_ref, atol=2e-3, rtol=2e-3), \
        float(jnp.max(jnp.abs(h32 - h_ref)))
    assert jnp.allclose(c32, c_ref, atol=2e-3, rtol=2e-3), \
        float(jnp.max(jnp.abs(c32 - c_ref)))

    # Default fast path (bf16 weights + bf16 gates_in): looser bf16 tolerance.
    y16, (h16, c16) = rnn_with_bn_forward(x, output_lengths, params)
    jax.block_until_ready((y16, h16, c16))
    assert y16.shape == (B, T, HIDDEN)
    assert jnp.allclose(y16, y_ref, atol=6e-2, rtol=6e-2), \
        float(jnp.max(jnp.abs(y16 - y_ref)))
    assert jnp.allclose(h16, h_ref, atol=6e-2, rtol=6e-2), \
        float(jnp.max(jnp.abs(h16 - h_ref)))
    assert jnp.allclose(c16, c_ref, atol=6e-2, rtol=6e-2), \
        float(jnp.max(jnp.abs(c16 - c_ref)))

    # TODO(synk): bidirectional=False path only; the bidirectional sum-merge
    # branch of the PyTorch module is not exercised by default construction.
    print("KERNEL_OK")
</pallas_src>

<mosaic_0001>
module attributes {stable_mosaic.version = 11 : i64} {
  func.func @_proj_kernel(%arg0: i32, %arg1: memref<128x32xf32, #tpu.memory_space<vmem>>, %arg2: memref<32x512xf32, #tpu.memory_space<vmem>>, %arg3: memref<1x512xf32, #tpu.memory_space<vmem>>, %arg4: memref<128x512xf32, #tpu.memory_space<vmem>>) attributes {dimension_semantics = [#tpu.dimension_semantics<parallel>], iteration_bounds = array<i64: 1>, scalar_prefetch = 0 : i64, scratch_operands = 0 : i64, tpu.core_type = #tpu.core_type<tc>, window_params = [{transform_indices = @transform_0, window_bounds = array<i64: 128, 32>}, {pipeline_mode = #tpu.pipeline_mode<synchronous>, transform_indices = @transform_1, window_bounds = array<i64: 32, 512>}, {pipeline_mode = #tpu.pipeline_mode<synchronous>, transform_indices = @transform_2, window_bounds = array<i64: 1, 512>}, {transform_indices = @transform_3, window_bounds = array<i64: 128, 512>}]} {
    %c0 = arith.constant 0 : index
    %c0_0 = arith.constant 0 : index
    %0 = vector.load %arg1[%c0, %c0_0] : memref<128x32xf32, #tpu.memory_space<vmem>>, vector<128x32xf32>
    %c0_1 = arith.constant 0 : index
    %c0_2 = arith.constant 0 : index
    %1 = vector.load %arg2[%c0_1, %c0_2] : memref<32x512xf32, #tpu.memory_space<vmem>>, vector<32x512xf32>
    %cst = arith.constant dense<0.000000e+00> : vector<128x512xf32>
    %2 = tpu.matmul %0, %1, %cst {dimension_numbers = #tpu.dot_dimension_numbers<[1], [0], [0], [1], [0, 0, 1, 1], [], []>} : vector<128x32xf32>, vector<32x512xf32>, vector<128x512xf32> -> vector<128x512xf32>
    %c0_3 = arith.constant 0 : index
    %c0_4 = arith.constant 0 : index
    %3 = vector.load %arg3[%c0_3, %c0_4] : memref<1x512xf32, #tpu.memory_space<vmem>>, vector<1x512xf32>
    %4 = vector.broadcast %3 : vector<1x512xf32> to vector<128x512xf32>
    %5 = arith.addf %2, %4 : vector<128x512xf32>
    %c0_5 = arith.constant 0 : index
    %c0_6 = arith.constant 0 : index
    %6 = vector.load %arg4[%c0_5, %c0_6] : memref<128x512xf32, #tpu.memory_space<vmem>>, vector<128x512xf32>
    tpu.vector_store %arg4[%c0_5, %c0_6], %5 {strides = array<i32>} : memref<128x512xf32, #tpu.memory_space<vmem>>, vector<128x512xf32>,
    return
  }
  func.func @transform_0(%arg0: i32) -> (i32, i32) {
    %c0_i32 = arith.constant 0 : i32
    %c0_i32_0 = arith.constant 0 : i32
    return %arg0, %c0_i32 : i32, i32
  }
  func.func @transform_1(%arg0: i32) -> (i32, i32) {
    %c0_i32 = arith.constant 0 : i32
    %c0_i32_0 = arith.constant 0 : i32
    %c0_i32_1 = arith.constant 0 : i32
    return %c0_i32, %c0_i32_0 : i32, i32
  }
  func.func @transform_2(%arg0: i32) -> (i32, i32) {
    %c0_i32 = arith.constant 0 : i32
    %c0_i32_0 = arith.constant 0 : i32
    %c0_i32_1 = arith.constant 0 : i32
    return %c0_i32, %c0_i32_0 : i32, i32
  }
  func.func @transform_3(%arg0: i32) -> (i32, i32) {
    %c0_i32 = arith.constant 0 : i32
    %c0_i32_0 = arith.constant 0 : i32
    return %arg0, %c0_i32 : i32, i32
  }
}

module attributes {stable_mosaic.version = 11 : i64} {
  func.func @_lstm_kernel(%arg0: i32, %arg1: i32, %arg2: memref<1xi32, #tpu.memory_space<smem>>, %arg3: memref<8x8x512xf32, #tpu.memory_space<vmem>>, %arg4: memref<128x512xf32, #tpu.memory_space<vmem>>, %arg5: memref<8x1xi32, #tpu.memory_space<vmem>>, %arg6: memref<8x8x128xf32, #tpu.memory_space<vmem>>, %arg7: memref<8x128xf32, #tpu.memory_space<vmem>>, %arg8: memref<8x128xf32, #tpu.memory_space<vmem>>) attributes {dimension_semantics = [#tpu.dimension_semantics<parallel>, #tpu.dimension_semantics<arbitrary>], iteration_bounds = array<i64: 1, 2>, scalar_prefetch = 1 : i64, scratch_operands = 0 : i64, tpu.core_type = #tpu.core_type<tc>, window_params = [{transform_indices = @transform_0, window_bounds = array<i64: 8, 8, 512>}, {pipeline_mode = #tpu.pipeline_mode<synchronous>, transform_indices = @transform_1, window_bounds = array<i64: 128, 512>}, {transform_indices = @transform_2, window_bounds = array<i64: 8, 1>}, {transform_indices = @transform_3, window_bounds = array<i64: 8, 8, 128>}, {transform_indices = @transform_4, window_bounds = array<i64: 8, 128>}, {transform_indices = @transform_5, window_bounds = array<i64: 8, 128>}]} {
    %c8_i32 = arith.constant 8 : i32
    %0 = arith.muli %arg1, %c8_i32 : i32
    %c0_i32 = arith.constant 0 : i32
    %1 = arith.cmpi eq, %arg1, %c0_i32 : i32
    %2 = arith.extui %1 : i1 to i32
    %c0_i32_0 = arith.constant 0 : i32
    %3 = arith.cmpi ne, %2, %c0_i32_0 : i32
    scf.if %3 {
      %cst = arith.constant 0.000000e+00 : f32
      %12 = vector.broadcast %cst : f32 to vector<8x128xf32>
      %c0 = arith.constant 0 : index
      %c0_3 = arith.constant 0 : index
      %13 = vector.load %arg7[%c0, %c0_3] : memref<8x128xf32, #tpu.memory_space<vmem>>, vector<8x128xf32>
      tpu.vector_store %arg7[%c0, %c0_3], %12 {strides = array<i32>} : memref<8x128xf32, #tpu.memory_space<vmem>>, vector<8x128xf32>,
      %cst_4 = arith.constant 0.000000e+00 : f32
      %14 = vector.broadcast %cst_4 : f32 to vector<8x128xf32>
      %c0_5 = arith.constant 0 : index
      %c0_6 = arith.constant 0 : index
      %15 = vector.load %arg8[%c0_5, %c0_6] : memref<8x128xf32, #tpu.memory_space<vmem>>, vector<8x128xf32>
      tpu.vector_store %arg8[%c0_5, %c0_6], %14 {strides = array<i32>} : memref<8x128xf32, #tpu.memory_space<vmem>>, vector<8x128xf32>,
    } else {
    }
    %4 = arith.index_cast %arg0 : i32 to index
    %5 = memref.load %arg2[%4] : memref<1xi32, #tpu.memory_space<smem>>
    %6 = arith.cmpi sgt, %5, %0 : i32
    %7 = arith.extui %6 : i1 to i32
    %c0_i32_1 = arith.constant 0 : i32
    %8 = arith.cmpi ne, %7, %c0_i32_1 : i32
    scf.if %8 {
      %c0 = arith.constant 0 : index
      %c0_3 = arith.constant 0 : index
      %12 = vector.load %arg5[%c0, %c0_3] : memref<8x1xi32, #tpu.memory_space<vmem>>, vector<8x1xi32>
      %c0_4 = arith.constant 0 : index
      %c0_5 = arith.constant 0 : index
      %13 = vector.load %arg7[%c0_4, %c0_5] : memref<8x128xf32, #tpu.memory_space<vmem>>, vector<8x128xf32>
      %c0_6 = arith.constant 0 : index
      %c0_7 = arith.constant 0 : index
      %14 = vector.load %arg8[%c0_6, %c0_7] : memref<8x128xf32, #tpu.memory_space<vmem>>, vector<8x128xf32>
      %c0_i32_8 = arith.constant 0 : i32
      %15 = arith.index_cast %c0_i32_8 : i32 to index
      %c0_9 = arith.constant 0 : index
      %c0_10 = arith.constant 0 : index
      %16 = vector.load %arg3[%15, %c0_9, %c0_10] : memref<8x8x512xf32, #tpu.memory_space<vmem>>, vector<1x8x512xf32>
      %17 = vector.shape_cast %16 : vector<1x8x512xf32> to vector<8x512xf32>
      %c0_11 = arith.constant 0 : index
      %c0_12 = arith.constant 0 : index
      %18 = vector.load %arg4[%c0_11, %c0_12] : memref<128x512xf32, #tpu.memory_space<vmem>>, vector<128x512xf32>
      %cst = arith.constant dense<0.000000e+00> : vector<8x512xf32>
      %19 = tpu.matmul %13, %18, %cst {dimension_numbers = #tpu.dot_dimension_numbers<[1], [0], [0], [1], [0, 0, 1, 1], [], []>} : vector<8x128xf32>, vector<128x512xf32>, vector<8x512xf32> -> vector<8x512xf32>
      %20 = arith.addf %17, %19 : vector<8x512xf32>
      %21 = vector.extract_strided_slice %20 {offsets = [0, 0], sizes = [8, 128], strides = [1, 1]} : vector<8x512xf32> to vector<8x128xf32>
      %22 = arith.negf %21 : vector<8x128xf32>
      %23 = math.exp %22 : vector<8x128xf32>
      %cst_13 = arith.constant 1.000000e+00 : f32
      %24 = vector.broadcast %cst_13 : f32 to vector<8x128xf32>
      %25 = arith.addf %24, %23 : vector<8x128xf32>
      %26 = arith.divf %24, %25 : vector<8x128xf32>
      %27 = vector.extract_strided_slice %20 {offsets = [0, 128], sizes = [8, 128], strides = [1, 1]} : vector<8x512xf32> to vector<8x128xf32>
      %28 = arith.negf %27 : vector<8x128xf32>
      %29 = math.exp %28 : vector<8x128xf32>
      %cst_14 = arith.constant 1.000000e+00 : f32
      %30 = vector.broadcast %cst_14 : f32 to vector<8x128xf32>
      %31 = arith.addf %30, %29 : vector<8x128xf32>
      %32 = arith.divf %30, %31 : vector<8x128xf32>
      %33 = vector.extract_strided_slice %20 {offsets = [0, 256], sizes = [8, 128], strides = [1, 1]} : vector<8x512xf32> to vector<8x128xf32>
      %34 = math.tanh %33 : vector<8x128xf32>
      %35 = vector.extract_strided_slice %20 {offsets = [0, 384], sizes = [8, 128], strides = [1, 1]} : vector<8x512xf32> to vector<8x128xf32>
      %36 = arith.negf %35 : vector<8x128xf32>
      %37 = math.exp %36 : vector<8x128xf32>
      %cst_15 = arith.constant 1.000000e+00 : f32
      %38 = vector.broadcast %cst_15 : f32 to vector<8x128xf32>
      %39 = arith.addf %38, %37 : vector<8x128xf32>
      %40 = arith.divf %38, %39 : vector<8x128xf32>
      %41 = arith.mulf %32, %14 : vector<8x128xf32>
      %42 = arith.mulf %26, %34 : vector<8x128xf32>
      %43 = arith.addf %41, %42 : vector<8x128xf32>
      %44 = math.tanh %43 : vector<8x128xf32>
      %45 = arith.mulf %40, %44 : vector<8x128xf32>
      %46 = arith.addi %0, %c0_i32_8 : i32
      %47 = vector.broadcast %46 : i32 to vector<8x1xi32>
      %48 = arith.cmpi sgt, %12, %47 : vector<8x1xi32>
      %49 = vector.shape_cast %48 : vector<8x1xi1> to vector<8x1xi1>
      %50 = vector.broadcast %49 : vector<8x1xi1> to vector<8x128xi1>
      %51 = arith.select %50, %45, %13 : vector<8x128xi1>, vector<8x128xf32>
      %52 = vector.shape_cast %48 : vector<8x1xi1> to vector<8x1xi1>
      %53 = vector.broadcast %52 : vector<8x1xi1> to vector<8x128xi1>
      %54 = arith.select %53, %43, %14 : vector<8x128xi1>, vector<8x128xf32>
      %cst_16 = arith.constant 0.000000e+00 : f32
      %55 = vector.shape_cast %48 : vector<8x1xi1> to vector<8x1xi1>
      %56 = vector.broadcast %55 : vector<8x1xi1> to vector<8x128xi1>
      %57 = vector.broadcast %cst_16 : f32 to vector<8x128xf32>
      %58 = arith.select %56, %45, %57 : vector<8x128xi1>, vector<8x128xf32>
      %59 = arith.index_cast %c0_i32_8 : i32 to index
      %c0_17 = arith.constant 0 : index
      %c0_18 = arith.constant 0 : index
      %60 = vector.load %arg6[%59, %c0_17, %c0_18] : memref<8x8x128xf32, #tpu.memory_space<vmem>>, vector<1x8x128xf32>
      %61 = vector.shape_cast %60 : vector<1x8x128xf32> to vector<8x128xf32>
      %62 = vector.shape_cast %58 : vector<8x128xf32> to vector<1x8x128xf32>
      tpu.vector_store %arg6[%59, %c0_17, %c0_18], %62 {strides = array<i32>} : memref<8x8x128xf32, #tpu.memory_space<vmem>>, vector<1x8x128xf32>,
      %c1_i32 = arith.constant 1 : i32
      %63 = arith.index_cast %c1_i32 : i32 to index
      %c0_19 = arith.constant 0 : index
      %c0_20 = arith.constant 0 : index
      %64 = vector.load %arg3[%63, %c0_19, %c0_20] : memref<8x8x512xf32, #tpu.memory_space<vmem>>, vector<1x8x512xf32>
      %65 = vector.shape_cast %64 : vector<1x8x512xf32> to vector<8x512xf32>
      %c0_21 = arith.constant 0 : index
      %c0_22 = arith.constant 0 : index
      %66 = vector.load %arg4[%c0_21, %c0_22] : memref<128x512xf32, #tpu.memory_space<vmem>>, vector<128x512xf32>
      %cst_23 = arith.constant dense<0.000000e+00> : vector<8x512xf32>
      %67 = tpu.matmul %51, %66, %cst_23 {dimension_numbers = #tpu.dot_dimension_numbers<[1], [0], [0], [1], [0, 0, 1, 1], [], []>} : vector<8x128xf32>, vector<128x512xf32>, vector<8x512xf32> -> vector<8x512xf32>
      %68 = arith.addf %65, %67 : vector<8x512xf32>
      %69 = vector.extract_strided_slice %68 {offsets = [0, 0], sizes = [8, 128], strides = [1, 1]} : vector<8x512xf32> to vector<8x128xf32>
      %70 = arith.negf %69 : vector<8x128xf32>
      %71 = math.exp %70 : vector<8x128xf32>
      %cst_24 = arith.constant 1.000000e+00 : f32
      %72 = vector.broadcast %cst_24 : f32 to vector<8x128xf32>
      %73 = arith.addf %72, %71 : vector<8x128xf32>
      %74 = arith.divf %72, %73 : vector<8x128xf32>
      %75 = vector.extract_strided_slice %68 {offsets = [0, 128], sizes = [8, 128], strides = [1, 1]} : vector<8x512xf32> to vector<8x128xf32>
      %76 = arith.negf %75 : vector<8x128xf32>
      %77 = math.exp %76 : vector<8x128xf32>
      %cst_25 = arith.constant 1.000000e+00 : f32
      %78 = vector.broadcast %cst_25 : f32 to vector<8x128xf32>
      %79 = arith.addf %78, %77 : vector<8x128xf32>
      %80 = arith.divf %78, %79 : vector<8x128xf32>
      %81 = vector.extract_strided_slice %68 {offsets = [0, 256], sizes = [8, 128], strides = [1, 1]} : vector<8x512xf32> to vector<8x128xf32>
      %82 = math.tanh %81 : vector<8x128xf32>
      %83 = vector.extract_strided_slice %68 {offsets = [0, 384], sizes = [8, 128], strides = [1, 1]} : vector<8x512xf32> to vector<8x128xf32>
      %84 = arith.negf %83 : vector<8x128xf32>
      %85 = math.exp %84 : vector<8x128xf32>
      %cst_26 = arith.constant 1.000000e+00 : f32
      %86 = vector.broadcast %cst_26 : f32 to vector<8x128xf32>
      %87 = arith.addf %86, %85 : vector<8x128xf32>
      %88 = arith.divf %86, %87 : vector<8x128xf32>
      %89 = arith.mulf %80, %54 : vector<8x128xf32>
      %90 = arith.mulf %74, %82 : vector<8x128xf32>
      %91 = arith.addf %89, %90 : vector<8x128xf32>
      %92 = math.tanh %91 : vector<8x128xf32>
      %93 = arith.mulf %88, %92 : vector<8x128xf32>
      %94 = arith.addi %0, %c1_i32 : i32
      %95 = vector.broadcast %94 : i32 to vector<8x1xi32>
      %96 = arith.cmpi sgt, %12, %95 : vector<8x1xi32>
      %97 = vector.shape_cast %96 : vector<8x1xi1> to vector<8x1xi1>
      %98 = vector.broadcast %97 : vector<8x1xi1> to vector<8x128xi1>
      %99 = arith.select %98, %93, %51 : vector<8x128xi1>, vector<8x128xf32>
      %100 = vector.shape_cast %96 : vector<8x1xi1> to vector<8x1xi1>
      %101 = vector.broadcast %100 : vector<8x1xi1> to vector<8x128xi1>
      %102 = arith.select %101, %91, %54 : vector<8x128xi1>, vector<8x128xf32>
      %cst_27 = arith.constant 0.000000e+00 : f32
      %103 = vector.shape_cast %96 : vector<8x1xi1> to vector<8x1xi1>
      %104 = vector.broadcast %103 : vector<8x1xi1> to vector<8x128xi1>
      %105 = vector.broadcast %cst_27 : f32 to vector<8x128xf32>
      %106 = arith.select %104, %93, %105 : vector<8x128xi1>, vector<8x128xf32>
      %107 = arith.index_cast %c1_i32 : i32 to index
      %c0_28 = arith.constant 0 : index
      %c0_29 = arith.constant 0 : index
      %108 = vector.load %arg6[%107, %c0_28, %c0_29] : memref<8x8x128xf32, #tpu.memory_space<vmem>>, vector<1x8x128xf32>
      %109 = vector.shape_cast %108 : vector<1x8x128xf32> to vector<8x128xf32>
      %110 = vector.shape_cast %106 : vector<8x128xf32> to vector<1x8x128xf32>
      tpu.vector_store %arg6[%107, %c0_28, %c0_29], %110 {strides = array<i32>} : memref<8x8x128xf32, #tpu.memory_space<vmem>>, vector<1x8x128xf32>,
      %c2_i32 = arith.constant 2 : i32
      %111 = arith.index_cast %c2_i32 : i32 to index
      %c0_30 = arith.constant 0 : index
      %c0_31 = arith.constant 0 : index
      %112 = vector.load %arg3[%111, %c0_30, %c0_31] : memref<8x8x512xf32, #tpu.memory_space<vmem>>, vector<1x8x512xf32>
      %113 = vector.shape_cast %112 : vector<1x8x512xf32> to vector<8x512xf32>
      %c0_32 = arith.constant 0 : index
      %c0_33 = arith.constant 0 : index
      %114 = vector.load %arg4[%c0_32, %c0_33] : memref<128x512xf32, #tpu.memory_space<vmem>>, vector<128x512xf32>
      %cst_34 = arith.constant dense<0.000000e+00> : vector<8x512xf32>
      %115 = tpu.matmul %99, %114, %cst_34 {dimension_numbers = #tpu.dot_dimension_numbers<[1], [0], [0], [1], [0, 0, 1, 1], [], []>} : vector<8x128xf32>, vector<128x512xf32>, vector<8x512xf32> -> vector<8x512xf32>
      %116 = arith.addf %113, %115 : vector<8x512xf32>
      %117 = vector.extract_strided_slice %116 {offsets = [0, 0], sizes = [8, 128], strides = [1, 1]} : vector<8x512xf32> to vector<8x128xf32>
      %118 = arith.negf %117 : vector<8x128xf32>
      %119 = math.exp %118 : vector<8x128xf32>
      %cst_35 = arith.constant 1.000000e+00 : f32
      %120 = vector.broadcast %cst_35 : f32 to vector<8x128xf32>
      %121 = arith.addf %120, %119 : vector<8x128xf32>
      %122 = arith.divf %120, %121 : vector<8x128xf32>
      %123 = vector.extract_strided_slice %116 {offsets = [0, 128], sizes = [8, 128], strides = [1, 1]} : vector<8x512xf32> to vector<8x128xf32>
      %124 = arith.negf %123 : vector<8x128xf32>
      %125 = math.exp %124 : vector<8x128xf32>
      %cst_36 = arith.constant 1.000000e+00 : f32
      %126 = vector.broadcast %cst_36 : f32 to vector<8x128xf32>
      %127 = arith.addf %126, %125 : vector<8x128xf32>
      %128 = arith.divf %126, %127 : vector<8x128xf32>
      %129 = vector.extract_strided_slice %116 {offsets = [0, 256], sizes = [8, 128], strides = [1, 1]} : vector<8x512xf32> to vector<8x128xf32>
      %130 = math.tanh %129 : vector<8x128xf32>
      %131 = vector.extract_strided_slice %116 {offsets = [0, 384], sizes = [8, 128], strides = [1, 1]} : vector<8x512xf32> to vector<8x128xf32>
      %132 = arith.negf %131 : vector<8x128xf32>
      %133 = math.exp %132 : vector<8x128xf32>
      %cst_37 = arith.constant 1.000000e+00 : f32
      %134 = vector.broadcast %cst_37 : f32 to vector<8x128xf32>
      %135 = arith.addf %134, %133 : vector<8x128xf32>
      %136 = arith.divf %134, %135 : vector<8x128xf32>
      %137 = arith.mulf %128, %102 : vector<8x128xf32>
      %138 = arith.mulf %122, %130 : vector<8x128xf32>
      %139 = arith.addf %137, %138 : vector<8x128xf32>
      %140 = math.tanh %139 : vector<8x128xf32>
      %141 = arith.mulf %136, %140 : vector<8x128xf32>
      %142 = arith.addi %0, %c2_i32 : i32
      %143 = vector.broadcast %142 : i32 to vector<8x1xi32>
      %144 = arith.cmpi sgt, %12, %143 : vector<8x1xi32>
      %145 = vector.shape_cast %144 : vector<8x1xi1> to vector<8x1xi1>
      %146 = vector.broadcast %145 : vector<8x1xi1> to vector<8x128xi1>
      %147 = arith.select %146, %141, %99 : vector<8x128xi1>, vector<8x128xf32>
      %148 = vector.shape_cast %144 : vector<8x1xi1> to vector<8x1xi1>
      %149 = vector.broadcast %148 : vector<8x1xi1> to vector<8x128xi1>
      %150 = arith.select %149, %139, %102 : vector<8x128xi1>, vector<8x128xf32>
      %cst_38 = arith.constant 0.000000e+00 : f32
      %151 = vector.shape_cast %144 : vector<8x1xi1> to vector<8x1xi1>
      %152 = vector.broadcast %151 : vector<8x1xi1> to vector<8x128xi1>
      %153 = vector.broadcast %cst_38 : f32 to vector<8x128xf32>
      %154 = arith.select %152, %141, %153 : vector<8x128xi1>, vector<8x128xf32>
      %155 = arith.index_cast %c2_i32 : i32 to index
      %c0_39 = arith.constant 0 : index
      %c0_40 = arith.constant 0 : index
      %156 = vector.load %arg6[%155, %c0_39, %c0_40] : memref<8x8x128xf32, #tpu.memory_space<vmem>>, vector<1x8x128xf32>
      %157 = vector.shape_cast %156 : vector<1x8x128xf32> to vector<8x128xf32>
      %158 = vector.shape_cast %154 : vector<8x128xf32> to vector<1x8x128xf32>
      tpu.vector_store %arg6[%155, %c0_39, %c0_40], %158 {strides = array<i32>} : memref<8x8x128xf32, #tpu.memory_space<vmem>>, vector<1x8x128xf32>,
      %c3_i32 = arith.constant 3 : i32
      %159 = arith.index_cast %c3_i32 : i32 to index
      %c0_41 = arith.constant 0 : index
      %c0_42 = arith.constant 0 : index
      %160 = vector.load %arg3[%159, %c0_41, %c0_42] : memref<8x8x512xf32, #tpu.memory_space<vmem>>, vector<1x8x512xf32>
      %161 = vector.shape_cast %160 : vector<1x8x512xf32> to vector<8x512xf32>
      %c0_43 = arith.constant 0 : index
      %c0_44 = arith.constant 0 : index
      %162 = vector.load %arg4[%c0_43, %c0_44] : memref<128x512xf32, #tpu.memory_space<vmem>>, vector<128x512xf32>
      %cst_45 = arith.constant dense<0.000000e+00> : vector<8x512xf32>
      %163 = tpu.matmul %147, %162, %cst_45 {dimension_numbers = #tpu.dot_dimension_numbers<[1], [0], [0], [1], [0, 0, 1, 1], [], []>} : vector<8x128xf32>, vector<128x512xf32>, vector<8x512xf32> -> vector<8x512xf32>
      %164 = arith.addf %161, %163 : vector<8x512xf32>
      %165 = vector.extract_strided_slice %164 {offsets = [0, 0], sizes = [8, 128], strides = [1, 1]} : vector<8x512xf32> to vector<8x128xf32>
      %166 = arith.negf %165 : vector<8x128xf32>
      %167 = math.exp %166 : vector<8x128xf32>
      %cst_46 = arith.constant 1.000000e+00 : f32
      %168 = vector.broadcast %cst_46 : f32 to vector<8x128xf32>
      %169 = arith.addf %168, %167 : vector<8x128xf32>
      %170 = arith.divf %168, %169 : vector<8x128xf32>
      %171 = vector.extract_strided_slice %164 {offsets = [0, 128], sizes = [8, 128], strides = [1, 1]} : vector<8x512xf32> to vector<8x128xf32>
      %172 = arith.negf %171 : vector<8x128xf32>
      %173 = math.exp %172 : vector<8x128xf32>
      %cst_47 = arith.constant 1.000000e+00 : f32
      %174 = vector.broadcast %cst_47 : f32 to vector<8x128xf32>
      %175 = arith.addf %174, %173 : vector<8x128xf32>
      %176 = arith.divf %174, %175 : vector<8x128xf32>
      %177 = vector.extract_strided_slice %164 {offsets = [0, 256], sizes = [8, 128], strides = [1, 1]} : vector<8x512xf32> to vector<8x128xf32>
      %178 = math.tanh %177 : vector<8x128xf32>
      %179 = vector.extract_strided_slice %164 {offsets = [0, 384], sizes = [8, 128], strides = [1, 1]} : vector<8x512xf32> to vector<8x128xf32>
      %180 = arith.negf %179 : vector<8x128xf32>
      %181 = math.exp %180 : vector<8x128xf32>
      %cst_48 = arith.constant 1.000000e+00 : f32
      %182 = vector.broadcast %cst_48 : f32 to vector<8x128xf32>
      %183 = arith.addf %182, %181 : vector<8x128xf32>
      %184 = arith.divf %182, %183 : vector<8x128xf32>
      %185 = arith.mulf %176, %150 : vector<8x128xf32>
      %186 = arith.mulf %170, %178 : vector<8x128xf32>
      %187 = arith.addf %185, %186 : vector<8x128xf32>
      %188 = math.tanh %187 : vector<8x128xf32>
      %189 = arith.mulf %184, %188 : vector<8x128xf32>
      %190 = arith.addi %0, %c3_i32 : i32
      %191 = vector.broadcast %190 : i32 to vector<8x1xi32>
      %192 = arith.cmpi sgt, %12, %191 : vector<8x1xi32>
      %193 = vector.shape_cast %192 : vector<8x1xi1> to vector<8x1xi1>
      %194 = vector.broadcast %193 : vector<8x1xi1> to vector<8x128xi1>
      %195 = arith.select %194, %189, %147 : vector<8x128xi1>, vector<8x128xf32>
      %196 = vector.shape_cast %192 : vector<8x1xi1> to vector<8x1xi1>
      %197 = vector.broadcast %196 : vector<8x1xi1> to vector<8x128xi1>
      %198 = arith.select %197, %187, %150 : vector<8x128xi1>, vector<8x128xf32>
      %cst_49 = arith.constant 0.000000e+00 : f32
      %199 = vector.shape_cast %192 : vector<8x1xi1> to vector<8x1xi1>
      %200 = vector.broadcast %199 : vector<8x1xi1> to vector<8x128xi1>
      %201 = vector.broadcast %cst_49 : f32 to vector<8x128xf32>
      %202 = arith.select %200, %189, %201 : vector<8x128xi1>, vector<8x128xf32>
      %203 = arith.index_cast %c3_i32 : i32 to index
      %c0_50 = arith.constant 0 : index
      %c0_51 = arith.constant 0 : index
      %204 = vector.load %arg6[%203, %c0_50, %c0_51] : memref<8x8x128xf32, #tpu.memory_space<vmem>>, vector<1x8x128xf32>
      %205 = vector.shape_cast %204 : vector<1x8x128xf32> to vector<8x128xf32>
      %206 = vector.shape_cast %202 : vector<8x128xf32> to vector<1x8x128xf32>
      tpu.vector_store %arg6[%203, %c0_50, %c0_51], %206 {strides = array<i32>} : memref<8x8x128xf32, #tpu.memory_space<vmem>>, vector<1x8x128xf32>,
      %c4_i32 = arith.constant 4 : i32
      %207 = arith.index_cast %c4_i32 : i32 to index
      %c0_52 = arith.constant 0 : index
      %c0_53 = arith.constant 0 : index
      %208 = vector.load %arg3[%207, %c0_52, %c0_53] : memref<8x8x512xf32, #tpu.memory_space<vmem>>, vector<1x8x512xf32>
      %209 = vector.shape_cast %208 : vector<1x8x512xf32> to vector<8x512xf32>
      %c0_54 = arith.constant 0 : index
      %c0_55 = arith.constant 0 : index
      %210 = vector.load %arg4[%c0_54, %c0_55] : memref<128x512xf32, #tpu.memory_space<vmem>>, vector<128x512xf32>
      %cst_56 = arith.constant dense<0.000000e+00> : vector<8x512xf32>
      %211 = tpu.matmul %195, %210, %cst_56 {dimension_numbers = #tpu.dot_dimension_numbers<[1], [0], [0], [1], [0, 0, 1, 1], [], []>} : vector<8x128xf32>, vector<128x512xf32>, vector<8x512xf32> -> vector<8x512xf32>
      %212 = arith.addf %209, %211 : vector<8x512xf32>
      %213 = vector.extract_strided_slice %212 {offsets = [0, 0], sizes = [8, 128], strides = [1, 1]} : vector<8x512xf32> to vector<8x128xf32>
      %214 = arith.negf %213 : vector<8x128xf32>
      %215 = math.exp %214 : vector<8x128xf32>
      %cst_57 = arith.constant 1.000000e+00 : f32
      %216 = vector.broadcast %cst_57 : f32 to vector<8x128xf32>
      %217 = arith.addf %216, %215 : vector<8x128xf32>
      %218 = arith.divf %216, %217 : vector<8x128xf32>
      %219 = vector.extract_strided_slice %212 {offsets = [0, 128], sizes = [8, 128], strides = [1, 1]} : vector<8x512xf32> to vector<8x128xf32>
      %220 = arith.negf %219 : vector<8x128xf32>
      %221 = math.exp %220 : vector<8x128xf32>
      %cst_58 = arith.constant 1.000000e+00 : f32
      %222 = vector.broadcast %cst_58 : f32 to vector<8x128xf32>
      %223 = arith.addf %222, %221 : vector<8x128xf32>
      %224 = arith.divf %222, %223 : vector<8x128xf32>
      %225 = vector.extract_strided_slice %212 {offsets = [0, 256], sizes = [8, 128], strides = [1, 1]} : vector<8x512xf32> to vector<8x128xf32>
      %226 = math.tanh %225 : vector<8x128xf32>
      %227 = vector.extract_strided_slice %212 {offsets = [0, 384], sizes = [8, 128], strides = [1, 1]} : vector<8x512xf32> to vector<8x128xf32>
      %228 = arith.negf %227 : vector<8x128xf32>
      %229 = math.exp %228 : vector<8x128xf32>
      %cst_59 = arith.constant 1.000000e+00 : f32
      %230 = vector.broadcast %cst_59 : f32 to vector<8x128xf32>
      %231 = arith.addf %230, %229 : vector<8x128xf32>
      %232 = arith.divf %230, %231 : vector<8x128xf32>
      %233 = arith.mulf %224, %198 : vector<8x128xf32>
      %234 = arith.mulf %218, %226 : vector<8x128xf32>
      %235 = arith.addf %233, %234 : vector<8x128xf32>
      %236 = math.tanh %235 : vector<8x128xf32>
      %237 = arith.mulf %232, %236 : vector<8x128xf32>
      %238 = arith.addi %0, %c4_i32 : i32
      %239 = vector.broadcast %238 : i32 to vector<8x1xi32>
      %240 = arith.cmpi sgt, %12, %239 : vector<8x1xi32>
      %241 = vector.shape_cast %240 : vector<8x1xi1> to vector<8x1xi1>
      %242 = vector.broadcast %241 : vector<8x1xi1> to vector<8x128xi1>
      %243 = arith.select %242, %237, %195 : vector<8x128xi1>, vector<8x128xf32>
      %244 = vector.shape_cast %240 : vector<8x1xi1> to vector<8x1xi1>
      %245 = vector.broadcast %244 : vector<8x1xi1> to vector<8x128xi1>
      %246 = arith.select %245, %235, %198 : vector<8x128xi1>, vector<8x128xf32>
      %cst_60 = arith.constant 0.000000e+00 : f32
      %247 = vector.shape_cast %240 : vector<8x1xi1> to vector<8x1xi1>
      %248 = vector.broadcast %247 : vector<8x1xi1> to vector<8x128xi1>
      %249 = vector.broadcast %cst_60 : f32 to vector<8x128xf32>
      %250 = arith.select %248, %237, %249 : vector<8x128xi1>, vector<8x128xf32>
      %251 = arith.index_cast %c4_i32 : i32 to index
      %c0_61 = arith.constant 0 : index
      %c0_62 = arith.constant 0 : index
      %252 = vector.load %arg6[%251, %c0_61, %c0_62] : memref<8x8x128xf32, #tpu.memory_space<vmem>>, vector<1x8x128xf32>
      %253 = vector.shape_cast %252 : vector<1x8x128xf32> to vector<8x128xf32>
      %254 = vector.shape_cast %250 : vector<8x128xf32> to vector<1x8x128xf32>
      tpu.vector_store %arg6[%251, %c0_61, %c0_62], %254 {strides = array<i32>} : memref<8x8x128xf32, #tpu.memory_space<vmem>>, vector<1x8x128xf32>,
      %c5_i32 = arith.constant 5 : i32
      %255 = arith.index_cast %c5_i32 : i32 to index
      %c0_63 = arith.constant 0 : index
      %c0_64 = arith.constant 0 : index
      %256 = vector.load %arg3[%255, %c0_63, %c0_64] : memref<8x8x512xf32, #tpu.memory_space<vmem>>, vector<1x8x512xf32>
      %257 = vector.shape_cast %256 : vector<1x8x512xf32> to vector<8x512xf32>
      %c0_65 = arith.constant 0 : index
      %c0_66 = arith.constant 0 : index
      %258 = vector.load %arg4[%c0_65, %c0_66] : memref<128x512xf32, #tpu.memory_space<vmem>>, vector<128x512xf32>
      %cst_67 = arith.constant dense<0.000000e+00> : vector<8x512xf32>
      %259 = tpu.matmul %243, %258, %cst_67 {dimension_numbers = #tpu.dot_dimension_numbers<[1], [0], [0], [1], [0, 0, 1, 1], [], []>} : vector<8x128xf32>, vector<128x512xf32>, vector<8x512xf32> -> vector<8x512xf32>
      %260 = arith.addf %257, %259 : vector<8x512xf32>
      %261 = vector.extract_strided_slice %260 {offsets = [0, 0], sizes = [8, 128], strides = [1, 1]} : vector<8x512xf32> to vector<8x128xf32>
      %262 = arith.negf %261 : vector<8x128xf32>
      %263 = math.exp %262 : vector<8x128xf32>
      %cst_68 = arith.constant 1.000000e+00 : f32
      %264 = vector.broadcast %cst_68 : f32 to vector<8x128xf32>
      %265 = arith.addf %264, %263 : vector<8x128xf32>
      %266 = arith.divf %264, %265 : vector<8x128xf32>
      %267 = vector.extract_strided_slice %260 {offsets = [0, 128], sizes = [8, 128], strides = [1, 1]} : vector<8x512xf32> to vector<8x128xf32>
      %268 = arith.negf %267 : vector<8x128xf32>
      %269 = math.exp %268 : vector<8x128xf32>
      %cst_69 = arith.constant 1.000000e+00 : f32
      %270 = vector.broadcast %cst_69 : f32 to vector<8x128xf32>
      %271 = arith.addf %270, %269 : vector<8x128xf32>
      %272 = arith.divf %270, %271 : vector<8x128xf32>
      %273 = vector.extract_strided_slice %260 {offsets = [0, 256], sizes = [8, 128], strides = [1, 1]} : vector<8x512xf32> to vector<8x128xf32>
      %274 = math.tanh %273 : vector<8x128xf32>
      %275 = vector.extract_strided_slice %260 {offsets = [0, 384], sizes = [8, 128], strides = [1, 1]} : vector<8x512xf32> to vector<8x128xf32>
      %276 = arith.negf %275 : vector<8x128xf32>
      %277 = math.exp %276 : vector<8x128xf32>
      %cst_70 = arith.constant 1.000000e+00 : f32
      %278 = vector.broadcast %cst_70 : f32 to vector<8x128xf32>
      %279 = arith.addf %278, %277 : vector<8x128xf32>
      %280 = arith.divf %278, %279 : vector<8x128xf32>
      %281 = arith.mulf %272, %246 : vector<8x128xf32>
      %282 = arith.mulf %266, %274 : vector<8x128xf32>
      %283 = arith.addf %281, %282 : vector<8x128xf32>
      %284 = math.tanh %283 : vector<8x128xf32>
      %285 = arith.mulf %280, %284 : vector<8x128xf32>
      %286 = arith.addi %0, %c5_i32 : i32
      %287 = vector.broadcast %286 : i32 to vector<8x1xi32>
      %288 = arith.cmpi sgt, %12, %287 : vector<8x1xi32>
      %289 = vector.shape_cast %288 : vector<8x1xi1> to vector<8x1xi1>
      %290 = vector.broadcast %289 : vector<8x1xi1> to vector<8x128xi1>
      %291 = arith.select %290, %285, %243 : vector<8x128xi1>, vector<8x128xf32>
      %292 = vector.shape_cast %288 : vector<8x1xi1> to vector<8x1xi1>
      %293 = vector.broadcast %292 : vector<8x1xi1> to vector<8x128xi1>
      %294 = arith.select %293, %283, %246 : vector<8x128xi1>, vector<8x128xf32>
      %cst_71 = arith.constant 0.000000e+00 : f32
      %295 = vector.shape_cast %288 : vector<8x1xi1> to vector<8x1xi1>
      %296 = vector.broadcast %295 : vector<8x1xi1> to vector<8x128xi1>
      %297 = vector.broadcast %cst_71 : f32 to vector<8x128xf32>
      %298 = arith.select %296, %285, %297 : vector<8x128xi1>, vector<8x128xf32>
      %299 = arith.index_cast %c5_i32 : i32 to index
      %c0_72 = arith.constant 0 : index
      %c0_73 = arith.constant 0 : index
      %300 = vector.load %arg6[%299, %c0_72, %c0_73] : memref<8x8x128xf32, #tpu.memory_space<vmem>>, vector<1x8x128xf32>
      %301 = vector.shape_cast %300 : vector<1x8x128xf32> to vector<8x128xf32>
      %302 = vector.shape_cast %298 : vector<8x128xf32> to vector<1x8x128xf32>
      tpu.vector_store %arg6[%299, %c0_72, %c0_73], %302 {strides = array<i32>} : memref<8x8x128xf32, #tpu.memory_space<vmem>>, vector<1x8x128xf32>,
      %c6_i32 = arith.constant 6 : i32
      %303 = arith.index_cast %c6_i32 : i32 to index
      %c0_74 = arith.constant 0 : index
      %c0_75 = arith.constant 0 : index
      %304 = vector.load %arg3[%303, %c0_74, %c0_75] : memref<8x8x512xf32, #tpu.memory_space<vmem>>, vector<1x8x512xf32>
      %305 = vector.shape_cast %304 : vector<1x8x512xf32> to vector<8x512xf32>
      %c0_76 = arith.constant 0 : index
      %c0_77 = arith.constant 0 : index
      %306 = vector.load %arg4[%c0_76, %c0_77] : memref<128x512xf32, #tpu.memory_space<vmem>>, vector<128x512xf32>
      %cst_78 = arith.constant dense<0.000000e+00> : vector<8x512xf32>
      %307 = tpu.matmul %291, %306, %cst_78 {dimension_numbers = #tpu.dot_dimension_numbers<[1], [0], [0], [1], [0, 0, 1, 1], [], []>} : vector<8x128xf32>, vector<128x512xf32>, vector<8x512xf32> -> vector<8x512xf32>
      %308 = arith.addf %305, %307 : vector<8x512xf32>
      %309 = vector.extract_strided_slice %308 {offsets = [0, 0], sizes = [8, 128], strides = [1, 1]} : vector<8x512xf32> to vector<8x128xf32>
      %310 = arith.negf %309 : vector<8x128xf32>
      %311 = math.exp %310 : vector<8x128xf32>
      %cst_79 = arith.constant 1.000000e+00 : f32
      %312 = vector.broadcast %cst_79 : f32 to vector<8x128xf32>
      %313 = arith.addf %312, %311 : vector<8x128xf32>
      %314 = arith.divf %312, %313 : vector<8x128xf32>
      %315 = vector.extract_strided_slice %308 {offsets = [0, 128], sizes = [8, 128], strides = [1, 1]} : vector<8x512xf32> to vector<8x128xf32>
      %316 = arith.negf %315 : vector<8x128xf32>
      %317 = math.exp %316 : vector<8x128xf32>
      %cst_80 = arith.constant 1.000000e+00 : f32
      %318 = vector.broadcast %cst_80 : f32 to vector<8x128xf32>
      %319 = arith.addf %318, %317 : vector<8x128xf32>
      %320 = arith.divf %318, %319 : vector<8x128xf32>
      %321 = vector.extract_strided_slice %308 {offsets = [0, 256], sizes = [8, 128], strides = [1, 1]} : vector<8x512xf32> to vector<8x128xf32>
      %322 = math.tanh %321 : vector<8x128xf32>
      %323 = vector.extract_strided_slice %308 {offsets = [0, 384], sizes = [8, 128], strides = [1, 1]} : vector<8x512xf32> to vector<8x128xf32>
      %324 = arith.negf %323 : vector<8x128xf32>
      %325 = math.exp %324 : vector<8x128xf32>
      %cst_81 = arith.constant 1.000000e+00 : f32
      %326 = vector.broadcast %cst_81 : f32 to vector<8x128xf32>
      %327 = arith.addf %326, %325 : vector<8x128xf32>
      %328 = arith.divf %326, %327 : vector<8x128xf32>
      %329 = arith.mulf %320, %294 : vector<8x128xf32>
      %330 = arith.mulf %314, %322 : vector<8x128xf32>
      %331 = arith.addf %329, %330 : vector<8x128xf32>
      %332 = math.tanh %331 : vector<8x128xf32>
      %333 = arith.mulf %328, %332 : vector<8x128xf32>
      %334 = arith.addi %0, %c6_i32 : i32
      %335 = vector.broadcast %334 : i32 to vector<8x1xi32>
      %336 = arith.cmpi sgt, %12, %335 : vector<8x1xi32>
      %337 = vector.shape_cast %336 : vector<8x1xi1> to vector<8x1xi1>
      %338 = vector.broadcast %337 : vector<8x1xi1> to vector<8x128xi1>
      %339 = arith.select %338, %333, %291 : vector<8x128xi1>, vector<8x128xf32>
      %340 = vector.shape_cast %336 : vector<8x1xi1> to vector<8x1xi1>
      %341 = vector.broadcast %340 : vector<8x1xi1> to vector<8x128xi1>
      %342 = arith.select %341, %331, %294 : vector<8x128xi1>, vector<8x128xf32>
      %cst_82 = arith.constant 0.000000e+00 : f32
      %343 = vector.shape_cast %336 : vector<8x1xi1> to vector<8x1xi1>
      %344 = vector.broadcast %343 : vector<8x1xi1> to vector<8x128xi1>
      %345 = vector.broadcast %cst_82 : f32 to vector<8x128xf32>
      %346 = arith.select %344, %333, %345 : vector<8x128xi1>, vector<8x128xf32>
      %347 = arith.index_cast %c6_i32 : i32 to index
      %c0_83 = arith.constant 0 : index
      %c0_84 = arith.constant 0 : index
      %348 = vector.load %arg6[%347, %c0_83, %c0_84] : memref<8x8x128xf32, #tpu.memory_space<vmem>>, vector<1x8x128xf32>
      %349 = vector.shape_cast %348 : vector<1x8x128xf32> to vector<8x128xf32>
      %350 = vector.shape_cast %346 : vector<8x128xf32> to vector<1x8x128xf32>
      tpu.vector_store %arg6[%347, %c0_83, %c0_84], %350 {strides = array<i32>} : memref<8x8x128xf32, #tpu.memory_space<vmem>>, vector<1x8x128xf32>,
      %c7_i32 = arith.constant 7 : i32
      %351 = arith.index_cast %c7_i32 : i32 to index
      %c0_85 = arith.constant 0 : index
      %c0_86 = arith.constant 0 : index
      %352 = vector.load %arg3[%351, %c0_85, %c0_86] : memref<8x8x512xf32, #tpu.memory_space<vmem>>, vector<1x8x512xf32>
      %353 = vector.shape_cast %352 : vector<1x8x512xf32> to vector<8x512xf32>
      %c0_87 = arith.constant 0 : index
      %c0_88 = arith.constant 0 : index
      %354 = vector.load %arg4[%c0_87, %c0_88] : memref<128x512xf32, #tpu.memory_space<vmem>>, vector<128x512xf32>
      %cst_89 = arith.constant dense<0.000000e+00> : vector<8x512xf32>
      %355 = tpu.matmul %339, %354, %cst_89 {dimension_numbers = #tpu.dot_dimension_numbers<[1], [0], [0], [1], [0, 0, 1, 1], [], []>} : vector<8x128xf32>, vector<128x512xf32>, vector<8x512xf32> -> vector<8x512xf32>
      %356 = arith.addf %353, %355 : vector<8x512xf32>
      %357 = vector.extract_strided_slice %356 {offsets = [0, 0], sizes = [8, 128], strides = [1, 1]} : vector<8x512xf32> to vector<8x128xf32>
      %358 = arith.negf %357 : vector<8x128xf32>
      %359 = math.exp %358 : vector<8x128xf32>
      %cst_90 = arith.constant 1.000000e+00 : f32
      %360 = vector.broadcast %cst_90 : f32 to vector<8x128xf32>
      %361 = arith.addf %360, %359 : vector<8x128xf32>
      %362 = arith.divf %360, %361 : vector<8x128xf32>
      %363 = vector.extract_strided_slice %356 {offsets = [0, 128], sizes = [8, 128], strides = [1, 1]} : vector<8x512xf32> to vector<8x128xf32>
      %364 = arith.negf %363 : vector<8x128xf32>
      %365 = math.exp %364 : vector<8x128xf32>
      %cst_91 = arith.constant 1.000000e+00 : f32
      %366 = vector.broadcast %cst_91 : f32 to vector<8x128xf32>
      %367 = arith.addf %366, %365 : vector<8x128xf32>
      %368 = arith.divf %366, %367 : vector<8x128xf32>
      %369 = vector.extract_strided_slice %356 {offsets = [0, 256], sizes = [8, 128], strides = [1, 1]} : vector<8x512xf32> to vector<8x128xf32>
      %370 = math.tanh %369 : vector<8x128xf32>
      %371 = vector.extract_strided_slice %356 {offsets = [0, 384], sizes = [8, 128], strides = [1, 1]} : vector<8x512xf32> to vector<8x128xf32>
      %372 = arith.negf %371 : vector<8x128xf32>
      %373 = math.exp %372 : vector<8x128xf32>
      %cst_92 = arith.constant 1.000000e+00 : f32
      %374 = vector.broadcast %cst_92 : f32 to vector<8x128xf32>
      %375 = arith.addf %374, %373 : vector<8x128xf32>
      %376 = arith.divf %374, %375 : vector<8x128xf32>
      %377 = arith.mulf %368, %342 : vector<8x128xf32>
      %378 = arith.mulf %362, %370 : vector<8x128xf32>
      %379 = arith.addf %377, %378 : vector<8x128xf32>
      %380 = math.tanh %379 : vector<8x128xf32>
      %381 = arith.mulf %376, %380 : vector<8x128xf32>
      %382 = arith.addi %0, %c7_i32 : i32
      %383 = vector.broadcast %382 : i32 to vector<8x1xi32>
      %384 = arith.cmpi sgt, %12, %383 : vector<8x1xi32>
      %385 = vector.shape_cast %384 : vector<8x1xi1> to vector<8x1xi1>
      %386 = vector.broadcast %385 : vector<8x1xi1> to vector<8x128xi1>
      %387 = arith.select %386, %381, %339 : vector<8x128xi1>, vector<8x128xf32>
      %388 = vector.shape_cast %384 : vector<8x1xi1> to vector<8x1xi1>
      %389 = vector.broadcast %388 : vector<8x1xi1> to vector<8x128xi1>
      %390 = arith.select %389, %379, %342 : vector<8x128xi1>, vector<8x128xf32>
      %cst_93 = arith.constant 0.000000e+00 : f32
      %391 = vector.shape_cast %384 : vector<8x1xi1> to vector<8x1xi1>
      %392 = vector.broadcast %391 : vector<8x1xi1> to vector<8x128xi1>
      %393 = vector.broadcast %cst_93 : f32 to vector<8x128xf32>
      %394 = arith.select %392, %381, %393 : vector<8x128xi1>, vector<8x128xf32>
      %395 = arith.index_cast %c7_i32 : i32 to index
      %c0_94 = arith.constant 0 : index
      %c0_95 = arith.constant 0 : index
      %396 = vector.load %arg6[%395, %c0_94, %c0_95] : memref<8x8x128xf32, #tpu.memory_space<vmem>>, vector<1x8x128xf32>
      %397 = vector.shape_cast %396 : vector<1x8x128xf32> to vector<8x128xf32>
      %398 = vector.shape_cast %394 : vector<8x128xf32> to vector<1x8x128xf32>
      tpu.vector_store %arg6[%395, %c0_94, %c0_95], %398 {strides = array<i32>} : memref<8x8x128xf32, #tpu.memory_space<vmem>>, vector<1x8x128xf32>,
      %c8_i32_96 = arith.constant 8 : i32
      %c0_97 = arith.constant 0 : index
      %c0_98 = arith.constant 0 : index
      %399 = vector.load %arg7[%c0_97, %c0_98] : memref<8x128xf32, #tpu.memory_space<vmem>>, vector<8x128xf32>
      tpu.vector_store %arg7[%c0_97, %c0_98], %387 {strides = array<i32>} : memref<8x128xf32, #tpu.memory_space<vmem>>, vector<8x128xf32>,
      %c0_99 = arith.constant 0 : index
      %c0_100 = arith.constant 0 : index
      %400 = vector.load %arg8[%c0_99, %c0_100] : memref<8x128xf32, #tpu.memory_space<vmem>>, vector<8x128xf32>
      tpu.vector_store %arg8[%c0_99, %c0_100], %390 {strides = array<i32>} : memref<8x128xf32, #tpu.memory_space<vmem>>, vector<8x128xf32>,
    } else {
    }
    %true = arith.constant true
    %9 = arith.xori %6, %true : i1
    %10 = arith.extui %9 : i1 to i32
    %c0_i32_2 = arith.constant 0 : i32
    %11 = arith.cmpi ne, %10, %c0_i32_2 : i32
    scf.if %11 {
      %cst = arith.constant 0.000000e+00 : f32
      %12 = vector.broadcast %cst : f32 to vector<8x8x128xf32>
      %c0 = arith.constant 0 : index
      %c0_3 = arith.constant 0 : index
      %c0_4 = arith.constant 0 : index
      %13 = vector.load %arg6[%c0, %c0_3, %c0_4] : memref<8x8x128xf32, #tpu.memory_space<vmem>>, vector<8x8x128xf32>
      tpu.vector_store %arg6[%c0, %c0_3, %c0_4], %12 {strides = array<i32>} : memref<8x8x128xf32, #tpu.memory_space<vmem>>, vector<8x8x128xf32>,
    } else {
    }
    return
  }
  func.func @transform_0(%arg0: i32, %arg1: i32, %arg2: memref<1xi32, #tpu.memory_space<smem>>) -> (i32, i32, i32) {
    %c0_i32 = arith.constant 0 : i32
    %c0_i32_0 = arith.constant 0 : i32
    return %arg1, %arg0, %c0_i32 : i32, i32, i32
  }
  func.func @transform_1(%arg0: i32, %arg1: i32, %arg2: memref<1xi32, #tpu.memory_space<smem>>) -> (i32, i32) {
    %c0_i32 = arith.constant 0 : i32
    %c0_i32_0 = arith.constant 0 : i32
    %c0_i32_1 = arith.constant 0 : i32
    return %c0_i32, %c0_i32_0 : i32, i32
  }
  func.func @transform_2(%arg0: i32, %arg1: i32, %arg2: memref<1xi32, #tpu.memory_space<smem>>) -> (i32, i32) {
    %c0_i32 = arith.constant 0 : i32
    %c0_i32_0 = arith.constant 0 : i32
    return %arg0, %c0_i32 : i32, i32
  }
  func.func @transform_3(%arg0: i32, %arg1: i32, %arg2: memref<1xi32, #tpu.memory_space<smem>>) -> (i32, i32, i32) {
    %c0_i32 = arith.constant 0 : i32
    %c0_i32_0 = arith.constant 0 : i32
    return %arg1, %arg0, %c0_i32 : i32, i32, i32
  }
  func.func @transform_4(%arg0: i32, %arg1: i32, %arg2: memref<1xi32, #tpu.memory_space<smem>>) -> (i32, i32) {
    %c0_i32 = arith.constant 0 : i32
    %c0_i32_0 = arith.constant 0 : i32
    return %arg0, %c0_i32 : i32, i32
  }
  func.func @transform_5(%arg0: i32, %arg1: i32, %arg2: memref<1xi32, #tpu.memory_space<smem>>) -> (i32, i32) {
    %c0_i32 = arith.constant 0 : i32
    %c0_i32_0 = arith.constant 0 : i32
    return %arg0, %c0_i32 : i32, i32
  }
}

</mosaic_0001>

<llo_original>
// kernel: rnn_with_bn_forward.2
$region0: #{rnn_with_bn_forward.2}
  #allocation0 [shape = 'u32[]', space=smem, size = 0x4, offset = 0x4, fixed_abs, tag = 'smem constant byte address 0x4 - core index']
  #allocation1 [shape = 'u32[144,128]{1,0:T(1,128)}', space=vmem, size = 0x12000, scoped, tag = 'internal scratch']
  %s0 = inlined_call_operand.vmem [shape: f32[128,32], index: 0, kind: input, shape index: {}]
  %s1 = inlined_call_operand.vmem [shape: f32[32,512], index: 1, kind: input, shape index: {}]
  %s2 = inlined_call_operand.vmem [shape: f32[1,512], index: 2, kind: input, shape index: {}]
  %s3 = inlined_call_operand.vmem [shape: f32[128,512], index: 3, kind: output, shape index: {}]
  %s4 = sld [smem:[#allocation0]]
  $region22: #{rnn_with_bn_forward.2} parent=0
    _
  %s6 = ssub.s32 1, %s4
  %s7 = scalar_select 0, %s6, %s4
  // Predicated region
  $region2: #{rnn_with_bn_forward.2} parent=0 // pred_check
    _
  $region3: #{rnn_with_bn_forward.2} parent=0 // pred_check_branch
    %9 = sbr.rel (0) target = $region5
  $region4: #{rnn_with_bn_forward.2} parent=0 // pred_region
    _
  $region5: #{rnn_with_bn_forward.2} parent=0 // pred_fallthru
    _
  // Predicated region
  $region6: #{rnn_with_bn_forward.2} parent=0 // pred_check
    _
  $region7: #{rnn_with_bn_forward.2} parent=0 // pred_check_branch
    %11 = sbr.rel (0) target = $region9
  $region8: #{rnn_with_bn_forward.2} parent=0 // pred_region
    _
  $region9: #{rnn_with_bn_forward.2} parent=0 // pred_fallthru
    _
  // Predicated region
  $region10: #{rnn_with_bn_forward.2} parent=0 // pred_check
    _
  $region11: #{rnn_with_bn_forward.2} parent=0 // pred_check_branch
    %13 = sbr.rel (0) target = $region13
  $region12: #{rnn_with_bn_forward.2} parent=0 // pred_region
    _
  $region13: #{rnn_with_bn_forward.2} parent=0 // pred_fallthru
    _
  %v14 = vld [vmem:[%s0] sm:$0xff]
  %v15 = vld [vmem:[%s0 + $0x8] sm:$0xff]
  %v16 = vld [vmem:[%s0 + $0x10] sm:$0xff]
  %v17 = vld [vmem:[%s0 + $0x18] sm:$0xff]
  %v18 = vld [vmem:[%s0 + $0x20] sm:$0xff]
  %v19 = vld [vmem:[%s0 + $0x28] sm:$0xff]
  %v20 = vld [vmem:[%s0 + $0x30] sm:$0xff]
  %v21 = vld [vmem:[%s0 + $0x38] sm:$0xff]
  %v22 = vld [vmem:[%s0 + $0x40] sm:$0xff]
  %v23 = vld [vmem:[%s0 + $0x48] sm:$0xff]
  %v24 = vld [vmem:[%s0 + $0x50] sm:$0xff]
  %v25 = vld [vmem:[%s0 + $0x58] sm:$0xff]
  %v26 = vld [vmem:[%s0 + $0x60] sm:$0xff]
  %v27 = vld [vmem:[%s0 + $0x68] sm:$0xff]
  %v28 = vld [vmem:[%s0 + $0x70] sm:$0xff]
  %v29 = vld [vmem:[%s0 + $0x78] sm:$0xff]
  %v30 = vld [vmem:[%s1] sm:$0xff]
  %v31 = vld [vmem:[%s1 + $0x8] sm:$0xff]
  %v32 = vld [vmem:[%s1 + $0x10] sm:$0xff]
  %v33 = vld [vmem:[%s1 + $0x18] sm:$0xff]
  %v34 = vld [vmem:[%s1 + $0x20] sm:$0xff]
  %v35 = vld [vmem:[%s1 + $0x28] sm:$0xff]
  %v36 = vld [vmem:[%s1 + $0x30] sm:$0xff]
  %v37 = vld [vmem:[%s1 + $0x38] sm:$0xff]
  %v38 = vld [vmem:[%s1 + $0x40] sm:$0xff]
  %v39 = vld [vmem:[%s1 + $0x48] sm:$0xff]
  %v40 = vld [vmem:[%s1 + $0x50] sm:$0xff]
  %v41 = vld [vmem:[%s1 + $0x58] sm:$0xff]
  %v42 = vld [vmem:[%s1 + $0x60] sm:$0xff]
  %v43 = vld [vmem:[%s1 + $0x68] sm:$0xff]
  %v44 = vld [vmem:[%s1 + $0x70] sm:$0xff]
  %v45 = vld [vmem:[%s1 + $0x78] sm:$0xff]
  %v46 = vld [vmem:[%s2] sm:$0xf]
  %v48 = vlaneseq
  %v49 = vshrl.u32 %v48, 7
  %v50 = vsub.s32 0, %v49
  %v51 = vrot.slane %v46, %v50
  %v52 = vlaneseq
  %v53 = vshrl.u32 %v52, 7
  %v54 = vsub.s32 1, %v53
  %v55 = vrot.slane %v46, %v54
  %v56 = vlaneseq
  %v57 = vshrl.u32 %v56, 7
  %v58 = vsub.s32 2, %v57
  %v59 = vrot.slane %v46, %v58
  %v60 = vlaneseq
  %v61 = vshrl.u32 %v60, 7
  %v62 = vsub.s32 3, %v61
  %v63 = vrot.slane %v46, %v62
  %vm68 = vcmask 261120
  %v70 = vsel %vm68, %v14, 0
  %v73 = vsel %vm68, %v15, 0
  %v76 = vsel %vm68, %v16, 0
  %v79 = vsel %vm68, %v17, 0
  %v82 = vsel %vm68, %v18, 0
  %v85 = vsel %vm68, %v19, 0
  %v88 = vsel %vm68, %v20, 0
  %v91 = vsel %vm68, %v21, 0
  %v94 = vsel %vm68, %v22, 0
  %v97 = vsel %vm68, %v23, 0
  %v100 = vsel %vm68, %v24, 0
  %v103 = vsel %vm68, %v25, 0
  %v106 = vsel %vm68, %v26, 0
  %v109 = vsel %vm68, %v27, 0
  %v112 = vsel %vm68, %v28, 0
  %v115 = vsel %vm68, %v29, 0
  %117 = vmatprep.subr.mxu0 %v31
  %118 = vmatpush1.msra.mxu0 %v30
  %119 = vmatprep.subr.mxu0 %v35
  %120 = vmatpush1.msra.mxu0 %v34
  %121 = vmatprep.subr.mxu0 %v39
  %122 = vmatpush1.msra.mxu0 %v38
  %123 = vmatprep.subr.mxu0 %v43
  %124 = vmatpush1.msra.mxu0 %v42
  %125 = vmatprep.subr.mxu0 0.0
  %126 = vmatpush1.msra.mxu0 0.0
  %127 = vmatprep.subr.mxu0 0.0
  %128 = vmatpush1.msra.mxu0 0.0
  %129 = vmatprep.subr.mxu0 0.0
  %130 = vmatpush1.msra.mxu0 0.0
  %131 = vmatprep.subr.mxu0 0.0
  %132 = vmatpush1.msra.mxu0 0.0
  %133 = vmatprep.subr.mxu0 0.0
  %134 = vmatpush1.msra.mxu0 0.0
  %135 = vmatprep.subr.mxu0 0.0
  %136 = vmatpush1.msra.mxu0 0.0
  %137 = vmatprep.subr.mxu0 0.0
  %138 = vmatpush1.msra.mxu0 0.0
  %139 = vmatprep.subr.mxu0 0.0
  %140 = vmatpush1.msra.mxu0 0.0
  %141 = vmatprep.subr.mxu0 0.0
  %142 = vmatpush1.msra.mxu0 0.0
  %143 = vmatprep.subr.mxu0 0.0
  %144 = vmatpush1.msra.mxu0 0.0
  %145 = vmatprep.subr.mxu0 0.0
  %146 = vmatpush1.msra.mxu0 0.0
  %147 = vmatprep.subr.mxu0 0.0
  %148 = vmatpush1.msra.mxu0 0.0
  %149 = vmatprep.subr.mxu0 0.0
  %150 = vmatpush1.msra.mxu0 0.0
  %151 = vmatprep.subr.mxu0 0.0
  %152 = vmatpush1.msra.mxu0 0.0
  %153 = vmatprep.subr.mxu0 0.0
  %154 = vmatpush1.msra.mxu0 0.0
  %155 = vmatprep.subr.mxu0 0.0
  %156 = vmatpush1.msra.mxu0 0.0
  %157 = vmatprep.subr.mxu0 0.0
  %158 = vmatpush1.msra.mxu0 0.0
  %159 = vmatprep.subr.mxu0 0.0
  %160 = vmatpush1.msra.mxu0 0.0
  %161 = vmatprep.subr.mxu0 0.0
  %162 = vmatpush1.msra.mxu0 0.0
  %163 = vmatprep.subr.mxu0 0.0
  %164 = vmatpush1.msra.mxu0 0.0
  %165 = vmatprep.subr.mxu0 0.0
  %166 = vmatpush1.msra.mxu0 0.0
  %167 = vmatprep.subr.mxu0 0.0
  %168 = vmatpush1.msra.mxu0 0.0
  %169 = vmatprep.subr.mxu0 0.0
  %170 = vmatpush1.msra.mxu0 0.0
  %171 = vmatprep.subr.mxu0 0.0
  %172 = vmatpush1.msra.mxu0 0.0
  %173 = vmatprep.subr.mxu0 0.0
  %174 = vmatpush1.msra.mxu0 0.0
  %175 = vmatprep.subr.mxu0 0.0
  %176 = vmatpush1.msra.mxu0 0.0
  %177 = vmatprep.subr.mxu0 0.0
  %178 = vmatpush1.msra.mxu0 0.0
  %179 = vmatprep.subr.mxu0 0.0
  %180 = vmatpush1.msra.mxu0 0.0
  %181 = vmatprep.mubr.f32.mxu0 0.0
  %182 = vmatmul.mubr.f32.gmra.mrb[0].mxu0 %v70
  %v183 = vpop.f32.mrb[0].mxu0
  %v184 = vadd.f32 %v51, %v183
  %v185 = vpop.f32.mrb[0].mxu0
  %v186 = vadd.f32 %v55, %v185
  %187 = vmatprep.mubr.f32.mxu0 0.0
  %188 = vmatmul.mubr.f32.gmra.mrb[0].mxu0 %v73
  %v189 = vpop.f32.mrb[0].mxu0
  %v190 = vadd.f32 %v51, %v189
  %v191 = vpop.f32.mrb[0].mxu0
  %v192 = vadd.f32 %v55, %v191
  %193 = vmatprep.mubr.f32.mxu0 0.0
  %194 = vmatmul.mubr.f32.gmra.mrb[0].mxu0 %v76
  %v195 = vpop.f32.mrb[0].mxu0
  %v196 = vadd.f32 %v51, %v195
  %v197 = vpop.f32.mrb[0].mxu0
  %v198 = vadd.f32 %v55, %v197
  %199 = vmatprep.mubr.f32.mxu0 0.0
  %200 = vmatmul.mubr.f32.gmra.mrb[0].mxu0 %v79
  %v201 = vpop.f32.mrb[0].mxu0
  %v202 = vadd.f32 %v51, %v201
  %v203 = vpop.f32.mrb[0].mxu0
  %v204 = vadd.f32 %v55, %v203
  %205 = vmatprep.mubr.f32.mxu0 0.0
  %206 = vmatmul.mubr.f32.gmra.mrb[0].mxu0 %v82
  %v207 = vpop.f32.mrb[0].mxu0
  %v208 = vadd.f32 %v51, %v207
  %v209 = vpop.f32.mrb[0].mxu0
  %v210 = vadd.f32 %v55, %v209
  %211 = vmatprep.mubr.f32.mxu0 0.0
  %212 = vmatmul.mubr.f32.gmra.mrb[0].mxu0 %v85
  %v213 = vpop.f32.mrb[0].mxu0
  %v214 = vadd.f32 %v51, %v213
  %v215 = vpop.f32.mrb[0].mxu0
  %v216 = vadd.f32 %v55, %v215
  %217 = vmatprep.mubr.f32.mxu0 0.0
  %218 = vmatmul.mubr.f32.gmra.mrb[0].mxu0 %v88
  %v219 = vpop.f32.mrb[0].mxu0
  %v220 = vadd.f32 %v51, %v219
  %v221 = vpop.f32.mrb[0].mxu0
  %v222 = vadd.f32 %v55, %v221
  %223 = vmatprep.mubr.f32.mxu0 0.0
  %224 = vmatmul.mubr.f32.gmra.mrb[0].mxu0 %v91
  %v225 = vpop.f32.mrb[0].mxu0
  %v226 = vadd.f32 %v51, %v225
  %v227 = vpop.f32.mrb[0].mxu0
  %v228 = vadd.f32 %v55, %v227
  %229 = vmatprep.mubr.f32.mxu0 0.0
  %230 = vmatmul.mubr.f32.gmra.mrb[0].mxu0 %v94
  %v231 = vpop.f32.mrb[0].mxu0
  %v232 = vadd.f32 %v51, %v231
  %v233 = vpop.f32.mrb[0].mxu0
  %v234 = vadd.f32 %v55, %v233
  %235 = vmatprep.mubr.f32.mxu0 0.0
  %236 = vmatmul.mubr.f32.gmra.mrb[0].mxu0 %v97
  %v237 = vpop.f32.mrb[0].mxu0
  %v238 = vadd.f32 %v51, %v237
  %v239 = vpop.f32.mrb[0].mxu0
  %v240 = vadd.f32 %v55, %v239
  %241 = vmatprep.mubr.f32.mxu0 0.0
  %242 = vmatmul.mubr.f32.gmra.mrb[0].mxu0 %v100
  %v243 = vpop.f32.mrb[0].mxu0
  %v244 = vadd.f32 %v51, %v243
  %v245 = vpop.f32.mrb[0].mxu0
  %v246 = vadd.f32 %v55, %v245
  %247 = vmatprep.mubr.f32.mxu0 0.0
  %248 = vmatmul.mubr.f32.gmra.mrb[0].mxu0 %v103
  %v249 = vpop.f32.mrb[0].mxu0
  %v250 = vadd.f32 %v51, %v249
  %v251 = vpop.f32.mrb[0].mxu0
  %v252 = vadd.f32 %v55, %v251
  %253 = vmatprep.mubr.f32.mxu0 0.0
  %254 = vmatmul.mubr.f32.gmra.mrb[0].mxu0 %v106
  %v255 = vpop.f32.mrb[0].mxu0
  %v256 = vadd.f32 %v51, %v255
  %v257 = vpop.f32.mrb[0].mxu0
  %v258 = vadd.f32 %v55, %v257
  %259 = vmatprep.mubr.f32.mxu0 0.0
  %260 = vmatmul.mubr.f32.gmra.mrb[0].mxu0 %v109
  %v261 = vpop.f32.mrb[0].mxu0
  %v262 = vadd.f32 %v51, %v261
  %v263 = vpop.f32.mrb[0].mxu0
  %v264 = vadd.f32 %v55, %v263
  %265 = vmatprep.mubr.f32.mxu0 0.0
  %266 = vmatmul.mubr.f32.gmra.mrb[0].mxu0 %v112
  %v267 = vpop.f32.mrb[0].mxu0
  %v268 = vadd.f32 %v51, %v267
  %v269 = vpop.f32.mrb[0].mxu0
  %v270 = vadd.f32 %v55, %v269
  %271 = vmatprep.mubr.f32.mxu0 0.0
  %272 = vmatmul.mubr.f32.gmra.mrb[0].mxu0 %v115
  %v273 = vpop.f32.mrb[0].mxu0
  %v274 = vadd.f32 %v51, %v273
  %v275 = vpop.f32.mrb[0].mxu0
  %v276 = vadd.f32 %v55, %v275
  %277 = vdwg.mxu0
  %278 = vmatprep.subr.mxu0 %v33
  %279 = vmatpush1.msra.mxu0 %v32
  %280 = vmatprep.subr.mxu0 %v37
  %281 = vmatpush1.msra.mxu0 %v36
  %282 = vmatprep.subr.mxu0 %v41
  %283 = vmatpush1.msra.mxu0 %v40
  %284 = vmatprep.subr.mxu0 %v45
  %285 = vmatpush1.msra.mxu0 %v44
  %286 = vmatprep.subr.mxu0 0.0
  %287 = vmatpush1.msra.mxu0 0.0
  %288 = vmatprep.subr.mxu0 0.0
  %289 = vmatpush1.msra.mxu0 0.0
  %290 = vmatprep.subr.mxu0 0.0
  %291 = vmatpush1.msra.mxu0 0.0
  %292 = vmatprep.subr.mxu0 0.0
  %293 = vmatpush1.msra.mxu0 0.0
  %294 = vmatprep.subr.mxu0 0.0
  %295 = vmatpush1.msra.mxu0 0.0
  %296 = vmatprep.subr.mxu0 0.0
  %297 = vmatpush1.msra.mxu0 0.0
  %298 = vmatprep.subr.mxu0 0.0
  %299 = vmatpush1.msra.mxu0 0.0
  %300 = vmatprep.subr.mxu0 0.0
  %301 = vmatpush1.msra.mxu0 0.0
  %302 = vmatprep.subr.mxu0 0.0
  %303 = vmatpush1.msra.mxu0 0.0
  %304 = vmatprep.subr.mxu0 0.0
  %305 = vmatpush1.msra.mxu0 0.0
  %306 = vmatprep.subr.mxu0 0.0
  %307 = vmatpush1.msra.mxu0 0.0
  %308 = vmatprep.subr.mxu0 0.0
  %309 = vmatpush1.msra.mxu0 0.0
  %310 = vmatprep.subr.mxu0 0.0
  %311 = vmatpush1.msra.mxu0 0.0
  %312 = vmatprep.subr.mxu0 0.0
  %313 = vmatpush1.msra.mxu0 0.0
  %314 = vmatprep.subr.mxu0 0.0
  %315 = vmatpush1.msra.mxu0 0.0
  %316 = vmatprep.subr.mxu0 0.0
  %317 = vmatpush1.msra.mxu0 0.0
  %318 = vmatprep.subr.mxu0 0.0
  %319 = vmatpush1.msra.mxu0 0.0
  %320 = vmatprep.subr.mxu0 0.0
  %321 = vmatpush1.msra.mxu0 0.0
  %322 = vmatprep.subr.mxu0 0.0
  %323 = vmatpush1.msra.mxu0 0.0
  %324 = vmatprep.subr.mxu0 0.0
  %325 = vmatpush1.msra.mxu0 0.0
  %326 = vmatprep.subr.mxu0 0.0
  %327 = vmatpush1.msra.mxu0 0.0
  %328 = vmatprep.subr.mxu0 0.0
  %329 = vmatpush1.msra.mxu0 0.0
  %330 = vmatprep.subr.mxu0 0.0
  %331 = vmatpush1.msra.mxu0 0.0
  %332 = vmatprep.subr.mxu0 0.0
  %333 = vmatpush1.msra.mxu0 0.0
  %334 = vmatprep.subr.mxu0 0.0
  %335 = vmatpush1.msra.mxu0 0.0
  %336 = vmatprep.subr.mxu0 0.0
  %337 = vmatpush1.msra.mxu0 0.0
  %338 = vmatprep.subr.mxu0 0.0
  %339 = vmatpush1.msra.mxu0 0.0
  %340 = vmatprep.subr.mxu0 0.0
  %341 = vmatpush1.msra.mxu0 0.0
  %342 = vmatprep.mubr.f32.mxu0 0.0
  %343 = vmatmul.mubr.f32.gmra.mrb[0].mxu0 %v70
  %v344 = vpop.f32.mrb[0].mxu0
  %v345 = vadd.f32 %v59, %v344
  %v346 = vpop.f32.mrb[0].mxu0
  %v347 = vadd.f32 %v63, %v346
  %348 = vmatprep.mubr.f32.mxu0 0.0
  %349 = vmatmul.mubr.f32.gmra.mrb[0].mxu0 %v73
  %v350 = vpop.f32.mrb[0].mxu0
  %v351 = vadd.f32 %v59, %v350
  %v352 = vpop.f32.mrb[0].mxu0
  %v353 = vadd.f32 %v63, %v352
  %354 = vmatprep.mubr.f32.mxu0 0.0
  %355 = vmatmul.mubr.f32.gmra.mrb[0].mxu0 %v76
  %v356 = vpop.f32.mrb[0].mxu0
  %v357 = vadd.f32 %v59, %v356
  %v358 = vpop.f32.mrb[0].mxu0
  %v359 = vadd.f32 %v63, %v358
  %360 = vmatprep.mubr.f32.mxu0 0.0
  %361 = vmatmul.mubr.f32.gmra.mrb[0].mxu0 %v79
  %v362 = vpop.f32.mrb[0].mxu0
  %v363 = vadd.f32 %v59, %v362
  %v364 = vpop.f32.mrb[0].mxu0
  %v365 = vadd.f32 %v63, %v364
  %366 = vmatprep.mubr.f32.mxu0 0.0
  %367 = vmatmul.mubr.f32.gmra.mrb[0].mxu0 %v82
  %v368 = vpop.f32.mrb[0].mxu0
  %v369 = vadd.f32 %v59, %v368
  %v370 = vpop.f32.mrb[0].mxu0
  %v371 = vadd.f32 %v63, %v370
  %372 = vmatprep.mubr.f32.mxu0 0.0
  %373 = vmatmul.mubr.f32.gmra.mrb[0].mxu0 %v85
  %v374 = vpop.f32.mrb[0].mxu0
  %v375 = vadd.f32 %v59, %v374
  %v376 = vpop.f32.mrb[0].mxu0
  %v377 = vadd.f32 %v63, %v376
  %378 = vmatprep.mubr.f32.mxu0 0.0
  %379 = vmatmul.mubr.f32.gmra.mrb[0].mxu0 %v88
  %v380 = vpop.f32.mrb[0].mxu0
  %v381 = vadd.f32 %v59, %v380
  %v382 = vpop.f32.mrb[0].mxu0
  %v383 = vadd.f32 %v63, %v382
  %384 = vmatprep.mubr.f32.mxu0 0.0
  %385 = vmatmul.mubr.f32.gmra.mrb[0].mxu0 %v91
  %v386 = vpop.f32.mrb[0].mxu0
  %v387 = vadd.f32 %v59, %v386
  %v388 = vpop.f32.mrb[0].mxu0
  %v389 = vadd.f32 %v63, %v388
  %390 = vmatprep.mubr.f32.mxu0 0.0
  %391 = vmatmul.mubr.f32.gmra.mrb[0].mxu0 %v94
  %v392 = vpop.f32.mrb[0].mxu0
  %v393 = vadd.f32 %v59, %v392
  %v394 = vpop.f32.mrb[0].mxu0
  %v395 = vadd.f32 %v63, %v394
  %396 = vmatprep.mubr.f32.mxu0 0.0
  %397 = vmatmul.mubr.f32.gmra.mrb[0].mxu0 %v97
  %v398 = vpop.f32.mrb[0].mxu0
  %v399 = vadd.f32 %v59, %v398
  %v400 = vpop.f32.mrb[0].mxu0
  %v401 = vadd.f32 %v63, %v400
  %402 = vmatprep.mubr.f32.mxu0 0.0
  %403 = vmatmul.mubr.f32.gmra.mrb[0].mxu0 %v100
  %v404 = vpop.f32.mrb[0].mxu0
  %v405 = vadd.f32 %v59, %v404
  %v406 = vpop.f32.mrb[0].mxu0
  %v407 = vadd.f32 %v63, %v406
  %408 = vmatprep.mubr.f32.mxu0 0.0
  %409 = vmatmul.mubr.f32.gmra.mrb[0].mxu0 %v103
  %v410 = vpop.f32.mrb[0].mxu0
  %v411 = vadd.f32 %v59, %v410
  %v412 = vpop.f32.mrb[0].mxu0
  %v413 = vadd.f32 %v63, %v412
  %414 = vmatprep.mubr.f32.mxu0 0.0
  %415 = vmatmul.mubr.f32.gmra.mrb[0].mxu0 %v106
  %v416 = vpop.f32.mrb[0].mxu0
  %v417 = vadd.f32 %v59, %v416
  %v418 = vpop.f32.mrb[0].mxu0
  %v419 = vadd.f32 %v63, %v418
  %420 = vmatprep.mubr.f32.mxu0 0.0
  %421 = vmatmul.mubr.f32.gmra.mrb[0].mxu0 %v109
  %v422 = vpop.f32.mrb[0].mxu0
  %v423 = vadd.f32 %v59, %v422
  %v424 = vpop.f32.mrb[0].mxu0
  %v425 = vadd.f32 %v63, %v424
  %426 = vmatprep.mubr.f32.mxu0 0.0
  %427 = vmatmul.mubr.f32.gmra.mrb[0].mxu0 %v112
  %v428 = vpop.f32.mrb[0].mxu0
  %v429 = vadd.f32 %v59, %v428
  %v430 = vpop.f32.mrb[0].mxu0
  %v431 = vadd.f32 %v63, %v430
  %432 = vmatprep.mubr.f32.mxu0 0.0
  %433 = vmatmul.mubr.f32.gmra.mrb[0].mxu0 %v115
  %v434 = vpop.f32.mrb[0].mxu0
  %v435 = vadd.f32 %v59, %v434
  %v436 = vpop.f32.mrb[0].mxu0
  %v437 = vadd.f32 %v63, %v436
  %438 = vdwg.mxu0
  %439 = vst [vmem:[%s3] sm:$0xff] %v184
  %440 = vst [vmem:[%s3 + $0x8] sm:$0xff] %v186
  %441 = vst [vmem:[%s3 + $0x10] sm:$0xff] %v345
  %442 = vst [vmem:[%s3 + $0x18] sm:$0xff] %v347
  %443 = vst [vmem:[%s3 + $0x20] sm:$0xff] %v190
  %444 = vst [vmem:[%s3 + $0x28] sm:$0xff] %v192
  %445 = vst [vmem:[%s3 + $0x30] sm:$0xff] %v351
  %446 = vst [vmem:[%s3 + $0x38] sm:$0xff] %v353
  %447 = vst [vmem:[%s3 + $0x40] sm:$0xff] %v196
  %448 = vst [vmem:[%s3 + $0x48] sm:$0xff] %v198
  %449 = vst [vmem:[%s3 + $0x50] sm:$0xff] %v357
  %450 = vst [vmem:[%s3 + $0x58] sm:$0xff] %v359
  %451 = vst [vmem:[%s3 + $0x60] sm:$0xff] %v202
  %452 = vst [vmem:[%s3 + $0x68] sm:$0xff] %v204
  %453 = vst [vmem:[%s3 + $0x70] sm:$0xff] %v363
  %454 = vst [vmem:[%s3 + $0x78] sm:$0xff] %v365
  %455 = vst [vmem:[%s3 + $0x80] sm:$0xff] %v208
  %456 = vst [vmem:[%s3 + $0x88] sm:$0xff] %v210
  %457 = vst [vmem:[%s3 + $0x90] sm:$0xff] %v369
  %458 = vst [vmem:[%s3 + $0x98] sm:$0xff] %v371
  %459 = vst [vmem:[%s3 + $0xa0] sm:$0xff] %v214
  %460 = vst [vmem:[%s3 + $0xa8] sm:$0xff] %v216
  %461 = vst [vmem:[%s3 + $0xb0] sm:$0xff] %v375
  %462 = vst [vmem:[%s3 + $0xb8] sm:$0xff] %v377
  %463 = vst [vmem:[%s3 + $0xc0] sm:$0xff] %v220
  %464 = vst [vmem:[%s3 + $0xc8] sm:$0xff] %v222
  %465 = vst [vmem:[%s3 + $0xd0] sm:$0xff] %v381
  %466 = vst [vmem:[%s3 + $0xd8] sm:$0xff] %v383
  %467 = vst [vmem:[%s3 + $0xe0] sm:$0xff] %v226
  %468 = vst [vmem:[%s3 + $0xe8] sm:$0xff] %v228
  %469 = vst [vmem:[%s3 + $0xf0] sm:$0xff] %v387
  %470 = vst [vmem:[%s3 + $0xf8] sm:$0xff] %v389
  %471 = vst [vmem:[%s3 + $0x100] sm:$0xff] %v232
  %472 = vst [vmem:[%s3 + $0x108] sm:$0xff] %v234
  %473 = vst [vmem:[%s3 + $0x110] sm:$0xff] %v393
  %474 = vst [vmem:[%s3 + $0x118] sm:$0xff] %v395
  %475 = vst [vmem:[%s3 + $0x120] sm:$0xff] %v238
  %476 = vst [vmem:[%s3 + $0x128] sm:$0xff] %v240
  %477 = vst [vmem:[%s3 + $0x130] sm:$0xff] %v399
  %478 = vst [vmem:[%s3 + $0x138] sm:$0xff] %v401
  %479 = vst [vmem:[%s3 + $0x140] sm:$0xff] %v244
  %480 = vst [vmem:[%s3 + $0x148] sm:$0xff] %v246
  %481 = vst [vmem:[%s3 + $0x150] sm:$0xff] %v405
  %482 = vst [vmem:[%s3 + $0x158] sm:$0xff] %v407
  %483 = vst [vmem:[%s3 + $0x160] sm:$0xff] %v250
  %484 = vst [vmem:[%s3 + $0x168] sm:$0xff] %v252
  %485 = vst [vmem:[%s3 + $0x170] sm:$0xff] %v411
  %486 = vst [vmem:[%s3 + $0x178] sm:$0xff] %v413
  %487 = vst [vmem:[%s3 + $0x180] sm:$0xff] %v256
  %488 = vst [vmem:[%s3 + $0x188] sm:$0xff] %v258
  %489 = vst [vmem:[%s3 + $0x190] sm:$0xff] %v417
  %490 = vst [vmem:[%s3 + $0x198] sm:$0xff] %v419
  %491 = vst [vmem:[%s3 + $0x1a0] sm:$0xff] %v262
  %492 = vst [vmem:[%s3 + $0x1a8] sm:$0xff] %v264
  %493 = vst [vmem:[%s3 + $0x1b0] sm:$0xff] %v423
  %494 = vst [vmem:[%s3 + $0x1b8] sm:$0xff] %v425
  %495 = vst [vmem:[%s3 + $0x1c0] sm:$0xff] %v268
  %496 = vst [vmem:[%s3 + $0x1c8] sm:$0xff] %v270
  %497 = vst [vmem:[%s3 + $0x1d0] sm:$0xff] %v429
  %498 = vst [vmem:[%s3 + $0x1d8] sm:$0xff] %v431
  %499 = vst [vmem:[%s3 + $0x1e0] sm:$0xff] %v274
  %500 = vst [vmem:[%s3 + $0x1e8] sm:$0xff] %v276
  %501 = vst [vmem:[%s3 + $0x1f0] sm:$0xff] %v435
  %502 = vst [vmem:[%s3 + $0x1f8] sm:$0xff] %v437
  // Predicated region
  $region14: #{rnn_with_bn_forward.2} parent=0 // pred_check
    _
  $region15: #{rnn_with_bn_forward.2} parent=0 // pred_check_branch
    %504 = sbr.rel (0) target = $region17
  $region16: #{rnn_with_bn_forward.2} parent=0 // pred_region
    _
  $region17: #{rnn_with_bn_forward.2} parent=0 // pred_fallthru
    _
  // Predicated region
  $region18: #{rnn_with_bn_forward.2} parent=0 // pred_check
    _
  $region19: #{rnn_with_bn_forward.2} parent=0 // pred_check_branch
    %506 = sbr.rel (0) target = $region21
  $region20: #{rnn_with_bn_forward.2} parent=0 // pred_region
    _
  $region21: #{rnn_with_bn_forward.2} parent=0 // pred_fallthru
    _

// kernel: rnn_with_bn_forward.3
$region0: #{rnn_with_bn_forward.3}
  #allocation0 [shape = 'u32[]', space=smem, size = 0x4, offset = 0x4, fixed_abs, tag = 'smem constant byte address 0x4 - core index']
  #allocation1 [shape = 'u32[144,128]{1,0:T(1,128)}', space=vmem, size = 0x12000, scoped, tag = 'internal scratch']
  #allocation2 [shape = 's32[1]{0}', space=sflag, size = 0x4, scoped, tag = 'scoped memory for rnn_with_bn_forward.3']
  #allocation3 [shape = 's32[1]{0:T(128)S(6)}', space=smem, size = 0x200, scoped, tag = 'prefetched SMEM operand 0']
  %s0 = inlined_call_operand.<no memory space> [shape: s32[1], index: 0, kind: input, shape index: {}]
  %s1 = inlined_call_operand.vmem [shape: f32[16,8,512], index: 1, kind: input, shape index: {}]
  %s2 = inlined_call_operand.vmem [shape: f32[128,512], index: 2, kind: input, shape index: {}]
  %s3 = inlined_call_operand.vmem [shape: s32[8,1], index: 3, kind: input, shape index: {}]
  %s4 = inlined_call_operand.vmem [shape: f32[16,8,128], index: 4, kind: output, shape index: {0}]
  %s5 = inlined_call_operand.vmem [shape: f32[8,128], index: 5, kind: output, shape index: {1}]
  %s6 = inlined_call_operand.vmem [shape: f32[8,128], index: 6, kind: output, shape index: {2}]
  %7 = xla_tuple %s4, %s5, %s6
  %s8 = sld [smem:[#allocation0]]
  $region73: #{rnn_with_bn_forward.3} parent=0
    _
  %s10 = ssub.s32 1, %s8
  %s11 = scalar_select 0, %s10, %s8
  %12 = sst [smem:[#allocation3]] %s0
  loop: start=0, step=1, limit=4
  $region2: #{rnn_with_bn_forward.3} parent=0 // loop_pre_header
    _
  $region3: #{rnn_with_bn_forward.3} parent=0 // loop_header
    %s14 = sphi 0, %s18
    %p15 = scmp.ge.s32.totalorder %s14, 4
    %s21 = sphi 0, %s33
    %s22 = sphi 0, %s29
    %s23 = sphi 0, %s21
    %s24 = sphi 0, %s22
    %s25 = sphi 0, %s23
    %s26 = sphi 0, %s24
    %s38 = sphi 0, %s40
    %s41 = sphi 0, %s38
    %s42 = sphi 0, %s41
    %s58 = sphi 0, %s42
    %s62 = sphi 0, %s62
    %s64 = sphi 0, %s62
    %s65 = sphi 0, %s64
    %s79 = sphi 0, %s65
    %s85 = sphi 0, %s87
    %s88 = sphi 0, %s85
    %s89 = sphi 0, %s88
    %s105 = sphi 0, %s89
    %s113 = sphi 0, %s115
    %s116 = sphi 0, %s113
    %s117 = sphi 0, %s116
    %s133 = sphi 0, %s117
    %s139 = sphi 0, %s141
    %s142 = sphi 0, %s139
    %s143 = sphi 0, %s142
    %s159 = sphi 0, %s143
    %s165 = sphi 0, %s167
    %s168 = sphi 0, %s165
    %s169 = sphi 0, %s168
    %s185 = sphi 0, %s169
  $region4: #{rnn_with_bn_forward.3} parent=0 // loop_header_branch
    %17 = sbr.rel (%p15) target = $region8
  $region5: #{rnn_with_bn_forward.3} parent=0 // loop_body
    %s19 = ssub.s32 %s14, 1
    %s20 = ssub.s32 %s14, 2
    %s27 = sadd.s32 1, %s22
    %p28 = scmp.ge.s32.totalorder %s27, 2
    %s29 = scalar_select %p28, 0, %s27
    %s30 = sadd.s32 1, %s21
    %s31 = scalar_select %p28, %s30, %s21
    %p32 = scmp.ge.s32.totalorder %s31, 1
    %s33 = scalar_select %p32, 0, %s31
    %s34 = ssub.s32 %s22, %s29
    %s35 = ssub.s32 %s21, %s33
    %s36 = sor.u32 %s34, %s35
    %p37 = scmp.eq.s32.totalorder %s36, 0
    %s39 = sadd.s32 %s38, 1
    %s40 = scalar_select %p37, %s38, %s39
    %p43 = pneg %p37
    %p44 = scmp.eq.s32.totalorder %s14, 1
    %p45 = por %p43, %p44
    %p46 = scmp.ne.s32.totalorder %s38, %s41
    %p47 = scmp.eq.s32.totalorder %s14, 0
    %p48 = por %p46, %p47
    %p49 = scmp.ne.s32.totalorder %s38, %s41
    %p50 = scmp.eq.s32.totalorder %s19, 1
    %p51 = por %p49, %p50
    %p52 = scmp.ne.s32.totalorder %s41, %s42
    %p53 = scmp.eq.s32.totalorder %s19, 0
    %p54 = por %p52, %p53
    %p55 = scmp.ne.s32.totalorder %s41, %s42
    %p56 = scmp.eq.s32.totalorder %s20, 1
    %p57 = por %p55, %p56
    %p59 = scmp.ne.s32.totalorder %s42, %s58
    %p60 = scmp.eq.s32.totalorder %s20, 0
    %p61 = por %p59, %p60
    %s63 = sadd.s32 %s62, 1
    %p66 = scmp.eq.s32.totalorder %s14, 1
    %p67 = scmp.ne.s32.totalorder %s62, %s64
    %p68 = scmp.eq.s32.totalorder %s14, 0
    %p69 = por %p67, %p68
    %p70 = scmp.ne.s32.totalorder %s62, %s64
    %p71 = scmp.eq.s32.totalorder %s19, 1
    %p72 = por %p70, %p71
    %p73 = scmp.ne.s32.totalorder %s64, %s65
    %p74 = scmp.eq.s32.totalorder %s19, 0
    %p75 = por %p73, %p74
    %p76 = scmp.ne.s32.totalorder %s64, %s65
    %p77 = scmp.eq.s32.totalorder %s20, 1
    %p78 = por %p76, %p77
    %p80 = scmp.ne.s32.totalorder %s65, %s79
    %p81 = scmp.eq.s32.totalorder %s20, 0
    %p82 = por %p80, %p81
    %s83 = ssub.s32 %s21, %s33
    %p84 = scmp.eq.s32.totalorder %s83, 0
    %s86 = sadd.s32 %s85, 1
    %s87 = scalar_select %p84, %s85, %s86
    %p90 = pneg %p84
    %p91 = scmp.eq.s32.totalorder %s14, 1
    %p92 = por %p90, %p91
    %p93 = scmp.ne.s32.totalorder %s85, %s88
    %p94 = scmp.eq.s32.totalorder %s14, 0
    %p95 = por %p93, %p94
    %p96 = scmp.ne.s32.totalorder %s85, %s88
    %p97 = scmp.eq.s32.totalorder %s19, 1
    %p98 = por %p96, %p97
    %p99 = scmp.ne.s32.totalorder %s88, %s89
    %p100 = scmp.eq.s32.totalorder %s19, 0
    %p101 = por %p99, %p100
    %p102 = scmp.ne.s32.totalorder %s88, %s89
    %p103 = scmp.eq.s32.totalorder %s20, 1
    %p104 = por %p102, %p103
    %p106 = scmp.ne.s32.totalorder %s89, %s105
    %p107 = scmp.eq.s32.totalorder %s20, 0
    %p108 = por %p106, %p107
    %s109 = ssub.s32 %s22, %s29
    %s110 = ssub.s32 %s21, %s33
    %s111 = sor.u32 %s109, %s110
    %p112 = scmp.eq.s32.totalorder %s111, 0
    %s114 = sadd.s32 %s113, 1
    %s115 = scalar_select %p112, %s113, %s114
    %p118 = pneg %p112
    %p119 = scmp.eq.s32.totalorder %s14, 1
    %p120 = por %p118, %p119
    %p121 = scmp.ne.s32.totalorder %s113, %s116
    %p122 = scmp.eq.s32.totalorder %s14, 0
    %p123 = por %p121, %p122
    %p124 = scmp.ne.s32.totalorder %s113, %s116
    %p125 = scmp.eq.s32.totalorder %s19, 1
    %p126 = por %p124, %p125
    %p127 = scmp.ne.s32.totalorder %s116, %s117
    %p128 = scmp.eq.s32.totalorder %s19, 0
    %p129 = por %p127, %p128
    %p130 = scmp.ne.s32.totalorder %s116, %s117
    %p131 = scmp.eq.s32.totalorder %s20, 1
    %p132 = por %p130, %p131
    %p134 = scmp.ne.s32.totalorder %s117, %s133
    %p135 = scmp.eq.s32.totalorder %s20, 0
    %p136 = por %p134, %p135
    %s137 = ssub.s32 %s21, %s33
    %p138 = scmp.eq.s32.totalorder %s137, 0
    %s140 = sadd.s32 %s139, 1
    %s141 = scalar_select %p138, %s139, %s140
    %p144 = pneg %p138
    %p145 = scmp.eq.s32.totalorder %s14, 1
    %p146 = por %p144, %p145
    %p147 = scmp.ne.s32.totalorder %s139, %s142
    %p148 = scmp.eq.s32.totalorder %s14, 0
    %p149 = por %p147, %p148
    %p150 = scmp.ne.s32.totalorder %s139, %s142
    %p151 = scmp.eq.s32.totalorder %s19, 1
    %p152 = por %p150, %p151
    %p153 = scmp.ne.s32.totalorder %s142, %s143
    %p154 = scmp.eq.s32.totalorder %s19, 0
    %p155 = por %p153, %p154
    %p156 = scmp.ne.s32.totalorder %s142, %s143
    %p157 = scmp.eq.s32.totalorder %s20, 1
    %p158 = por %p156, %p157
    %p160 = scmp.ne.s32.totalorder %s143, %s159
    %p161 = scmp.eq.s32.totalorder %s20, 0
    %p162 = por %p160, %p161
    %s163 = ssub.s32 %s21, %s33
    %p164 = scmp.eq.s32.totalorder %s163, 0
    %s166 = sadd.s32 %s165, 1
    %s167 = scalar_select %p164, %s165, %s166
    %p170 = pneg %p164
    %p171 = scmp.eq.s32.totalorder %s14, 1
    %p172 = por %p170, %p171
    %p173 = scmp.ne.s32.totalorder %s165, %s168
    %p174 = scmp.eq.s32.totalorder %s14, 0
    %p175 = por %p173, %p174
    %p176 = scmp.ne.s32.totalorder %s165, %s168
    %p177 = scmp.eq.s32.totalorder %s19, 1
    %p178 = por %p176, %p177
    %p179 = scmp.ne.s32.totalorder %s168, %s169
    %p180 = scmp.eq.s32.totalorder %s19, 0
    %p181 = por %p179, %p180
    %p182 = scmp.ne.s32.totalorder %s168, %s169
    %p183 = scmp.eq.s32.totalorder %s20, 1
    %p184 = por %p182, %p183
    %p186 = scmp.ne.s32.totalorder %s169, %s185
    %p187 = scmp.eq.s32.totalorder %s20, 0
    %p188 = por %p186, %p187
    %p189 = scmp.le.s32.totalorder 1, %s14
    %p190 = scmp.lt.s32.totalorder %s14, 3
    %p191 = pnand %p189, %p190
    %p192 = pneg %p191
    // Predicated region
    $region9: #{rnn_with_bn_forward.3} parent=5 // pred_check
      _
    $region10: #{rnn_with_bn_forward.3} parent=5 // pred_check_branch
      %194 = sbr.rel (%p191) target = $region12
    $region11: #{rnn_with_bn_forward.3} parent=5 // pred_region
      %s195 = ssub.s32 %s14, 1
      // Predicated region
      $region13: #{rnn_with_bn_forward.3} parent=11 // pred_check
        %p196 = pneg %p75
      $region14: #{rnn_with_bn_forward.3} parent=11 // pred_check_branch
        %198 = sbr.rel (%p196) target = $region16
      $region15: #{rnn_with_bn_forward.3} parent=11 // pred_region
        _
      $region16: #{rnn_with_bn_forward.3} parent=11 // pred_fallthru
        _
      // Predicated region
      $region17: #{rnn_with_bn_forward.3} parent=11 // pred_check
        %p199 = pneg %p101
      $region18: #{rnn_with_bn_forward.3} parent=11 // pred_check_branch
        %201 = sbr.rel (%p199) target = $region20
      $region19: #{rnn_with_bn_forward.3} parent=11 // pred_region
        %p202 = scmp.lt.s32.totalorder %s23, 0
        %s203 = scalar_select %p202, %s23, 0
        %s204 = smul.addr %s203, 8
        %s205 = scalar_lea.vmem %s3, %s204
      $region20: #{rnn_with_bn_forward.3} parent=11 // pred_fallthru
        _
    $region12: #{rnn_with_bn_forward.3} parent=5 // pred_fallthru
      _
    %p206 = scmp.lt.s32.totalorder %s14, 2
    // Predicated region
    $region21: #{rnn_with_bn_forward.3} parent=5 // pred_check
      %p207 = pneg %p206
    $region22: #{rnn_with_bn_forward.3} parent=5 // pred_check_branch
      %209 = sbr.rel (%p207) target = $region24
    $region23: #{rnn_with_bn_forward.3} parent=5 // pred_region
      // Predicated region
      $region25: #{rnn_with_bn_forward.3} parent=23 // pred_check
        %p210 = pneg %p48
      $region26: #{rnn_with_bn_forward.3} parent=23 // pred_check_branch
        %212 = sbr.rel (%p210) target = $region28
      $region27: #{rnn_with_bn_forward.3} parent=23 // pred_region
        %s213 = smul.u32 8, %s22
        %p214 = scmp.lt.s32.totalorder %s213, 15
        %s215 = scalar_select %p214, %s213, 15
        %p216 = scmp.lt.s32.totalorder %s21, 0
        %s217 = scalar_select %p216, %s21, 0
        %s218 = smul.addr %s217, 4
        %s219 = smul.addr %s215, 4
        %s220 = sadd.s32 %s218, %s219
        %s221 = smul.addr %s220, 8
        %s222 = scalar_lea.vmem %s1, %s221
        %s223 = smul.u32 8, %s22
      $region28: #{rnn_with_bn_forward.3} parent=23 // pred_fallthru
        _
    $region24: #{rnn_with_bn_forward.3} parent=5 // pred_fallthru
      _
    %p224 = scmp.le.s32.totalorder 1, %s14
    %p225 = scmp.lt.s32.totalorder %s14, 3
    %p226 = pnand %p224, %p225
    %p227 = pneg %p226
    // Predicated region
    $region29: #{rnn_with_bn_forward.3} parent=5 // pred_check
      _
    $region30: #{rnn_with_bn_forward.3} parent=5 // pred_check_branch
      %229 = sbr.rel (%p226) target = $region32
    $region31: #{rnn_with_bn_forward.3} parent=5 // pred_region
      %s230 = ssub.s32 %s14, 1
      %s231 = smul.u32 8, %s24
      %p232 = scmp.lt.s32.totalorder %s231, 15
      %s233 = scalar_select %p232, %s231, 15
      %p234 = scmp.lt.s32.totalorder %s23, 0
      %s235 = scalar_select %p234, %s23, 0
      %s236 = smul.addr %s235, 4
      %s237 = smul.addr %s233, 4
      %s238 = sadd.s32 %s236, %s237
      %s239 = smul.addr %s238, 8
      %s240 = scalar_lea.vmem %s1, %s239
      %p241 = pneg %p54
      %p242 = pneg %p51
      %p243 = pneg %p75
      %p244 = pneg %p72
      %p245 = scmp.lt.s32.totalorder %s23, 0
      %s246 = scalar_select %p245, %s23, 0
      %s247 = smul.addr %s246, 8
      %s248 = scalar_lea.vmem %s3, %s247
      %p249 = pneg %p101
      %p250 = pneg %p98
      %p251 = pneg %p129
      %p252 = pneg %p126
      %s253 = smul.u32 8, %s24
      %p254 = scmp.lt.s32.totalorder %s253, 15
      %s255 = scalar_select %p254, %s253, 15
      %p256 = scmp.lt.s32.totalorder %s23, 0
      %s257 = scalar_select %p256, %s23, 0
      %s258 = sadd.s32 %s257, %s255
      %s259 = smul.addr %s258, 8
      %s260 = scalar_lea.vmem %s4, %s259
      %p261 = pneg %p155
      %p262 = pneg %p152
      %p263 = scmp.lt.s32.totalorder %s23, 0
      %s264 = scalar_select %p263, %s23, 0
      %s265 = smul.addr %s264, 8
      %s266 = scalar_lea.vmem %s5, %s265
      %p267 = pneg %p181
      %p268 = pneg %p178
      %p269 = scmp.lt.s32.totalorder %s23, 0
      %s270 = scalar_select %p269, %s23, 0
      %s271 = smul.addr %s270, 8
      %s272 = scalar_lea.vmem %s6, %s271
      %s273 = smul.u32 8, %s24
      %p274 = scmp.lt.s32.totalorder %s273, 15
      %s275 = scalar_select %p274, %s273, 15
      %p276 = scmp.lt.s32.totalorder %s23, 0
      %s277 = scalar_select %p276, %s23, 0
      %s278 = smul.addr %s277, 4
      %s279 = smul.addr %s275, 4
      %s280 = sadd.s32 %s278, %s279
      %s281 = smul.addr %s280, 8
      %s282 = scalar_lea.vmem %s1, %s281
      %s283 = smul.u32 8, %s24
      %p284 = scmp.lt.s32.totalorder %s23, 0
      %s285 = scalar_select %p284, %s23, 0
      %s286 = smul.addr %s285, 8
      %s287 = scalar_lea.vmem %s3, %s286
      %s288 = smul.u32 8, %s24
      %p289 = scmp.lt.s32.totalorder %s288, 15
      %s290 = scalar_select %p289, %s288, 15
      %p291 = scmp.lt.s32.totalorder %s23, 0
      %s292 = scalar_select %p291, %s23, 0
      %s293 = sadd.s32 %s292, %s290
      %s294 = smul.addr %s293, 8
      %s295 = scalar_lea.vmem %s4, %s294
      %s296 = smul.u32 8, %s24
      %p297 = scmp.lt.s32.totalorder %s23, 0
      %s298 = scalar_select %p297, %s23, 0
      %s299 = smul.addr %s298, 8
      %s300 = scalar_lea.vmem %s5, %s299
      %p301 = scmp.lt.s32.totalorder %s23, 0
      %s302 = scalar_select %p301, %s23, 0
      %s303 = smul.addr %s302, 8
      %s304 = scalar_lea.vmem %s6, %s303
      %s305 = smul.u32 %s24, 8
      %p306 = scmp.eq.s32.totalorder %s24, 0
      // Predicated region
      $region33: #{rnn_with_bn_forward.3} parent=31 // pred_check
        %p307 = pneg %p306
      $region34: #{rnn_with_bn_forward.3} parent=31 // pred_check_branch
        %309 = sbr.rel (%p307) target = $region36
      $region35: #{rnn_with_bn_forward.3} parent=31 // pred_region
        %310 = vst [vmem:[%s300] sm:$0xff] 0.0
        %311 = vst [vmem:[%s304] sm:$0xff] 0.0
      $region36: #{rnn_with_bn_forward.3} parent=31 // pred_fallthru
        _
      %s312 = sld [smem:[#allocation3 + %s23]]
      %p313 = scmp.gt.s32.totalorder %s312, %s305
      // Predicated region
      $region37: #{rnn_with_bn_forward.3} parent=31 // pred_check
        %p314 = pneg %p313
      $region38: #{rnn_with_bn_forward.3} parent=31 // pred_check_branch
        %316 = sbr.rel (%p314) target = $region40
      $region39: #{rnn_with_bn_forward.3} parent=31 // pred_region
        %v317 = vld [vmem:[%s287] sm:$0xff]
        %v318 = vld [vmem:[%s300] sm:$0xff]
        %v319 = vld [vmem:[%s304] sm:$0xff]
        %v320 = vld [vmem:[%s282] sm:$0xff]
        %v321 = vld [vmem:[%s282 + $0x8] sm:$0xff]
        %v322 = vld [vmem:[%s282 + $0x10] sm:$0xff]
        %v323 = vld [vmem:[%s282 + $0x18] sm:$0xff]
        %v324 = vld [vmem:[%s2] sm:$0xff]
        %v325 = vld [vmem:[%s2 + $0x8] sm:$0xff]
        %v326 = vld [vmem:[%s2 + $0x10] sm:$0xff]
        %v327 = vld [vmem:[%s2 + $0x18] sm:$0xff]
        %v328 = vld [vmem:[%s2 + $0x20] sm:$0xff]
        %v329 = vld [vmem:[%s2 + $0x28] sm:$0xff]
        %v330 = vld [vmem:[%s2 + $0x30] sm:$0xff]
        %v331 = vld [vmem:[%s2 + $0x38] sm:$0xff]
        %v332 = vld [vmem:[%s2 + $0x40] sm:$0xff]
        %v333 = vld [vmem:[%s2 + $0x48] sm:$0xff]
        %v334 = vld [vmem:[%s2 + $0x50] sm:$0xff]
        %v335 = vld [vmem:[%s2 + $0x58] sm:$0xff]
        %v336 = vld [vmem:[%s2 + $0x60] sm:$0xff]
        %v337 = vld [vmem:[%s2 + $0x68] sm:$0xff]
        %v338 = vld [vmem:[%s2 + $0x70] sm:$0xff]
        %v339 = vld [vmem:[%s2 + $0x78] sm:$0xff]
        %v340 = vld [vmem:[%s2 + $0x80] sm:$0xff]
        %v341 = vld [vmem:[%s2 + $0x88] sm:$0xff]
        %v342 = vld [vmem:[%s2 + $0x90] sm:$0xff]
        %v343 = vld [vmem:[%s2 + $0x98] sm:$0xff]
        %v344 = vld [vmem:[%s2 + $0xa0] sm:$0xff]
        %v345 = vld [vmem:[%s2 + $0xa8] sm:$0xff]
        %v346 = vld [vmem:[%s2 + $0xb0] sm:$0xff]
        %v347 = vld [vmem:[%s2 + $0xb8] sm:$0xff]
        %v348 = vld [vmem:[%s2 + $0xc0] sm:$0xff]
        %v349 = vld [vmem:[%s2 + $0xc8] sm:$0xff]
        %v350 = vld [vmem:[%s2 + $0xd0] sm:$0xff]
        %v351 = vld [vmem:[%s2 + $0xd8] sm:$0xff]
        %v352 = vld [vmem:[%s2 + $0xe0] sm:$0xff]
        %v353 = vld [vmem:[%s2 + $0xe8] sm:$0xff]
        %v354 = vld [vmem:[%s2 + $0xf0] sm:$0xff]
        %v355 = vld [vmem:[%s2 + $0xf8] sm:$0xff]
        %v356 = vld [vmem:[%s2 + $0x100] sm:$0xff]
        %v357 = vld [vmem:[%s2 + $0x108] sm:$0xff]
        %v358 = vld [vmem:[%s2 + $0x110] sm:$0xff]
        %v359 = vld [vmem:[%s2 + $0x118] sm:$0xff]
        %v360 = vld [vmem:[%s2 + $0x120] sm:$0xff]
        %v361 = vld [vmem:[%s2 + $0x128] sm:$0xff]
        %v362 = vld [vmem:[%s2 + $0x130] sm:$0xff]
        %v363 = vld [vmem:[%s2 + $0x138] sm:$0xff]
        %v364 = vld [vmem:[%s2 + $0x140] sm:$0xff]
        %v365 = vld [vmem:[%s2 + $0x148] sm:$0xff]
        %v366 = vld [vmem:[%s2 + $0x150] sm:$0xff]
        %v367 = vld [vmem:[%s2 + $0x158] sm:$0xff]
        %v368 = vld [vmem:[%s2 + $0x160] sm:$0xff]
        %v369 = vld [vmem:[%s2 + $0x168] sm:$0xff]
        %v370 = vld [vmem:[%s2 + $0x170] sm:$0xff]
        %v371 = vld [vmem:[%s2 + $0x178] sm:$0xff]
        %v372 = vld [vmem:[%s2 + $0x180] sm:$0xff]
        %v373 = vld [vmem:[%s2 + $0x188] sm:$0xff]
        %v374 = vld [vmem:[%s2 + $0x190] sm:$0xff]
        %v375 = vld [vmem:[%s2 + $0x198] sm:$0xff]
        %v376 = vld [vmem:[%s2 + $0x1a0] sm:$0xff]
        %v377 = vld [vmem:[%s2 + $0x1a8] sm:$0xff]
        %v378 = vld [vmem:[%s2 + $0x1b0] sm:$0xff]
        %v379 = vld [vmem:[%s2 + $0x1b8] sm:$0xff]
        %v380 = vld [vmem:[%s2 + $0x1c0] sm:$0xff]
        %v381 = vld [vmem:[%s2 + $0x1c8] sm:$0xff]
        %v382 = vld [vmem:[%s2 + $0x1d0] sm:$0xff]
        %v383 = vld [vmem:[%s2 + $0x1d8] sm:$0xff]
        %v384 = vld [vmem:[%s2 + $0x1e0] sm:$0xff]
        %v385 = vld [vmem:[%s2 + $0x1e8] sm:$0xff]
        %v386 = vld [vmem:[%s2 + $0x1f0] sm:$0xff]
        %v387 = vld [vmem:[%s2 + $0x1f8] sm:$0xff]
        %388 = vmatprep.subr.mxu0 %v325
        %389 = vmatpush1.msra.mxu0 %v324
        %390 = vmatprep.subr.mxu0 %v329
        %391 = vmatpush1.msra.mxu0 %v328
        %392 = vmatprep.subr.mxu0 %v333
        %393 = vmatpush1.msra.mxu0 %v332
        %394 = vmatprep.subr.mxu0 %v337
        %395 = vmatpush1.msra.mxu0 %v336
        %396 = vmatprep.subr.mxu0 %v341
        %397 = vmatpush1.msra.mxu0 %v340
        %398 = vmatprep.subr.mxu0 %v345
        %399 = vmatpush1.msra.mxu0 %v344
        %400 = vmatprep.subr.mxu0 %v349
        %401 = vmatpush1.msra.mxu0 %v348
        %402 = vmatprep.subr.mxu0 %v353
        %403 = vmatpush1.msra.mxu0 %v352
        %404 = vmatprep.subr.mxu0 %v357
        %405 = vmatpush1.msra.mxu0 %v356
        %406 = vmatprep.subr.mxu0 %v361
        %407 = vmatpush1.msra.mxu0 %v360
        %408 = vmatprep.subr.mxu0 %v365
        %409 = vmatpush1.msra.mxu0 %v364
        %410 = vmatprep.subr.mxu0 %v369
        %411 = vmatpush1.msra.mxu0 %v368
        %412 = vmatprep.subr.mxu0 %v373
        %413 = vmatpush1.msra.mxu0 %v372
        %414 = vmatprep.subr.mxu0 %v377
        %415 = vmatpush1.msra.mxu0 %v376
        %416 = vmatprep.subr.mxu0 %v381
        %417 = vmatpush1.msra.mxu0 %v380
        %418 = vmatprep.subr.mxu0 %v385
        %419 = vmatpush1.msra.mxu0 %v384
        %420 = vmatprep.subr.mxu0 0.0
        %421 = vmatpush1.msra.mxu0 0.0
        %422 = vmatprep.subr.mxu0 0.0
        %423 = vmatpush1.msra.mxu0 0.0
        %424 = vmatprep.subr.mxu0 0.0
        %425 = vmatpush1.msra.mxu0 0.0
        %426 = vmatprep.subr.mxu0 0.0
        %427 = vmatpush1.msra.mxu0 0.0
        %428 = vmatprep.subr.mxu0 0.0
        %429 = vmatpush1.msra.mxu0 0.0
        %430 = vmatprep.subr.mxu0 0.0
        %431 = vmatpush1.msra.mxu0 0.0
        %432 = vmatprep.subr.mxu0 0.0
        %433 = vmatpush1.msra.mxu0 0.0
        %434 = vmatprep.subr.mxu0 0.0
        %435 = vmatpush1.msra.mxu0 0.0
        %436 = vmatprep.subr.mxu0 0.0
        %437 = vmatpush1.msra.mxu0 0.0
        %438 = vmatprep.subr.mxu0 0.0
        %439 = vmatpush1.msra.mxu0 0.0
        %440 = vmatprep.subr.mxu0 0.0
        %441 = vmatpush1.msra.mxu0 0.0
        %442 = vmatprep.subr.mxu0 0.0
        %443 = vmatpush1.msra.mxu0 0.0
        %444 = vmatprep.subr.mxu0 0.0
        %445 = vmatpush1.msra.mxu0 0.0
        %446 = vmatprep.subr.mxu0 0.0
        %447 = vmatpush1.msra.mxu0 0.0
        %448 = vmatprep.subr.mxu0 0.0
        %449 = vmatpush1.msra.mxu0 0.0
        %450 = vmatprep.subr.mxu0 0.0
        %451 = vmatpush1.msra.mxu0 0.0
        %452 = vmatprep.mubr.f32.mxu0 0.0
        %453 = vmatmul.mubr.f32.gmra.mrb[0].mxu0 %v318
        %v454 = vpop.f32.mrb[0].mxu0
        %v455 = vadd.f32 0.0, %v454
        %v456 = vpop.f32.mrb[0].mxu0
        %v457 = vadd.f32 0.0, %v456
        %458 = vdwg.mxu0
        %459 = vmatprep.subr.mxu0 %v327
        %460 = vmatpush1.msra.mxu0 %v326
        %461 = vmatprep.subr.mxu0 %v331
        %462 = vmatpush1.msra.mxu0 %v330
        %463 = vmatprep.subr.mxu0 %v335
        %464 = vmatpush1.msra.mxu0 %v334
        %465 = vmatprep.subr.mxu0 %v339
        %466 = vmatpush1.msra.mxu0 %v338
        %467 = vmatprep.subr.mxu0 %v343
        %468 = vmatpush1.msra.mxu0 %v342
        %469 = vmatprep.subr.mxu0 %v347
        %470 = vmatpush1.msra.mxu0 %v346
        %471 = vmatprep.subr.mxu0 %v351
        %472 = vmatpush1.msra.mxu0 %v350
        %473 = vmatprep.subr.mxu0 %v355
        %474 = vmatpush1.msra.mxu0 %v354
        %475 = vmatprep.subr.mxu0 %v359
        %476 = vmatpush1.msra.mxu0 %v358
        %477 = vmatprep.subr.mxu0 %v363
        %478 = vmatpush1.msra.mxu0 %v362
        %479 = vmatprep.subr.mxu0 %v367
        %480 = vmatpush1.msra.mxu0 %v366
        %481 = vmatprep.subr.mxu0 %v371
        %482 = vmatpush1.msra.mxu0 %v370
        %483 = vmatprep.subr.mxu0 %v375
        %484 = vmatpush1.msra.mxu0 %v374
        %485 = vmatprep.subr.mxu0 %v379
        %486 = vmatpush1.msra.mxu0 %v378
        %487 = vmatprep.subr.mxu0 %v383
        %488 = vmatpush1.msra.mxu0 %v382
        %489 = vmatprep.subr.mxu0 %v387
        %490 = vmatpush1.msra.mxu0 %v386
        %491 = vmatprep.subr.mxu0 0.0
        %492 = vmatpush1.msra.mxu0 0.0
        %493 = vmatprep.subr.mxu0 0.0
        %494 = vmatpush1.msra.mxu0 0.0
        %495 = vmatprep.subr.mxu0 0.0
        %496 = vmatpush1.msra.mxu0 0.0
        %497 = vmatprep.subr.mxu0 0.0
        %498 = vmatpush1.msra.mxu0 0.0
        %499 = vmatprep.subr.mxu0 0.0
        %500 = vmatpush1.msra.mxu0 0.0
        %501 = vmatprep.subr.mxu0 0.0
        %502 = vmatpush1.msra.mxu0 0.0
        %503 = vmatprep.subr.mxu0 0.0
        %504 = vmatpush1.msra.mxu0 0.0
        %505 = vmatprep.subr.mxu0 0.0
        %506 = vmatpush1.msra.mxu0 0.0
        %507 = vmatprep.subr.mxu0 0.0
        %508 = vmatpush1.msra.mxu0 0.0
        %509 = vmatprep.subr.mxu0 0.0
        %510 = vmatpush1.msra.mxu0 0.0
        %511 = vmatprep.subr.mxu0 0.0
        %512 = vmatpush1.msra.mxu0 0.0
        %513 = vmatprep.subr.mxu0 0.0
        %514 = vmatpush1.msra.mxu0 0.0
        %515 = vmatprep.subr.mxu0 0.0
        %516 = vmatpush1.msra.mxu0 0.0
        %517 = vmatprep.subr.mxu0 0.0
        %518 = vmatpush1.msra.mxu0 0.0
        %519 = vmatprep.subr.mxu0 0.0
        %520 = vmatpush1.msra.mxu0 0.0
        %521 = vmatprep.subr.mxu0 0.0
        %522 = vmatpush1.msra.mxu0 0.0
        %523 = vmatprep.mubr.f32.mxu0 0.0
        %524 = vmatmul.mubr.f32.gmra.mrb[0].mxu0 %v318
        %v525 = vpop.f32.mrb[0].mxu0
        %v526 = vadd.f32 0.0, %v525
        %v527 = vpop.f32.mrb[0].mxu0
        %v528 = vadd.f32 0.0, %v527
        %529 = vdwg.mxu0
        %v530 = vadd.f32 %v320, %v455
        %v531 = vadd.f32 %v321, %v457
        %v532 = vadd.f32 %v322, %v526
        %v533 = vadd.f32 %v323, %v528
        %v534 = vxor.u32 %v530, 2147483648
        %v535 = vmul.f32 %v534, 1.442695
        %v536 = vpow.pop %v535
        %v537 = vadd.f32 %v536, 1.0
        %v538 = vrcp.pop %v537
        %v539 = vmul.f32 1.0, %v538
        %v540 = vxor.u32 %v531, 2147483648
        %v541 = vmul.f32 %v540, 1.442695
        %v542 = vpow.pop %v541
        %v543 = vadd.f32 %v542, 1.0
        %v544 = vrcp.pop %v543
        %v545 = vmul.f32 1.0, %v544
        %v546 = vtanh.pop %v532
        %v547 = vxor.u32 %v533, 2147483648
        %v548 = vmul.f32 %v547, 1.442695
        %v549 = vpow.pop %v548
        %v550 = vadd.f32 %v549, 1.0
        %v551 = vrcp.pop %v550
        %v552 = vmul.f32 1.0, %v551
        %v553 = vmul.f32 %v545, %v319
        %v554 = vmul.f32 %v539, %v546
        %v555 = vadd.f32 %v553, %v554
        %v556 = vtanh.pop %v555
        %v557 = vmul.f32 %v552, %v556
        %v558 = vstv %s305
        %vm559 = vcmp.gt.s32.totalorder %v317, %v558
        %v560 = vsel %vm559, 1, 0
        %561 = vset.pattern.permute.xlu0 0
        %562 = vperm.xlu0 %561, %v560
        %v563 = vpop.permute.xlu0 %562
        %vm564 = vcmp.eq.s32.totalorder %v563, 1
        %v565 = vsel %vm564, %v557, %v318
        %v566 = vsel %vm564, %v555, %v319
        %v567 = vsel %vm564, %v557, 0.0
        %568 = vst [vmem:[%s295] sm:$0xff] %v567
        %s569 = scalar_lea.vmem %s282, 32
        %v570 = vld [vmem:[%s569] sm:$0xff]
        %v571 = vld [vmem:[%s569 + $0x8] sm:$0xff]
        %v572 = vld [vmem:[%s569 + $0x10] sm:$0xff]
        %v573 = vld [vmem:[%s569 + $0x18] sm:$0xff]
        %v574 = vld [vmem:[%s2] sm:$0xff]
        %v575 = vld [vmem:[%s2 + $0x8] sm:$0xff]
        %v576 = vld [vmem:[%s2 + $0x10] sm:$0xff]
        %v577 = vld [vmem:[%s2 + $0x18] sm:$0xff]
        %v578 = vld [vmem:[%s2 + $0x20] sm:$0xff]
        %v579 = vld [vmem:[%s2 + $0x28] sm:$0xff]
        %v580 = vld [vmem:[%s2 + $0x30] sm:$0xff]
        %v581 = vld [vmem:[%s2 + $0x38] sm:$0xff]
        %v582 = vld [vmem:[%s2 + $0x40] sm:$0xff]
        %v583 = vld [vmem:[%s2 + $0x48] sm:$0xff]
        %v584 = vld [vmem:[%s2 + $0x50] sm:$0xff]
        %v585 = vld [vmem:[%s2 + $0x58] sm:$0xff]
        %v586 = vld [vmem:[%s2 + $0x60] sm:$0xff]
        %v587 = vld [vmem:[%s2 + $0x68] sm:$0xff]
        %v588 = vld [vmem:[%s2 + $0x70] sm:$0xff]
        %v589 = vld [vmem:[%s2 + $0x78] sm:$0xff]
        %v590 = vld [vmem:[%s2 + $0x80] sm:$0xff]
        %v591 = vld [vmem:[%s2 + $0x88] sm:$0xff]
        %v592 = vld [vmem:[%s2 + $0x90] sm:$0xff]
        %v593 = vld [vmem:[%s2 + $0x98] sm:$0xff]
        %v594 = vld [vmem:[%s2 + $0xa0] sm:$0xff]
        %v595 = vld [vmem:[%s2 + $0xa8] sm:$0xff]
        %v596 = vld [vmem:[%s2 + $0xb0] sm:$0xff]
        %v597 = vld [vmem:[%s2 + $0xb8] sm:$0xff]
        %v598 = vld [vmem:[%s2 + $0xc0] sm:$0xff]
        %v599 = vld [vmem:[%s2 + $0xc8] sm:$0xff]
        %v600 = vld [vmem:[%s2 + $0xd0] sm:$0xff]
        %v601 = vld [vmem:[%s2 + $0xd8] sm:$0xff]
        %v602 = vld [vmem:[%s2 + $0xe0] sm:$0xff]
        %v603 = vld [vmem:[%s2 + $0xe8] sm:$0xff]
        %v604 = vld [vmem:[%s2 + $0xf0] sm:$0xff]
        %v605 = vld [vmem:[%s2 + $0xf8] sm:$0xff]
        %v606 = vld [vmem:[%s2 + $0x100] sm:$0xff]
        %v607 = vld [vmem:[%s2 + $0x108] sm:$0xff]
        %v608 = vld [vmem:[%s2 + $0x110] sm:$0xff]
        %v609 = vld [vmem:[%s2 + $0x118] sm:$0xff]
        %v610 = vld [vmem:[%s2 + $0x120] sm:$0xff]
        %v611 = vld [vmem:[%s2 + $0x128] sm:$0xff]
        %v612 = vld [vmem:[%s2 + $0x130] sm:$0xff]
        %v613 = vld [vmem:[%s2 + $0x138] sm:$0xff]
        %v614 = vld [vmem:[%s2 + $0x140] sm:$0xff]
        %v615 = vld [vmem:[%s2 + $0x148] sm:$0xff]
        %v616 = vld [vmem:[%s2 + $0x150] sm:$0xff]
        %v617 = vld [vmem:[%s2 + $0x158] sm:$0xff]
        %v618 = vld [vmem:[%s2 + $0x160] sm:$0xff]
        %v619 = vld [vmem:[%s2 + $0x168] sm:$0xff]
        %v620 = vld [vmem:[%s2 + $0x170] sm:$0xff]
        %v621 = vld [vmem:[%s2 + $0x178] sm:$0xff]
        %v622 = vld [vmem:[%s2 + $0x180] sm:$0xff]
        %v623 = vld [vmem:[%s2 + $0x188] sm:$0xff]
        %v624 = vld [vmem:[%s2 + $0x190] sm:$0xff]
        %v625 = vld [vmem:[%s2 + $0x198] sm:$0xff]
        %v626 = vld [vmem:[%s2 + $0x1a0] sm:$0xff]
        %v627 = vld [vmem:[%s2 + $0x1a8] sm:$0xff]
        %v628 = vld [vmem:[%s2 + $0x1b0] sm:$0xff]
        %v629 = vld [vmem:[%s2 + $0x1b8] sm:$0xff]
        %v630 = vld [vmem:[%s2 + $0x1c0] sm:$0xff]
        %v631 = vld [vmem:[%s2 + $0x1c8] sm:$0xff]
        %v632 = vld [vmem:[%s2 + $0x1d0] sm:$0xff]
        %v633 = vld [vmem:[%s2 + $0x1d8] sm:$0xff]
        %v634 = vld [vmem:[%s2 + $0x1e0] sm:$0xff]
        %v635 = vld [vmem:[%s2 + $0x1e8] sm:$0xff]
        %v636 = vld [vmem:[%s2 + $0x1f0] sm:$0xff]
        %v637 = vld [vmem:[%s2 + $0x1f8] sm:$0xff]
        %638 = vmatprep.subr.mxu0 %v575
        %639 = vmatpush1.msra.mxu0 %v574
        %640 = vmatprep.subr.mxu0 %v579
        %641 = vmatpush1.msra.mxu0 %v578
        %642 = vmatprep.subr.mxu0 %v583
        %643 = vmatpush1.msra.mxu0 %v582
        %644 = vmatprep.subr.mxu0 %v587
        %645 = vmatpush1.msra.mxu0 %v586
        %646 = vmatprep.subr.mxu0 %v591
        %647 = vmatpush1.msra.mxu0 %v590
        %648 = vmatprep.subr.mxu0 %v595
        %649 = vmatpush1.msra.mxu0 %v594
        %650 = vmatprep.subr.mxu0 %v599
        %651 = vmatpush1.msra.mxu0 %v598
        %652 = vmatprep.subr.mxu0 %v603
        %653 = vmatpush1.msra.mxu0 %v602
        %654 = vmatprep.subr.mxu0 %v607
        %655 = vmatpush1.msra.mxu0 %v606
        %656 = vmatprep.subr.mxu0 %v611
        %657 = vmatpush1.msra.mxu0 %v610
        %658 = vmatprep.subr.mxu0 %v615
        %659 = vmatpush1.msra.mxu0 %v614
        %660 = vmatprep.subr.mxu0 %v619
        %661 = vmatpush1.msra.mxu0 %v618
        %662 = vmatprep.subr.mxu0 %v623
        %663 = vmatpush1.msra.mxu0 %v622
        %664 = vmatprep.subr.mxu0 %v627
        %665 = vmatpush1.msra.mxu0 %v626
        %666 = vmatprep.subr.mxu0 %v631
        %667 = vmatpush1.msra.mxu0 %v630
        %668 = vmatprep.subr.mxu0 %v635
        %669 = vmatpush1.msra.mxu0 %v634
        %670 = vmatprep.subr.mxu0 0.0
        %671 = vmatpush1.msra.mxu0 0.0
        %672 = vmatprep.subr.mxu0 0.0
        %673 = vmatpush1.msra.mxu0 0.0
        %674 = vmatprep.subr.mxu0 0.0
        %675 = vmatpush1.msra.mxu0 0.0
        %676 = vmatprep.subr.mxu0 0.0
        %677 = vmatpush1.msra.mxu0 0.0
        %678 = vmatprep.subr.mxu0 0.0
        %679 = vmatpush1.msra.mxu0 0.0
        %680 = vmatprep.subr.mxu0 0.0
        %681 = vmatpush1.msra.mxu0 0.0
        %682 = vmatprep.subr.mxu0 0.0
        %683 = vmatpush1.msra.mxu0 0.0
        %684 = vmatprep.subr.mxu0 0.0
        %685 = vmatpush1.msra.mxu0 0.0
        %686 = vmatprep.subr.mxu0 0.0
        %687 = vmatpush1.msra.mxu0 0.0
        %688 = vmatprep.subr.mxu0 0.0
        %689 = vmatpush1.msra.mxu0 0.0
        %690 = vmatprep.subr.mxu0 0.0
        %691 = vmatpush1.msra.mxu0 0.0
        %692 = vmatprep.subr.mxu0 0.0
        %693 = vmatpush1.msra.mxu0 0.0
        %694 = vmatprep.subr.mxu0 0.0
        %695 = vmatpush1.msra.mxu0 0.0
        %696 = vmatprep.subr.mxu0 0.0
        %697 = vmatpush1.msra.mxu0 0.0
        %698 = vmatprep.subr.mxu0 0.0
        %699 = vmatpush1.msra.mxu0 0.0
        %700 = vmatprep.subr.mxu0 0.0
        %701 = vmatpush1.msra.mxu0 0.0
        %702 = vmatprep.mubr.f32.mxu0 0.0
        %703 = vmatmul.mubr.f32.gmra.mrb[0].mxu0 %v565
        %v704 = vpop.f32.mrb[0].mxu0
        %v705 = vadd.f32 0.0, %v704
        %v706 = vpop.f32.mrb[0].mxu0
        %v707 = vadd.f32 0.0, %v706
        %708 = vdwg.mxu0
        %709 = vmatprep.subr.mxu0 %v577
        %710 = vmatpush1.msra.mxu0 %v576
        %711 = vmatprep.subr.mxu0 %v581
        %712 = vmatpush1.msra.mxu0 %v580
        %713 = vmatprep.subr.mxu0 %v585
        %714 = vmatpush1.msra.mxu0 %v584
        %715 = vmatprep.subr.mxu0 %v589
        %716 = vmatpush1.msra.mxu0 %v588
        %717 = vmatprep.subr.mxu0 %v593
        %718 = vmatpush1.msra.mxu0 %v592
        %719 = vmatprep.subr.mxu0 %v597
        %720 = vmatpush1.msra.mxu0 %v596
        %721 = vmatprep.subr.mxu0 %v601
        %722 = vmatpush1.msra.mxu0 %v600
        %723 = vmatprep.subr.mxu0 %v605
        %724 = vmatpush1.msra.mxu0 %v604
        %725 = vmatprep.subr.mxu0 %v609
        %726 = vmatpush1.msra.mxu0 %v608
        %727 = vmatprep.subr.mxu0 %v613
        %728 = vmatpush1.msra.mxu0 %v612
        %729 = vmatprep.subr.mxu0 %v617
        %730 = vmatpush1.msra.mxu0 %v616
        %731 = vmatprep.subr.mxu0 %v621
        %732 = vmatpush1.msra.mxu0 %v620
        %733 = vmatprep.subr.mxu0 %v625
        %734 = vmatpush1.msra.mxu0 %v624
        %735 = vmatprep.subr.mxu0 %v629
        %736 = vmatpush1.msra.mxu0 %v628
        %737 = vmatprep.subr.mxu0 %v633
        %738 = vmatpush1.msra.mxu0 %v632
        %739 = vmatprep.subr.mxu0 %v637
        %740 = vmatpush1.msra.mxu0 %v636
        %741 = vmatprep.subr.mxu0 0.0
        %742 = vmatpush1.msra.mxu0 0.0
        %743 = vmatprep.subr.mxu0 0.0
        %744 = vmatpush1.msra.mxu0 0.0
        %745 = vmatprep.subr.mxu0 0.0
        %746 = vmatpush1.msra.mxu0 0.0
        %747 = vmatprep.subr.mxu0 0.0
        %748 = vmatpush1.msra.mxu0 0.0
        %749 = vmatprep.subr.mxu0 0.0
        %750 = vmatpush1.msra.mxu0 0.0
        %751 = vmatprep.subr.mxu0 0.0
        %752 = vmatpush1.msra.mxu0 0.0
        %753 = vmatprep.subr.mxu0 0.0
        %754 = vmatpush1.msra.mxu0 0.0
        %755 = vmatprep.subr.mxu0 0.0
        %756 = vmatpush1.msra.mxu0 0.0
        %757 = vmatprep.subr.mxu0 0.0
        %758 = vmatpush1.msra.mxu0 0.0
        %759 = vmatprep.subr.mxu0 0.0
        %760 = vmatpush1.msra.mxu0 0.0
        %761 = vmatprep.subr.mxu0 0.0
        %762 = vmatpush1.msra.mxu0 0.0
        %763 = vmatprep.subr.mxu0 0.0
        %764 = vmatpush1.msra.mxu0 0.0
        %765 = vmatprep.subr.mxu0 0.0
        %766 = vmatpush1.msra.mxu0 0.0
        %767 = vmatprep.subr.mxu0 0.0
        %768 = vmatpush1.msra.mxu0 0.0
        %769 = vmatprep.subr.mxu0 0.0
        %770 = vmatpush1.msra.mxu0 0.0
        %771 = vmatprep.subr.mxu0 0.0
        %772 = vmatpush1.msra.mxu0 0.0
        %773 = vmatprep.mubr.f32.mxu0 0.0
        %774 = vmatmul.mubr.f32.gmra.mrb[0].mxu0 %v565
        %v775 = vpop.f32.mrb[0].mxu0
        %v776 = vadd.f32 0.0, %v775
        %v777 = vpop.f32.mrb[0].mxu0
        %v778 = vadd.f32 0.0, %v777
        %779 = vdwg.mxu0
        %v780 = vadd.f32 %v570, %v705
        %v781 = vadd.f32 %v571, %v707
        %v782 = vadd.f32 %v572, %v776
        %v783 = vadd.f32 %v573, %v778
        %v784 = vxor.u32 %v780, 2147483648
        %v785 = vmul.f32 %v784, 1.442695
        %v786 = vpow.pop %v785
        %v787 = vadd.f32 %v786, 1.0
        %v788 = vrcp.pop %v787
        %v789 = vmul.f32 1.0, %v788
        %v790 = vxor.u32 %v781, 2147483648
        %v791 = vmul.f32 %v790, 1.442695
        %v792 = vpow.pop %v791
        %v793 = vadd.f32 %v792, 1.0
        %v794 = vrcp.pop %v793
        %v795 = vmul.f32 1.0, %v794
        %v796 = vtanh.pop %v782
        %v797 = vxor.u32 %v783, 2147483648
        %v798 = vmul.f32 %v797, 1.442695
        %v799 = vpow.pop %v798
        %v800 = vadd.f32 %v799, 1.0
        %v801 = vrcp.pop %v800
        %v802 = vmul.f32 1.0, %v801
        %v803 = vmul.f32 %v795, %v566
        %v804 = vmul.f32 %v789, %v796
        %v805 = vadd.f32 %v803, %v804
        %v806 = vtanh.pop %v805
        %v807 = vmul.f32 %v802, %v806
        %s808 = sadd.s32 %s305, 1
        %v809 = vstv %s808
        %vm810 = vcmp.gt.s32.totalorder %v317, %v809
        %v811 = vsel %vm810, 1, 0
        %812 = vset.pattern.permute.xlu0 0
        %813 = vperm.xlu0 %812, %v811
        %v814 = vpop.permute.xlu0 %813
        %vm815 = vcmp.eq.s32.totalorder %v814, 1
        %v816 = vsel %vm815, %v807, %v565
        %v817 = vsel %vm815, %v805, %v566
        %v818 = vsel %vm815, %v807, 0.0
        %s819 = scalar_lea.vmem %s295, 8
        %820 = vst [vmem:[%s819] sm:$0xff] %v818
        %s821 = scalar_lea.vmem %s282, 64
        %v822 = vld [vmem:[%s821] sm:$0xff]
        %v823 = vld [vmem:[%s821 + $0x8] sm:$0xff]
        %v824 = vld [vmem:[%s821 + $0x10] sm:$0xff]
        %v825 = vld [vmem:[%s821 + $0x18] sm:$0xff]
        %v826 = vld [vmem:[%s2] sm:$0xff]
        %v827 = vld [vmem:[%s2 + $0x8] sm:$0xff]
        %v828 = vld [vmem:[%s2 + $0x10] sm:$0xff]
        %v829 = vld [vmem:[%s2 + $0x18] sm:$0xff]
        %v830 = vld [vmem:[%s2 + $0x20] sm:$0xff]
        %v831 = vld [vmem:[%s2 + $0x28] sm:$0xff]
        %v832 = vld [vmem:[%s2 + $0x30] sm:$0xff]
        %v833 = vld [vmem:[%s2 + $0x38] sm:$0xff]
        %v834 = vld [vmem:[%s2 + $0x40] sm:$0xff]
        %v835 = vld [vmem:[%s2 + $0x48] sm:$0xff]
        %v836 = vld [vmem:[%s2 + $0x50] sm:$0xff]
        %v837 = vld [vmem:[%s2 + $0x58] sm:$0xff]
        %v838 = vld [vmem:[%s2 + $0x60] sm:$0xff]
        %v839 = vld [vmem:[%s2 + $0x68] sm:$0xff]
        %v840 = vld [vmem:[%s2 + $0x70] sm:$0xff]
        %v841 = vld [vmem:[%s2 + $0x78] sm:$0xff]
        %v842 = vld [vmem:[%s2 + $0x80] sm:$0xff]
        %v843 = vld [vmem:[%s2 + $0x88] sm:$0xff]
        %v844 = vld [vmem:[%s2 + $0x90] sm:$0xff]
        %v845 = vld [vmem:[%s2 + $0x98] sm:$0xff]
        %v846 = vld [vmem:[%s2 + $0xa0] sm:$0xff]
        %v847 = vld [vmem:[%s2 + $0xa8] sm:$0xff]
        %v848 = vld [vmem:[%s2 + $0xb0] sm:$0xff]
        %v849 = vld [vmem:[%s2 + $0xb8] sm:$0xff]
        %v850 = vld [vmem:[%s2 + $0xc0] sm:$0xff]
        %v851 = vld [vmem:[%s2 + $0xc8] sm:$0xff]
        %v852 = vld [vmem:[%s2 + $0xd0] sm:$0xff]
        %v853 = vld [vmem:[%s2 + $0xd8] sm:$0xff]
        %v854 = vld [vmem:[%s2 + $0xe0] sm:$0xff]
        %v855 = vld [vmem:[%s2 + $0xe8] sm:$0xff]
        %v856 = vld [vmem:[%s2 + $0xf0] sm:$0xff]
        %v857 = vld [vmem:[%s2 + $0xf8] sm:$0xff]
        %v858 = vld [vmem:[%s2 + $0x100] sm:$0xff]
        %v859 = vld [vmem:[%s2 + $0x108] sm:$0xff]
        %v860 = vld [vmem:[%s2 + $0x110] sm:$0xff]
        %v861 = vld [vmem:[%s2 + $0x118] sm:$0xff]
        %v862 = vld [vmem:[%s2 + $0x120] sm:$0xff]
        %v863 = vld [vmem:[%s2 + $0x128] sm:$0xff]
        %v864 = vld [vmem:[%s2 + $0x130] sm:$0xff]
        %v865 = vld [vmem:[%s2 + $0x138] sm:$0xff]
        %v866 = vld [vmem:[%s2 + $0x140] sm:$0xff]
        %v867 = vld [vmem:[%s2 + $0x148] sm:$0xff]
        %v868 = vld [vmem:[%s2 + $0x150] sm:$0xff]
        %v869 = vld [vmem:[%s2 + $0x158] sm:$0xff]
        %v870 = vld [vmem:[%s2 + $0x160] sm:$0xff]
        %v871 = vld [vmem:[%s2 + $0x168] sm:$0xff]
        %v872 = vld [vmem:[%s2 + $0x170] sm:$0xff]
        %v873 = vld [vmem:[%s2 + $0x178] sm:$0xff]
        %v874 = vld [vmem:[%s2 + $0x180] sm:$0xff]
        %v875 = vld [vmem:[%s2 + $0x188] sm:$0xff]
        %v876 = vld [vmem:[%s2 + $0x190] sm:$0xff]
        %v877 = vld [vmem:[%s2 + $0x198] sm:$0xff]
        %v878 = vld [vmem:[%s2 + $0x1a0] sm:$0xff]
        %v879 = vld [vmem:[%s2 + $0x1a8] sm:$0xff]
        %v880 = vld [vmem:[%s2 + $0x1b0] sm:$0xff]
        %v881 = vld [vmem:[%s2 + $0x1b8] sm:$0xff]
        %v882 = vld [vmem:[%s2 + $0x1c0] sm:$0xff]
        %v883 = vld [vmem:[%s2 + $0x1c8] sm:$0xff]
        %v884 = vld [vmem:[%s2 + $0x1d0] sm:$0xff]
        %v885 = vld [vmem:[%s2 + $0x1d8] sm:$0xff]
        %v886 = vld [vmem:[%s2 + $0x1e0] sm:$0xff]
        %v887 = vld [vmem:[%s2 + $0x1e8] sm:$0xff]
        %v888 = vld [vmem:[%s2 + $0x1f0] sm:$0xff]
        %v889 = vld [vmem:[%s2 + $0x1f8] sm:$0xff]
        %890 = vmatprep.subr.mxu0 %v827
        %891 = vmatpush1.msra.mxu0 %v826
        %892 = vmatprep.subr.mxu0 %v831
        %893 = vmatpush1.msra.mxu0 %v830
        %894 = vmatprep.subr.mxu0 %v835
        %895 = vmatpush1.msra.mxu0 %v834
        %896 = vmatprep.subr.mxu0 %v839
        %897 = vmatpush1.msra.mxu0 %v838
        %898 = vmatprep.subr.mxu0 %v843
        %899 = vmatpush1.msra.mxu0 %v842
        %900 = vmatprep.subr.mxu0 %v847
        %901 = vmatpush1.msra.mxu0 %v846
        %902 = vmatprep.subr.mxu0 %v851
        %903 = vmatpush1.msra.mxu0 %v850
        %904 = vmatprep.subr.mxu0 %v855
        %905 = vmatpush1.msra.mxu0 %v854
        %906 = vmatprep.subr.mxu0 %v859
        %907 = vmatpush1.msra.mxu0 %v858
        %908 = vmatprep.subr.mxu0 %v863
        %909 = vmatpush1.msra.mxu0 %v862
        %910 = vmatprep.subr.mxu0 %v867
        %911 = vmatpush1.msra.mxu0 %v866
        %912 = vmatprep.subr.mxu0 %v871
        %913 = vmatpush1.msra.mxu0 %v870
        %914 = vmatprep.subr.mxu0 %v875
        %915 = vmatpush1.msra.mxu0 %v874
        %916 = vmatprep.subr.mxu0 %v879
        %917 = vmatpush1.msra.mxu0 %v878
        %918 = vmatprep.subr.mxu0 %v883
        %919 = vmatpush1.msra.mxu0 %v882
        %920 = vmatprep.subr.mxu0 %v887
        %921 = vmatpush1.msra.mxu0 %v886
        %922 = vmatprep.subr.mxu0 0.0
        %923 = vmatpush1.msra.mxu0 0.0
        %924 = vmatprep.subr.mxu0 0.0
        %925 = vmatpush1.msra.mxu0 0.0
        %926 = vmatprep.subr.mxu0 0.0
        %927 = vmatpush1.msra.mxu0 0.0
        %928 = vmatprep.subr.mxu0 0.0
        %929 = vmatpush1.msra.mxu0 0.0
        %930 = vmatprep.subr.mxu0 0.0
        %931 = vmatpush1.msra.mxu0 0.0
        %932 = vmatprep.subr.mxu0 0.0
        %933 = vmatpush1.msra.mxu0 0.0
        %934 = vmatprep.subr.mxu0 0.0
        %935 = vmatpush1.msra.mxu0 0.0
        %936 = vmatprep.subr.mxu0 0.0
        %937 = vmatpush1.msra.mxu0 0.0
        %938 = vmatprep.subr.mxu0 0.0
        %939 = vmatpush1.msra.mxu0 0.0
        %940 = vmatprep.subr.mxu0 0.0
        %941 = vmatpush1.msra.mxu0 0.0
        %942 = vmatprep.subr.mxu0 0.0
        %943 = vmatpush1.msra.mxu0 0.0
        %944 = vmatprep.subr.mxu0 0.0
        %945 = vmatpush1.msra.mxu0 0.0
        %946 = vmatprep.subr.mxu0 0.0
        %947 = vmatpush1.msra.mxu0 0.0
        %948 = vmatprep.subr.mxu0 0.0
        %949 = vmatpush1.msra.mxu0 0.0
        %950 = vmatprep.subr.mxu0 0.0
        %951 = vmatpush1.msra.mxu0 0.0
        %952 = vmatprep.subr.mxu0 0.0
        %953 = vmatpush1.msra.mxu0 0.0
        %954 = vmatprep.mubr.f32.mxu0 0.0
        %955 = vmatmul.mubr.f32.gmra.mrb[0].mxu0 %v816
        %v956 = vpop.f32.mrb[0].mxu0
        %v957 = vadd.f32 0.0, %v956
        %v958 = vpop.f32.mrb[0].mxu0
        %v959 = vadd.f32 0.0, %v958
        %960 = vdwg.mxu0
        %961 = vmatprep.subr.mxu0 %v829
        %962 = vmatpush1.msra.mxu0 %v828
        %963 = vmatprep.subr.mxu0 %v833
        %964 = vmatpush1.msra.mxu0 %v832
        %965 = vmatprep.subr.mxu0 %v837
        %966 = vmatpush1.msra.mxu0 %v836
        %967 = vmatprep.subr.mxu0 %v841
        %968 = vmatpush1.msra.mxu0 %v840
        %969 = vmatprep.subr.mxu0 %v845
        %970 = vmatpush1.msra.mxu0 %v844
        %971 = vmatprep.subr.mxu0 %v849
        %972 = vmatpush1.msra.mxu0 %v848
        %973 = vmatprep.subr.mxu0 %v853
        %974 = vmatpush1.msra.mxu0 %v852
        %975 = vmatprep.subr.mxu0 %v857
        %976 = vmatpush1.msra.mxu0 %v856
        %977 = vmatprep.subr.mxu0 %v861
        %978 = vmatpush1.msra.mxu0 %v860
        %979 = vmatprep.subr.mxu0 %v865
        %980 = vmatpush1.msra.mxu0 %v864
        %981 = vmatprep.subr.mxu0 %v869
        %982 = vmatpush1.msra.mxu0 %v868
        %983 = vmatprep.subr.mxu0 %v873
        %984 = vmatpush1.msra.mxu0 %v872
        %985 = vmatprep.subr.mxu0 %v877
        %986 = vmatpush1.msra.mxu0 %v876
        %987 = vmatprep.subr.mxu0 %v881
        %988 = vmatpush1.msra.mxu0 %v880
        %989 = vmatprep.subr.mxu0 %v885
        %990 = vmatpush1.msra.mxu0 %v884
        %991 = vmatprep.subr.mxu0 %v889
        %992 = vmatpush1.msra.mxu0 %v888
        %993 = vmatprep.subr.mxu0 0.0
        %994 = vmatpush1.msra.mxu0 0.0
        %995 = vmatprep.subr.mxu0 0.0
        %996 = vmatpush1.msra.mxu0 0.0
        %997 = vmatprep.subr.mxu0 0.0
        %998 = vmatpush1.msra.mxu0 0.0
        %999 = vmatprep.subr.mxu0 0.0
        %1000 = vmatpush1.msra.mxu0 0.0
        %1001 = vmatprep.subr.mxu0 0.0
        %1002 = vmatpush1.msra.mxu0 0.0
        %1003 = vmatprep.subr.mxu0 0.0
        %1004 = vmatpush1.msra.mxu0 0.0
        %1005 = vmatprep.subr.mxu0 0.0
        %1006 = vmatpush1.msra.mxu0 0.0
        %1007 = vmatprep.subr.mxu0 0.0
        %1008 = vmatpush1.msra.mxu0 0.0
        %1009 = vmatprep.subr.mxu0 0.0
        %1010 = vmatpush1.msra.mxu0 0.0
        %1011 = vmatprep.subr.mxu0 0.0
        %1012 = vmatpush1.msra.mxu0 0.0
        %1013 = vmatprep.subr.mxu0 0.0
        %1014 = vmatpush1.msra.mxu0 0.0
        %1015 = vmatprep.subr.mxu0 0.0
        %1016 = vmatpush1.msra.mxu0 0.0
        %1017 = vmatprep.subr.mxu0 0.0
        %1018 = vmatpush1.msra.mxu0 0.0
        %1019 = vmatprep.subr.mxu0 0.0
        %1020 = vmatpush1.msra.mxu0 0.0
        %1021 = vmatprep.subr.mxu0 0.0
        %1022 = vmatpush1.msra.mxu0 0.0
        %1023 = vmatprep.subr.mxu0 0.0
        %1024 = vmatpush1.msra.mxu0 0.0
        %1025 = vmatprep.mubr.f32.mxu0 0.0
        %1026 = vmatmul.mubr.f32.gmra.mrb[0].mxu0 %v816
        %v1027 = vpop.f32.mrb[0].mxu0
        %v1028 = vadd.f32 0.0, %v1027
        %v1029 = vpop.f32.mrb[0].mxu0
        %v1030 = vadd.f32 0.0, %v1029
        %1031 = vdwg.mxu0
        %v1032 = vadd.f32 %v822, %v957
        %v1033 = vadd.f32 %v823, %v959
        %v1034 = vadd.f32 %v824, %v1028
        %v1035 = vadd.f32 %v825, %v1030
        %v1036 = vxor.u32 %v1032, 2147483648
        %v1037 = vmul.f32 %v1036, 1.442695
        %v1038 = vpow.pop %v1037
        %v1039 = vadd.f32 %v1038, 1.0
        %v1040 = vrcp.pop %v1039
        %v1041 = vmul.f32 1.0, %v1040
        %v1042 = vxor.u32 %v1033, 2147483648
        %v1043 = vmul.f32 %v1042, 1.442695
        %v1044 = vpow.pop %v1043
        %v1045 = vadd.f32 %v1044, 1.0
        %v1046 = vrcp.pop %v1045
        %v1047 = vmul.f32 1.0, %v1046
        %v1048 = vtanh.pop %v1034
        %v1049 = vxor.u32 %v1035, 2147483648
        %v1050 = vmul.f32 %v1049, 1.442695
        %v1051 = vpow.pop %v1050
        %v1052 = vadd.f32 %v1051, 1.0
        %v1053 = vrcp.pop %v1052
        %v1054 = vmul.f32 1.0, %v1053
        %v1055 = vmul.f32 %v1047, %v817
        %v1056 = vmul.f32 %v1041, %v1048
        %v1057 = vadd.f32 %v1055, %v1056
        %v1058 = vtanh.pop %v1057
        %v1059 = vmul.f32 %v1054, %v1058
        %s1060 = sadd.s32 %s305, 2
        %v1061 = vstv %s1060
        %vm1062 = vcmp.gt.s32.totalorder %v317, %v1061
        %v1063 = vsel %vm1062, 1, 0
        %1064 = vset.pattern.permute.xlu0 0
        %1065 = vperm.xlu0 %1064, %v1063
        %v1066 = vpop.permute.xlu0 %1065
        %vm1067 = vcmp.eq.s32.totalorder %v1066, 1
        %v1068 = vsel %vm1067, %v1059, %v816
        %v1069 = vsel %vm1067, %v1057, %v817
        %v1070 = vsel %vm1067, %v1059, 0.0
        %s1071 = scalar_lea.vmem %s295, 16
        %1072 = vst [vmem:[%s1071] sm:$0xff] %v1070
        %s1073 = scalar_lea.vmem %s282, 96
        %v1074 = vld [vmem:[%s1073] sm:$0xff]
        %v1075 = vld [vmem:[%s1073 + $0x8] sm:$0xff]
        %v1076 = vld [vmem:[%s1073 + $0x10] sm:$0xff]
        %v1077 = vld [vmem:[%s1073 + $0x18] sm:$0xff]
        %v1078 = vld [vmem:[%s2] sm:$0xff]
        %v1079 = vld [vmem:[%s2 + $0x8] sm:$0xff]
        %v1080 = vld [vmem:[%s2 + $0x10] sm:$0xff]
        %v1081 = vld [vmem:[%s2 + $0x18] sm:$0xff]
        %v1082 = vld [vmem:[%s2 + $0x20] sm:$0xff]
        %v1083 = vld [vmem:[%s2 + $0x28] sm:$0xff]
        %v1084 = vld [vmem:[%s2 + $0x30] sm:$0xff]
        %v1085 = vld [vmem:[%s2 + $0x38] sm:$0xff]
        %v1086 = vld [vmem:[%s2 + $0x40] sm:$0xff]
        %v1087 = vld [vmem:[%s2 + $0x48] sm:$0xff]
        %v1088 = vld [vmem:[%s2 + $0x50] sm:$0xff]
        %v1089 = vld [vmem:[%s2 + $0x58] sm:$0xff]
        %v1090 = vld [vmem:[%s2 + $0x60] sm:$0xff]
        %v1091 = vld [vmem:[%s2 + $0x68] sm:$0xff]
        %v1092 = vld [vmem:[%s2 + $0x70] sm:$0xff]
        %v1093 = vld [vmem:[%s2 + $0x78] sm:$0xff]
        %v1094 = vld [vmem:[%s2 + $0x80] sm:$0xff]
        %v1095 = vld [vmem:[%s2 + $0x88] sm:$0xff]
        %v1096 = vld [vmem:[%s2 + $0x90] sm:$0xff]
        %v1097 = vld [vmem:[%s2 + $0x98] sm:$0xff]
        %v1098 = vld [vmem:[%s2 + $0xa0] sm:$0xff]
        %v1099 = vld [vmem:[%s2 + $0xa8] sm:$0xff]
        %v1100 = vld [vmem:[%s2 + $0xb0] sm:$0xff]
        %v1101 = vld [vmem:[%s2 + $0xb8] sm:$0xff]
        %v1102 = vld [vmem:[%s2 + $0xc0] sm:$0xff]
        %v1103 = vld [vmem:[%s2 + $0xc8] sm:$0xff]
        %v1104 = vld [vmem:[%s2 + $0xd0] sm:$0xff]
        %v1105 = vld [vmem:[%s2 + $0xd8] sm:$0xff]
        %v1106 = vld [vmem:[%s2 + $0xe0] sm:$0xff]
        %v1107 = vld [vmem:[%s2 + $0xe8] sm:$0xff]
        %v1108 = vld [vmem:[%s2 + $0xf0] sm:$0xff]
        %v1109 = vld [vmem:[%s2 + $0xf8] sm:$0xff]
        %v1110 = vld [vmem:[%s2 + $0x100] sm:$0xff]
        %v1111 = vld [vmem:[%s2 + $0x108] sm:$0xff]
        %v1112 = vld [vmem:[%s2 + $0x110] sm:$0xff]
        %v1113 = vld [vmem:[%s2 + $0x118] sm:$0xff]
        %v1114 = vld [vmem:[%s2 + $0x120] sm:$0xff]
        %v1115 = vld [vmem:[%s2 + $0x128] sm:$0xff]
        %v1116 = vld [vmem:[%s2 + $0x130] sm:$0xff]
        %v1117 = vld [vmem:[%s2 + $0x138] sm:$0xff]
        %v1118 = vld [vmem:[%s2 + $0x140] sm:$0xff]
        %v1119 = vld [vmem:[%s2 + $0x148] sm:$0xff]
        %v1120 = vld [vmem:[%s2 + $0x150] sm:$0xff]
        %v1121 = vld [vmem:[%s2 + $0x158] sm:$0xff]
        %v1122 = vld [vmem:[%s2 + $0x160] sm:$0xff]
        %v1123 = vld [vmem:[%s2 + $0x168] sm:$0xff]
        %v1124 = vld [vmem:[%s2 + $0x170] sm:$0xff]
        %v1125 = vld [vmem:[%s2 + $0x178] sm:$0xff]
        %v1126 = vld [vmem:[%s2 + $0x180] sm:$0xff]
        %v1127 = vld [vmem:[%s2 + $0x188] sm:$0xff]
        %v1128 = vld [vmem:[%s2 + $0x190] sm:$0xff]
        %v1129 = vld [vmem:[%s2 + $0x198] sm:$0xff]
        %v1130 = vld [vmem:[%s2 + $0x1a0] sm:$0xff]
        %v1131 = vld [vmem:[%s2 + $0x1a8] sm:$0xff]
        %v1132 = vld [vmem:[%s2 + $0x1b0] sm:$0xff]
        %v1133 = vld [vmem:[%s2 + $0x1b8] sm:$0xff]
        %v1134 = vld [vmem:[%s2 + $0x1c0] sm:$0xff]
        %v1135 = vld [vmem:[%s2 + $0x1c8] sm:$0xff]
        %v1136 = vld [vmem:[%s2 + $0x1d0] sm:$0xff]
        %v1137 = vld [vmem:[%s2 + $0x1d8] sm:$0xff]
        %v1138 = vld [vmem:[%s2 + $0x1e0] sm:$0xff]
        %v1139 = vld [vmem:[%s2 + $0x1e8] sm:$0xff]
        %v1140 = vld [vmem:[%s2 + $0x1f0] sm:$0xff]
        %v1141 = vld [vmem:[%s2 + $0x1f8] sm:$0xff]
        %1142 = vmatprep.subr.mxu0 %v1079
        %1143 = vmatpush1.msra.mxu0 %v1078
        %1144 = vmatprep.subr.mxu0 %v1083
        %1145 = vmatpush1.msra.mxu0 %v1082
        %1146 = vmatprep.subr.mxu0 %v1087
        %1147 = vmatpush1.msra.mxu0 %v1086
        %1148 = vmatprep.subr.mxu0 %v1091
        %1149 = vmatpush1.msra.mxu0 %v1090
        %1150 = vmatprep.subr.mxu0 %v1095
        %1151 = vmatpush1.msra.mxu0 %v1094
        %1152 = vmatprep.subr.mxu0 %v1099
        %1153 = vmatpush1.msra.mxu0 %v1098
        %1154 = vmatprep.subr.mxu0 %v1103
        %1155 = vmatpush1.msra.mxu0 %v1102
        %1156 = vmatprep.subr.mxu0 %v1107
        %1157 = vmatpush1.msra.mxu0 %v1106
        %1158 = vmatprep.subr.mxu0 %v1111
        %1159 = vmatpush1.msra.mxu0 %v1110
        %1160 = vmatprep.subr.mxu0 %v1115
        %1161 = vmatpush1.msra.mxu0 %v1114
        %1162 = vmatprep.subr.mxu0 %v1119
        %1163 = vmatpush1.msra.mxu0 %v1118
        %1164 = vmatprep.subr.mxu0 %v1123
        %1165 = vmatpush1.msra.mxu0 %v1122
        %1166 = vmatprep.subr.mxu0 %v1127
        %1167 = vmatpush1.msra.mxu0 %v1126
        %1168 = vmatprep.subr.mxu0 %v1131
        %1169 = vmatpush1.msra.mxu0 %v1130
        %1170 = vmatprep.subr.mxu0 %v1135
        %1171 = vmatpush1.msra.mxu0 %v1134
        %1172 = vmatprep.subr.mxu0 %v1139
        %1173 = vmatpush1.msra.mxu0 %v1138
        %1174 = vmatprep.subr.mxu0 0.0
        %1175 = vmatpush1.msra.mxu0 0.0
        %1176 = vmatprep.subr.mxu0 0.0
        %1177 = vmatpush1.msra.mxu0 0.0
        %1178 = vmatprep.subr.mxu0 0.0
        %1179 = vmatpush1.msra.mxu0 0.0
        %1180 = vmatprep.subr.mxu0 0.0
        %1181 = vmatpush1.msra.mxu0 0.0
        %1182 = vmatprep.subr.mxu0 0.0
        %1183 = vmatpush1.msra.mxu0 0.0
        %1184 = vmatprep.subr.mxu0 0.0
        %1185 = vmatpush1.msra.mxu0 0.0
        %1186 = vmatprep.subr.mxu0 0.0
        %1187 = vmatpush1.msra.mxu0 0.0
        %1188 = vmatprep.subr.mxu0 0.0
        %1189 = vmatpush1.msra.mxu0 0.0
        %1190 = vmatprep.subr.mxu0 0.0
        %1191 = vmatpush1.msra.mxu0 0.0
        %1192 = vmatprep.subr.mxu0 0.0
        %1193 = vmatpush1.msra.mxu0 0.0
        %1194 = vmatprep.subr.mxu0 0.0
        %1195 = vmatpush1.msra.mxu0 0.0
        %1196 = vmatprep.subr.mxu0 0.0
        %1197 = vmatpush1.msra.mxu0 0.0
        %1198 = vmatprep.subr.mxu0 0.0
        %1199 = vmatpush1.msra.mxu0 0.0
        %1200 = vmatprep.subr.mxu0 0.0
        %1201 = vmatpush1.msra.mxu0 0.0
        %1202 = vmatprep.subr.mxu0 0.0
        %1203 = vmatpush1.msra.mxu0 0.0
        %1204 = vmatprep.subr.mxu0 0.0
        %1205 = vmatpush1.msra.mxu0 0.0
        %1206 = vmatprep.mubr.f32.mxu0 0.0
        %1207 = vmatmul.mubr.f32.gmra.mrb[0].mxu0 %v1068
        %v1208 = vpop.f32.mrb[0].mxu0
        %v1209 = vadd.f32 0.0, %v1208
        %v1210 = vpop.f32.mrb[0].mxu0
        %v1211 = vadd.f32 0.0, %v1210
        %1212 = vdwg.mxu0
        %1213 = vmatprep.subr.mxu0 %v1081
        %1214 = vmatpush1.msra.mxu0 %v1080
        %1215 = vmatprep.subr.mxu0 %v1085
        %1216 = vmatpush1.msra.mxu0 %v1084
        %1217 = vmatprep.subr.mxu0 %v1089
        %1218 = vmatpush1.msra.mxu0 %v1088
        %1219 = vmatprep.subr.mxu0 %v1093
        %1220 = vmatpush1.msra.mxu0 %v1092
        %1221 = vmatprep.subr.mxu0 %v1097
        %1222 = vmatpush1.msra.mxu0 %v1096
        %1223 = vmatprep.subr.mxu0 %v1101
        %1224 = vmatpush1.msra.mxu0 %v1100
        %1225 = vmatprep.subr.mxu0 %v1105
        %1226 = vmatpush1.msra.mxu0 %v1104
        %1227 = vmatprep.subr.mxu0 %v1109
        %1228 = vmatpush1.msra.mxu0 %v1108
        %1229 = vmatprep.subr.mxu0 %v1113
        %1230 = vmatpush1.msra.mxu0 %v1112
        %1231 = vmatprep.subr.mxu0 %v1117
        %1232 = vmatpush1.msra.mxu0 %v1116
        %1233 = vmatprep.subr.mxu0 %v1121
        %1234 = vmatpush1.msra.mxu0 %v1120
        %1235 = vmatprep.subr.mxu0 %v1125
        %1236 = vmatpush1.msra.mxu0 %v1124
        %1237 = vmatprep.subr.mxu0 %v1129
        %1238 = vmatpush1.msra.mxu0 %v1128
        %1239 = vmatprep.subr.mxu0 %v1133
        %1240 = vmatpush1.msra.mxu0 %v1132
        %1241 = vmatprep.subr.mxu0 %v1137
        %1242 = vmatpush1.msra.mxu0 %v1136
        %1243 = vmatprep.subr.mxu0 %v1141
        %1244 = vmatpush1.msra.mxu0 %v1140
        %1245 = vmatprep.subr.mxu0 0.0
        %1246 = vmatpush1.msra.mxu0 0.0
        %1247 = vmatprep.subr.mxu0 0.0
        %1248 = vmatpush1.msra.mxu0 0.0
        %1249 = vmatprep.subr.mxu0 0.0
        %1250 = vmatpush1.msra.mxu0 0.0
        %1251 = vmatprep.subr.mxu0 0.0
        %1252 = vmatpush1.msra.mxu0 0.0
        %1253 = vmatprep.subr.mxu0 0.0
        %1254 = vmatpush1.msra.mxu0 0.0
        %1255 = vmatprep.subr.mxu0 0.0
        %1256 = vmatpush1.msra.mxu0 0.0
        %1257 = vmatprep.subr.mxu0 0.0
        %1258 = vmatpush1.msra.mxu0 0.0
        %1259 = vmatprep.subr.mxu0 0.0
        %1260 = vmatpush1.msra.mxu0 0.0
        %1261 = vmatprep.subr.mxu0 0.0
        %1262 = vmatpush1.msra.mxu0 0.0
        %1263 = vmatprep.subr.mxu0 0.0
        %1264 = vmatpush1.msra.mxu0 0.0
        %1265 = vmatprep.subr.mxu0 0.0
        %1266 = vmatpush1.msra.mxu0 0.0
        %1267 = vmatprep.subr.mxu0 0.0
        %1268 = vmatpush1.msra.mxu0 0.0
        %1269 = vmatprep.subr.mxu0 0.0
        %1270 = vmatpush1.msra.mxu0 0.0
        %1271 = vmatprep.subr.mxu0 0.0
        %1272 = vmatpush1.msra.mxu0 0.0
        %1273 = vmatprep.subr.mxu0 0.0
        %1274 = vmatpush1.msra.mxu0 0.0
        %1275 = vmatprep.subr.mxu0 0.0
        %1276 = vmatpush1.msra.mxu0 0.0
        %1277 = vmatprep.mubr.f32.mxu0 0.0
        %1278 = vmatmul.mubr.f32.gmra.mrb[0].mxu0 %v1068
        %v1279 = vpop.f32.mrb[0].mxu0
        %v1280 = vadd.f32 0.0, %v1279
        %v1281 = vpop.f32.mrb[0].mxu0
        %v1282 = vadd.f32 0.0, %v1281
        %1283 = vdwg.mxu0
        %v1284 = vadd.f32 %v1074, %v1209
        %v1285 = vadd.f32 %v1075, %v1211
        %v1286 = vadd.f32 %v1076, %v1280
        %v1287 = vadd.f32 %v1077, %v1282
        %v1288 = vxor.u32 %v1284, 2147483648
        %v1289 = vmul.f32 %v1288, 1.442695
        %v1290 = vpow.pop %v1289
        %v1291 = vadd.f32 %v1290, 1.0
        %v1292 = vrcp.pop %v1291
        %v1293 = vmul.f32 1.0, %v1292
        %v1294 = vxor.u32 %v1285, 2147483648
        %v1295 = vmul.f32 %v1294, 1.442695
        %v1296 = vpow.pop %v1295
        %v1297 = vadd.f32 %v1296, 1.0
        %v1298 = vrcp.pop %v1297
        %v1299 = vmul.f32 1.0, %v1298
        %v1300 = vtanh.pop %v1286
        %v1301 = vxor.u32 %v1287, 2147483648
        %v1302 = vmul.f32 %v1301, 1.442695
        %v1303 = vpow.pop %v1302
        %v1304 = vadd.f32 %v1303, 1.0
        %v1305 = vrcp.pop %v1304
        %v1306 = vmul.f32 1.0, %v1305
        %v1307 = vmul.f32 %v1299, %v1069
        %v1308 = vmul.f32 %v1293, %v1300
        %v1309 = vadd.f32 %v1307, %v1308
        %v1310 = vtanh.pop %v1309
        %v1311 = vmul.f32 %v1306, %v1310
        %s1312 = sadd.s32 %s305, 3
        %v1313 = vstv %s1312
        %vm1314 = vcmp.gt.s32.totalorder %v317, %v1313
        %v1315 = vsel %vm1314, 1, 0
        %1316 = vset.pattern.permute.xlu0 0
        %1317 = vperm.xlu0 %1316, %v1315
        %v1318 = vpop.permute.xlu0 %1317
        %vm1319 = vcmp.eq.s32.totalorder %v1318, 1
        %v1320 = vsel %vm1319, %v1311, %v1068
        %v1321 = vsel %vm1319, %v1309, %v1069
        %v1322 = vsel %vm1319, %v1311, 0.0
        %s1323 = scalar_lea.vmem %s295, 24
        %1324 = vst [vmem:[%s1323] sm:$0xff] %v1322
        %s1325 = scalar_lea.vmem %s282, 128
        %v1326 = vld [vmem:[%s1325] sm:$0xff]
        %v1327 = vld [vmem:[%s1325 + $0x8] sm:$0xff]
        %v1328 = vld [vmem:[%s1325 + $0x10] sm:$0xff]
        %v1329 = vld [vmem:[%s1325 + $0x18] sm:$0xff]
        %v1330 = vld [vmem:[%s2] sm:$0xff]
        %v1331 = vld [vmem:[%s2 + $0x8] sm:$0xff]
        %v1332 = vld [vmem:[%s2 + $0x10] sm:$0xff]
        %v1333 = vld [vmem:[%s2 + $0x18] sm:$0xff]
        %v1334 = vld [vmem:[%s2 + $0x20] sm:$0xff]
        %v1335 = vld [vmem:[%s2 + $0x28] sm:$0xff]
        %v1336 = vld [vmem:[%s2 + $0x30] sm:$0xff]
        %v1337 = vld [vmem:[%s2 + $0x38] sm:$0xff]
        %v1338 = vld [vmem:[%s2 + $0x40] sm:$0xff]
        %v1339 = vld [vmem:[%s2 + $0x48] sm:$0xff]
        %v1340 = vld [vmem:[%s2 + $0x50] sm:$0xff]
        %v1341 = vld [vmem:[%s2 + $0x58] sm:$0xff]
        %v1342 = vld [vmem:[%s2 + $0x60] sm:$0xff]
        %v1343 = vld [vmem:[%s2 + $0x68] sm:$0xff]
        %v1344 = vld [vmem:[%s2 + $0x70] sm:$0xff]
        %v1345 = vld [vmem:[%s2 + $0x78] sm:$0xff]
        %v1346 = vld [vmem:[%s2 + $0x80] sm:$0xff]
        %v1347 = vld [vmem:[%s2 + $0x88] sm:$0xff]
        %v1348 = vld [vmem:[%s2 + $0x90] sm:$0xff]
        %v1349 = vld [vmem:[%s2 + $0x98] sm:$0xff]
        %v1350 = vld [vmem:[%s2 + $0xa0] sm:$0xff]
        %v1351 = vld [vmem:[%s2 + $0xa8] sm:$0xff]
        %v1352 = vld [vmem:[%s2 + $0xb0] sm:$0xff]
        %v1353 = vld [vmem:[%s2 + $0xb8] sm:$0xff]
        %v1354 = vld [vmem:[%s2 + $0xc0] sm:$0xff]
        %v1355 = vld [vmem:[%s2 + $0xc8] sm:$0xff]
        %v1356 = vld [vmem:[%s2 + $0xd0] sm:$0xff]
        %v1357 = vld [vmem:[%s2 + $0xd8] sm:$0xff]
        %v1358 = vld [vmem:[%s2 + $0xe0] sm:$0xff]
        %v1359 = vld [vmem:[%s2 + $0xe8] sm:$0xff]
        %v1360 = vld [vmem:[%s2 + $0xf0] sm:$0xff]
        %v1361 = vld [vmem:[%s2 + $0xf8] sm:$0xff]
        %v1362 = vld [vmem:[%s2 + $0x100] sm:$0xff]
        %v1363 = vld [vmem:[%s2 + $0x108] sm:$0xff]
        %v1364 = vld [vmem:[%s2 + $0x110] sm:$0xff]
        %v1365 = vld [vmem:[%s2 + $0x118] sm:$0xff]
        %v1366 = vld [vmem:[%s2 + $0x120] sm:$0xff]
        %v1367 = vld [vmem:[%s2 + $0x128] sm:$0xff]
        %v1368 = vld [vmem:[%s2 + $0x130] sm:$0xff]
        %v1369 = vld [vmem:[%s2 + $0x138] sm:$0xff]
        %v1370 = vld [vmem:[%s2 + $0x140] sm:$0xff]
        %v1371 = vld [vmem:[%s2 + $0x148] sm:$0xff]
        %v1372 = vld [vmem:[%s2 + $0x150] sm:$0xff]
        %v1373 = vld [vmem:[%s2 + $0x158] sm:$0xff]
        %v1374 = vld [vmem:[%s2 + $0x160] sm:$0xff]
        %v1375 = vld [vmem:[%s2 + $0x168] sm:$0xff]
        %v1376 = vld [vmem:[%s2 + $0x170] sm:$0xff]
        %v1377 = vld [vmem:[%s2 + $0x178] sm:$0xff]
        %v1378 = vld [vmem:[%s2 + $0x180] sm:$0xff]
        %v1379 = vld [vmem:[%s2 + $0x188] sm:$0xff]
        %v1380 = vld [vmem:[%s2 + $0x190] sm:$0xff]
        %v1381 = vld [vmem:[%s2 + $0x198] sm:$0xff]
        %v1382 = vld [vmem:[%s2 + $0x1a0] sm:$0xff]
        %v1383 = vld [vmem:[%s2 + $0x1a8] sm:$0xff]
        %v1384 = vld [vmem:[%s2 + $0x1b0] sm:$0xff]
        %v1385 = vld [vmem:[%s2 + $0x1b8] sm:$0xff]
        %v1386 = vld [vmem:[%s2 + $0x1c0] sm:$0xff]
        %v1387 = vld [vmem:[%s2 + $0x1c8] sm:$0xff]
        %v1388 = vld [vmem:[%s2 + $0x1d0] sm:$0xff]
        %v1389 = vld [vmem:[%s2 + $0x1d8] sm:$0xff]
        %v1390 = vld [vmem:[%s2 + $0x1e0] sm:$0xff]
        %v1391 = vld [vmem:[%s2 + $0x1e8] sm:$0xff]
        %v1392 = vld [vmem:[%s2 + $0x1f0] sm:$0xff]
        %v1393 = vld [vmem:[%s2 + $0x1f8] sm:$0xff]
        %1394 = vmatprep.subr.mxu0 %v1331
        %1395 = vmatpush1.msra.mxu0 %v1330
        %1396 = vmatprep.subr.mxu0 %v1335
        %1397 = vmatpush1.msra.mxu0 %v1334
        %1398 = vmatprep.subr.mxu0 %v1339
        %1399 = vmatpush1.msra.mxu0 %v1338
        %1400 = vmatprep.subr.mxu0 %v1343
        %1401 = vmatpush1.msra.mxu0 %v1342
        %1402 = vmatprep.subr.mxu0 %v1347
        %1403 = vmatpush1.msra.mxu0 %v1346
        %1404 = vmatprep.subr.mxu0 %v1351
        %1405 = vmatpush1.msra.mxu0 %v1350
        %1406 = vmatprep.subr.mxu0 %v1355
        %1407 = vmatpush1.msra.mxu0 %v1354
        %1408 = vmatprep.subr.mxu0 %v1359
        %1409 = vmatpush1.msra.mxu0 %v1358
        %1410 = vmatprep.subr.mxu0 %v1363
        %1411 = vmatpush1.msra.mxu0 %v1362
        %1412 = vmatprep.subr.mxu0 %v1367
        %1413 = vmatpush1.msra.mxu0 %v1366
        %1414 = vmatprep.subr.mxu0 %v1371
        %1415 = vmatpush1.msra.mxu0 %v1370
        %1416 = vmatprep.subr.mxu0 %v1375
        %1417 = vmatpush1.msra.mxu0 %v1374
        %1418 = vmatprep.subr.mxu0 %v1379
        %1419 = vmatpush1.msra.mxu0 %v1378
        %1420 = vmatprep.subr.mxu0 %v1383
        %1421 = vmatpush1.msra.mxu0 %v1382
        %1422 = vmatprep.subr.mxu0 %v1387
        %1423 = vmatpush1.msra.mxu0 %v1386
        %1424 = vmatprep.subr.mxu0 %v1391
        %1425 = vmatpush1.msra.mxu0 %v1390
        %1426 = vmatprep.subr.mxu0 0.0
        %1427 = vmatpush1.msra.mxu0 0.0
        %1428 = vmatprep.subr.mxu0 0.0
        %1429 = vmatpush1.msra.mxu0 0.0
        %1430 = vmatprep.subr.mxu0 0.0
        %1431 = vmatpush1.msra.mxu0 0.0
        %1432 = vmatprep.subr.mxu0 0.0
        %1433 = vmatpush1.msra.mxu0 0.0
        %1434 = vmatprep.subr.mxu0 0.0
        %1435 = vmatpush1.msra.mxu0 0.0
        %1436 = vmatprep.subr.mxu0 0.0
        %1437 = vmatpush1.msra.mxu0 0.0
        %1438 = vmatprep.subr.mxu0 0.0
        %1439 = vmatpush1.msra.mxu0 0.0
        %1440 = vmatprep.subr.mxu0 0.0
        %1441 = vmatpush1.msra.mxu0 0.0
        %1442 = vmatprep.subr.mxu0 0.0
        %1443 = vmatpush1.msra.mxu0 0.0
        %1444 = vmatprep.subr.mxu0 0.0
        %1445 = vmatpush1.msra.mxu0 0.0
        %1446 = vmatprep.subr.mxu0 0.0
        %1447 = vmatpush1.msra.mxu0 0.0
        %1448 = vmatprep.subr.mxu0 0.0
        %1449 = vmatpush1.msra.mxu0 0.0
        %1450 = vmatprep.subr.mxu0 0.0
        %1451 = vmatpush1.msra.mxu0 0.0
        %1452 = vmatprep.subr.mxu0 0.0
        %1453 = vmatpush1.msra.mxu0 0.0
        %1454 = vmatprep.subr.mxu0 0.0
        %1455 = vmatpush1.msra.mxu0 0.0
        %1456 = vmatprep.subr.mxu0 0.0
        %1457 = vmatpush1.msra.mxu0 0.0
        %1458 = vmatprep.mubr.f32.mxu0 0.0
        %1459 = vmatmul.mubr.f32.gmra.mrb[0].mxu0 %v1320
        %v1460 = vpop.f32.mrb[0].mxu0
        %v1461 = vadd.f32 0.0, %v1460
        %v1462 = vpop.f32.mrb[0].mxu0
        %v1463 = vadd.f32 0.0, %v1462
        %1464 = vdwg.mxu0
        %1465 = vmatprep.subr.mxu0 %v1333
        %1466 = vmatpush1.msra.mxu0 %v1332
        %1467 = vmatprep.subr.mxu0 %v1337
        %1468 = vmatpush1.msra.mxu0 %v1336
        %1469 = vmatprep.subr.mxu0 %v1341
        %1470 = vmatpush1.msra.mxu0 %v1340
        %1471 = vmatprep.subr.mxu0 %v1345
        %1472 = vmatpush1.msra.mxu0 %v1344
        %1473 = vmatprep.subr.mxu0 %v1349
        %1474 = vmatpush1.msra.mxu0 %v1348
        %1475 = vmatprep.subr.mxu0 %v1353
        %1476 = vmatpush1.msra.mxu0 %v1352
        %1477 = vmatprep.subr.mxu0 %v1357
        %1478 = vmatpush1.msra.mxu0 %v1356
        %1479 = vmatprep.subr.mxu0 %v1361
        %1480 = vmatpush1.msra.mxu0 %v1360
        %1481 = vmatprep.subr.mxu0 %v1365
        %1482 = vmatpush1.msra.mxu0 %v1364
        %1483 = vmatprep.subr.mxu0 %v1369
        %1484 = vmatpush1.msra.mxu0 %v1368
        %1485 = vmatprep.subr.mxu0 %v1373
        %1486 = vmatpush1.msra.mxu0 %v1372
        %1487 = vmatprep.subr.mxu0 %v1377
        %1488 = vmatpush1.msra.mxu0 %v1376
        %1489 = vmatprep.subr.mxu0 %v1381
        %1490 = vmatpush1.msra.mxu0 %v1380
        %1491 = vmatprep.subr.mxu0 %v1385
        %1492 = vmatpush1.msra.mxu0 %v1384
        %1493 = vmatprep.subr.mxu0 %v1389
        %1494 = vmatpush1.msra.mxu0 %v1388
        %1495 = vmatprep.subr.mxu0 %v1393
        %1496 = vmatpush1.msra.mxu0 %v1392
        %1497 = vmatprep.subr.mxu0 0.0
        %1498 = vmatpush1.msra.mxu0 0.0
        %1499 = vmatprep.subr.mxu0 0.0
        %1500 = vmatpush1.msra.mxu0 0.0
        %1501 = vmatprep.subr.mxu0 0.0
        %1502 = vmatpush1.msra.mxu0 0.0
        %1503 = vmatprep.subr.mxu0 0.0
        %1504 = vmatpush1.msra.mxu0 0.0
        %1505 = vmatprep.subr.mxu0 0.0
        %1506 = vmatpush1.msra.mxu0 0.0
        %1507 = vmatprep.subr.mxu0 0.0
        %1508 = vmatpush1.msra.mxu0 0.0
        %1509 = vmatprep.subr.mxu0 0.0
        %1510 = vmatpush1.msra.mxu0 0.0
        %1511 = vmatprep.subr.mxu0 0.0
        %1512 = vmatpush1.msra.mxu0 0.0
        %1513 = vmatprep.subr.mxu0 0.0
        %1514 = vmatpush1.msra.mxu0 0.0
        %1515 = vmatprep.subr.mxu0 0.0
        %1516 = vmatpush1.msra.mxu0 0.0
        %1517 = vmatprep.subr.mxu0 0.0
        %1518 = vmatpush1.msra.mxu0 0.0
        %1519 = vmatprep.subr.mxu0 0.0
        %1520 = vmatpush1.msra.mxu0 0.0
        %1521 = vmatprep.subr.mxu0 0.0
        %1522 = vmatpush1.msra.mxu0 0.0
        %1523 = vmatprep.subr.mxu0 0.0
        %1524 = vmatpush1.msra.mxu0 0.0
        %1525 = vmatprep.subr.mxu0 0.0
        %1526 = vmatpush1.msra.mxu0 0.0
        %1527 = vmatprep.subr.mxu0 0.0
        %1528 = vmatpush1.msra.mxu0 0.0
        %1529 = vmatprep.mubr.f32.mxu0 0.0
        %1530 = vmatmul.mubr.f32.gmra.mrb[0].mxu0 %v1320
        %v1531 = vpop.f32.mrb[0].mxu0
        %v1532 = vadd.f32 0.0, %v1531
        %v1533 = vpop.f32.mrb[0].mxu0
        %v1534 = vadd.f32 0.0, %v1533
        %1535 = vdwg.mxu0
        %v1536 = vadd.f32 %v1326, %v1461
        %v1537 = vadd.f32 %v1327, %v1463
        %v1538 = vadd.f32 %v1328, %v1532
        %v1539 = vadd.f32 %v1329, %v1534
        %v1540 = vxor.u32 %v1536, 2147483648
        %v1541 = vmul.f32 %v1540, 1.442695
        %v1542 = vpow.pop %v1541
        %v1543 = vadd.f32 %v1542, 1.0
        %v1544 = vrcp.pop %v1543
        %v1545 = vmul.f32 1.0, %v1544
        %v1546 = vxor.u32 %v1537, 2147483648
        %v1547 = vmul.f32 %v1546, 1.442695
        %v1548 = vpow.pop %v1547
        %v1549 = vadd.f32 %v1548, 1.0
        %v1550 = vrcp.pop %v1549
        %v1551 = vmul.f32 1.0, %v1550
        %v1552 = vtanh.pop %v1538
        %v1553 = vxor.u32 %v1539, 2147483648
        %v1554 = vmul.f32 %v1553, 1.442695
        %v1555 = vpow.pop %v1554
        %v1556 = vadd.f32 %v1555, 1.0
        %v1557 = vrcp.pop %v1556
        %v1558 = vmul.f32 1.0, %v1557
        %v1559 = vmul.f32 %v1551, %v1321
        %v1560 = vmul.f32 %v1545, %v1552
        %v1561 = vadd.f32 %v1559, %v1560
        %v1562 = vtanh.pop %v1561
        %v1563 = vmul.f32 %v1558, %v1562
        %s1564 = sadd.s32 %s305, 4
        %v1565 = vstv %s1564
        %vm1566 = vcmp.gt.s32.totalorder %v317, %v1565
        %v1567 = vsel %vm1566, 1, 0
        %1568 = vset.pattern.permute.xlu0 0
        %1569 = vperm.xlu0 %1568, %v1567
        %v1570 = vpop.permute.xlu0 %1569
        %vm1571 = vcmp.eq.s32.totalorder %v1570, 1
        %v1572 = vsel %vm1571, %v1563, %v1320
        %v1573 = vsel %vm1571, %v1561, %v1321
        %v1574 = vsel %vm1571, %v1563, 0.0
        %s1575 = scalar_lea.vmem %s295, 32
        %1576 = vst [vmem:[%s1575] sm:$0xff] %v1574
        %s1577 = scalar_lea.vmem %s282, 160
        %v1578 = vld [vmem:[%s1577] sm:$0xff]
        %v1579 = vld [vmem:[%s1577 + $0x8] sm:$0xff]
        %v1580 = vld [vmem:[%s1577 + $0x10] sm:$0xff]
        %v1581 = vld [vmem:[%s1577 + $0x18] sm:$0xff]
        %v1582 = vld [vmem:[%s2] sm:$0xff]
        %v1583 = vld [vmem:[%s2 + $0x8] sm:$0xff]
        %v1584 = vld [vmem:[%s2 + $0x10] sm:$0xff]
        %v1585 = vld [vmem:[%s2 + $0x18] sm:$0xff]
        %v1586 = vld [vmem:[%s2 + $0x20] sm:$0xff]
        %v1587 = vld [vmem:[%s2 + $0x28] sm:$0xff]
        %v1588 = vld [vmem:[%s2 + $0x30] sm:$0xff]
        %v1589 = vld [vmem:[%s2 + $0x38] sm:$0xff]
        %v1590 = vld [vmem:[%s2 + $0x40] sm:$0xff]
        %v1591 = vld [vmem:[%s2 + $0x48] sm:$0xff]
        %v1592 = vld [vmem:[%s2 + $0x50] sm:$0xff]
        %v1593 = vld [vmem:[%s2 + $0x58] sm:$0xff]
        %v1594 = vld [vmem:[%s2 + $0x60] sm:$0xff]
        %v1595 = vld [vmem:[%s2 + $0x68] sm:$0xff]
        %v1596 = vld [vmem:[%s2 + $0x70] sm:$0xff]
        %v1597 = vld [vmem:[%s2 + $0x78] sm:$0xff]
        %v1598 = vld [vmem:[%s2 + $0x80] sm:$0xff]
        %v1599 = vld [vmem:[%s2 + $0x88] sm:$0xff]
        %v1600 = vld [vmem:[%s2 + $0x90] sm:$0xff]
        %v1601 = vld [vmem:[%s2 + $0x98] sm:$0xff]
        %v1602 = vld [vmem:[%s2 + $0xa0] sm:$0xff]
        %v1603 = vld [vmem:[%s2 + $0xa8] sm:$0xff]
        %v1604 = vld [vmem:[%s2 + $0xb0] sm:$0xff]
        %v1605 = vld [vmem:[%s2 + $0xb8] sm:$0xff]
        %v1606 = vld [vmem:[%s2 + $0xc0] sm:$0xff]
        %v1607 = vld [vmem:[%s2 + $0xc8] sm:$0xff]
        %v1608 = vld [vmem:[%s2 + $0xd0] sm:$0xff]
        %v1609 = vld [vmem:[%s2 + $0xd8] sm:$0xff]
        %v1610 = vld [vmem:[%s2 + $0xe0] sm:$0xff]
        %v1611 = vld [vmem:[%s2 + $0xe8] sm:$0xff]
        %v1612 = vld [vmem:[%s2 + $0xf0] sm:$0xff]
        %v1613 = vld [vmem:[%s2 + $0xf8] sm:$0xff]
        %v1614 = vld [vmem:[%s2 + $0x100] sm:$0xff]
        %v1615 = vld [vmem:[%s2 + $0x108] sm:$0xff]
        %v1616 = vld [vmem:[%s2 + $0x110] sm:$0xff]
        %v1617 = vld [vmem:[%s2 + $0x118] sm:$0xff]
        %v1618 = vld [vmem:[%s2 + $0x120] sm:$0xff]
        %v1619 = vld [vmem:[%s2 + $0x128] sm:$0xff]
        %v1620 = vld [vmem:[%s2 + $0x130] sm:$0xff]
        %v1621 = vld [vmem:[%s2 + $0x138] sm:$0xff]
        %v1622 = vld [vmem:[%s2 + $0x140] sm:$0xff]
        %v1623 = vld [vmem:[%s2 + $0x148] sm:$0xff]
        %v1624 = vld [vmem:[%s2 + $0x150] sm:$0xff]
        %v1625 = vld [vmem:[%s2 + $0x158] sm:$0xff]
        %v1626 = vld [vmem:[%s2 + $0x160] sm:$0xff]
        %v1627 = vld [vmem:[%s2 + $0x168] sm:$0xff]
        %v1628 = vld [vmem:[%s2 + $0x170] sm:$0xff]
        %v1629 = vld [vmem:[%s2 + $0x178] sm:$0xff]
        %v1630 = vld [vmem:[%s2 + $0x180] sm:$0xff]
        %v1631 = vld [vmem:[%s2 + $0x188] sm:$0xff]
        %v1632 = vld [vmem:[%s2 + $0x190] sm:$0xff]
        %v1633 = vld [vmem:[%s2 + $0x198] sm:$0xff]
        %v1634 = vld [vmem:[%s2 + $0x1a0] sm:$0xff]
        %v1635 = vld [vmem:[%s2 + $0x1a8] sm:$0xff]
        %v1636 = vld [vmem:[%s2 + $0x1b0] sm:$0xff]
        %v1637 = vld [vmem:[%s2 + $0x1b8] sm:$0xff]
        %v1638 = vld [vmem:[%s2 + $0x1c0] sm:$0xff]
        %v1639 = vld [vmem:[%s2 + $0x1c8] sm:$0xff]
        %v1640 = vld [vmem:[%s2 + $0x1d0] sm:$0xff]
        %v1641 = vld [vmem:[%s2 + $0x1d8] sm:$0xff]
        %v1642 = vld [vmem:[%s2 + $0x1e0] sm:$0xff]
        %v1643 = vld [vmem:[%s2 + $0x1e8] sm:$0xff]
        %v1644 = vld [vmem:[%s2 + $0x1f0] sm:$0xff]
        %v1645 = vld [vmem:[%s2 + $0x1f8] sm:$0xff]
        %1646 = vmatprep.subr.mxu0 %v1583
        %1647 = vmatpush1.msra.mxu0 %v1582
        %1648 = vmatprep.subr.mxu0 %v1587
        %1649 = vmatpush1.msra.mxu0 %v1586
        %1650 = vmatprep.subr.mxu0 %v1591
        %1651 = vmatpush1.msra.mxu0 %v1590
        %1652 = vmatprep.subr.mxu0 %v1595
        %1653 = vmatpush1.msra.mxu0 %v1594
        %1654 = vmatprep.subr.mxu0 %v1599
        %1655 = vmatpush1.msra.mxu0 %v1598
        %1656 = vmatprep.subr.mxu0 %v1603
        %1657 = vmatpush1.msra.mxu0 %v1602
        %1658 = vmatprep.subr.mxu0 %v1607
        %1659 = vmatpush1.msra.mxu0 %v1606
        %1660 = vmatprep.subr.mxu0 %v1611
        %1661 = vmatpush1.msra.mxu0 %v1610
        %1662 = vmatprep.subr.mxu0 %v1615
        %1663 = vmatpush1.msra.mxu0 %v1614
        %1664 = vmatprep.subr.mxu0 %v1619
        %1665 = vmatpush1.msra.mxu0 %v1618
        %1666 = vmatprep.subr.mxu0 %v1623
        %1667 = vmatpush1.msra.mxu0 %v1622
        %1668 = vmatprep.subr.mxu0 %v1627
        %1669 = vmatpush1.msra.mxu0 %v1626
        %1670 = vmatprep.subr.mxu0 %v1631
        %1671 = vmatpush1.msra.mxu0 %v1630
        %1672 = vmatprep.subr.mxu0 %v1635
        %1673 = vmatpush1.msra.mxu0 %v1634
        %1674 = vmatprep.subr.mxu0 %v1639
        %1675 = vmatpush1.msra.mxu0 %v1638
        %1676 = vmatprep.subr.mxu0 %v1643
        %1677 = vmatpush1.msra.mxu0 %v1642
        %1678 = vmatprep.subr.mxu0 0.0
        %1679 = vmatpush1.msra.mxu0 0.0
        %1680 = vmatprep.subr.mxu0 0.0
        %1681 = vmatpush1.msra.mxu0 0.0
        %1682 = vmatprep.subr.mxu0 0.0
        %1683 = vmatpush1.msra.mxu0 0.0
        %1684 = vmatprep.subr.mxu0 0.0
        %1685 = vmatpush1.msra.mxu0 0.0
        %1686 = vmatprep.subr.mxu0 0.0
        %1687 = vmatpush1.msra.mxu0 0.0
        %1688 = vmatprep.subr.mxu0 0.0
        %1689 = vmatpush1.msra.mxu0 0.0
        %1690 = vmatprep.subr.mxu0 0.0
        %1691 = vmatpush1.msra.mxu0 0.0
        %1692 = vmatprep.subr.mxu0 0.0
        %1693 = vmatpush1.msra.mxu0 0.0
        %1694 = vmatprep.subr.mxu0 0.0
        %1695 = vmatpush1.msra.mxu0 0.0
        %1696 = vmatprep.subr.mxu0 0.0
        %1697 = vmatpush1.msra.mxu0 0.0
        %1698 = vmatprep.subr.mxu0 0.0
        %1699 = vmatpush1.msra.mxu0 0.0
        %1700 = vmatprep.subr.mxu0 0.0
        %1701 = vmatpush1.msra.mxu0 0.0
        %1702 = vmatprep.subr.mxu0 0.0
        %1703 = vmatpush1.msra.mxu0 0.0
        %1704 = vmatprep.subr.mxu0 0.0
        %1705 = vmatpush1.msra.mxu0 0.0
        %1706 = vmatprep.subr.mxu0 0.0
        %1707 = vmatpush1.msra.mxu0 0.0
        %1708 = vmatprep.subr.mxu0 0.0
        %1709 = vmatpush1.msra.mxu0 0.0
        %1710 = vmatprep.mubr.f32.mxu0 0.0
        %1711 = vmatmul.mubr.f32.gmra.mrb[0].mxu0 %v1572
        %v1712 = vpop.f32.mrb[0].mxu0
        %v1713 = vadd.f32 0.0, %v1712
        %v1714 = vpop.f32.mrb[0].mxu0
        %v1715 = vadd.f32 0.0, %v1714
        %1716 = vdwg.mxu0
        %1717 = vmatprep.subr.mxu0 %v1585
        %1718 = vmatpush1.msra.mxu0 %v1584
        %1719 = vmatprep.subr.mxu0 %v1589
        %1720 = vmatpush1.msra.mxu0 %v1588
        %1721 = vmatprep.subr.mxu0 %v1593
        %1722 = vmatpush1.msra.mxu0 %v1592
        %1723 = vmatprep.subr.mxu0 %v1597
        %1724 = vmatpush1.msra.mxu0 %v1596
        %1725 = vmatprep.subr.mxu0 %v1601
        %1726 = vmatpush1.msra.mxu0 %v1600
        %1727 = vmatprep.subr.mxu0 %v1605
        %1728 = vmatpush1.msra.mxu0 %v1604
        %1729 = vmatprep.subr.mxu0 %v1609
        %1730 = vmatpush1.msra.mxu0 %v1608
        %1731 = vmatprep.subr.mxu0 %v1613
        %1732 = vmatpush1.msra.mxu0 %v1612
        %1733 = vmatprep.subr.mxu0 %v1617
        %1734 = vmatpush1.msra.mxu0 %v1616
        %1735 = vmatprep.subr.mxu0 %v1621
        %1736 = vmatpush1.msra.mxu0 %v1620
        %1737 = vmatprep.subr.mxu0 %v1625
        %1738 = vmatpush1.msra.mxu0 %v1624
        %1739 = vmatprep.subr.mxu0 %v1629
        %1740 = vmatpush1.msra.mxu0 %v1628
        %1741 = vmatprep.subr.mxu0 %v1633
        %1742 = vmatpush1.msra.mxu0 %v1632
        %1743 = vmatprep.subr.mxu0 %v1637
        %1744 = vmatpush1.msra.mxu0 %v1636
        %1745 = vmatprep.subr.mxu0 %v1641
        %1746 = vmatpush1.msra.mxu0 %v1640
        %1747 = vmatprep.subr.mxu0 %v1645
        %1748 = vmatpush1.msra.mxu0 %v1644
        %1749 = vmatprep.subr.mxu0 0.0
        %1750 = vmatpush1.msra.mxu0 0.0
        %1751 = vmatprep.subr.mxu0 0.0
        %1752 = vmatpush1.msra.mxu0 0.0
        %1753 = vmatprep.subr.mxu0 0.0
        %1754 = vmatpush1.msra.mxu0 0.0
        %1755 = vmatprep.subr.mxu0 0.0
        %1756 = vmatpush1.msra.mxu0 0.0
        %1757 = vmatprep.subr.mxu0 0.0
        %1758 = vmatpush1.msra.mxu0 0.0
        %1759 = vmatprep.subr.mxu0 0.0
        %1760 = vmatpush1.msra.mxu0 0.0
        %1761 = vmatprep.subr.mxu0 0.0
        %1762 = vmatpush1.msra.mxu0 0.0
        %1763 = vmatprep.subr.mxu0 0.0
        %1764 = vmatpush1.msra.mxu0 0.0
        %1765 = vmatprep.subr.mxu0 0.0
        %1766 = vmatpush1.msra.mxu0 0.0
        %1767 = vmatprep.subr.mxu0 0.0
        %1768 = vmatpush1.msra.mxu0 0.0
        %1769 = vmatprep.subr.mxu0 0.0
        %1770 = vmatpush1.msra.mxu0 0.0
        %1771 = vmatprep.subr.mxu0 0.0
        %1772 = vmatpush1.msra.mxu0 0.0
        %1773 = vmatprep.subr.mxu0 0.0
        %1774 = vmatpush1.msra.mxu0 0.0
        %1775 = vmatprep.subr.mxu0 0.0
        %1776 = vmatpush1.msra.mxu0 0.0
        %1777 = vmatprep.subr.mxu0 0.0
        %1778 = vmatpush1.msra.mxu0 0.0
        %1779 = vmatprep.subr.mxu0 0.0
        %1780 = vmatpush1.msra.mxu0 0.0
        %1781 = vmatprep.mubr.f32.mxu0 0.0
        %1782 = vmatmul.mubr.f32.gmra.mrb[0].mxu0 %v1572
        %v1783 = vpop.f32.mrb[0].mxu0
        %v1784 = vadd.f32 0.0, %v1783
        %v1785 = vpop.f32.mrb[0].mxu0
        %v1786 = vadd.f32 0.0, %v1785
        %1787 = vdwg.mxu0
        %v1788 = vadd.f32 %v1578, %v1713
        %v1789 = vadd.f32 %v1579, %v1715
        %v1790 = vadd.f32 %v1580, %v1784
        %v1791 = vadd.f32 %v1581, %v1786
        %v1792 = vxor.u32 %v1788, 2147483648
        %v1793 = vmul.f32 %v1792, 1.442695
        %v1794 = vpow.pop %v1793
        %v1795 = vadd.f32 %v1794, 1.0
        %v1796 = vrcp.pop %v1795
        %v1797 = vmul.f32 1.0, %v1796
        %v1798 = vxor.u32 %v1789, 2147483648
        %v1799 = vmul.f32 %v1798, 1.442695
        %v1800 = vpow.pop %v1799
        %v1801 = vadd.f32 %v1800, 1.0
        %v1802 = vrcp.pop %v1801
        %v1803 = vmul.f32 1.0, %v1802
        %v1804 = vtanh.pop %v1790
        %v1805 = vxor.u32 %v1791, 2147483648
        %v1806 = vmul.f32 %v1805, 1.442695
        %v1807 = vpow.pop %v1806
        %v1808 = vadd.f32 %v1807, 1.0
        %v1809 = vrcp.pop %v1808
        %v1810 = vmul.f32 1.0, %v1809
        %v1811 = vmul.f32 %v1803, %v1573
        %v1812 = vmul.f32 %v1797, %v1804
        %v1813 = vadd.f32 %v1811, %v1812
        %v1814 = vtanh.pop %v1813
        %v1815 = vmul.f32 %v1810, %v1814
        %s1816 = sadd.s32 %s305, 5
        %v1817 = vstv %s1816
        %vm1818 = vcmp.gt.s32.totalorder %v317, %v1817
        %v1819 = vsel %vm1818, 1, 0
        %1820 = vset.pattern.permute.xlu0 0
        %1821 = vperm.xlu0 %1820, %v1819
        %v1822 = vpop.permute.xlu0 %1821
        %vm1823 = vcmp.eq.s32.totalorder %v1822, 1
        %v1824 = vsel %vm1823, %v1815, %v1572
        %v1825 = vsel %vm1823, %v1813, %v1573
        %v1826 = vsel %vm1823, %v1815, 0.0
        %s1827 = scalar_lea.vmem %s295, 40
        %1828 = vst [vmem:[%s1827] sm:$0xff] %v1826
        %s1829 = scalar_lea.vmem %s282, 192
        %v1830 = vld [vmem:[%s1829] sm:$0xff]
        %v1831 = vld [vmem:[%s1829 + $0x8] sm:$0xff]
        %v1832 = vld [vmem:[%s1829 + $0x10] sm:$0xff]
        %v1833 = vld [vmem:[%s1829 + $0x18] sm:$0xff]
        %v1834 = vld [vmem:[%s2] sm:$0xff]
        %v1835 = vld [vmem:[%s2 + $0x8] sm:$0xff]
        %v1836 = vld [vmem:[%s2 + $0x10] sm:$0xff]
        %v1837 = vld [vmem:[%s2 + $0x18] sm:$0xff]
        %v1838 = vld [vmem:[%s2 + $0x20] sm:$0xff]
        %v1839 = vld [vmem:[%s2 + $0x28] sm:$0xff]
        %v1840 = vld [vmem:[%s2 + $0x30] sm:$0xff]
        %v1841 = vld [vmem:[%s2 + $0x38] sm:$0xff]
        %v1842 = vld [vmem:[%s2 + $0x40] sm:$0xff]
        %v1843 = vld [vmem:[%s2 + $0x48] sm:$0xff]
        %v1844 = vld [vmem:[%s2 + $0x50] sm:$0xff]
        %v1845 = vld [vmem:[%s2 + $0x58] sm:$0xff]
        %v1846 = vld [vmem:[%s2 + $0x60] sm:$0xff]
        %v1847 = vld [vmem:[%s2 + $0x68] sm:$0xff]
        %v1848 = vld [vmem:[%s2 + $0x70] sm:$0xff]
        %v1849 = vld [vmem:[%s2 + $0x78] sm:$0xff]
        %v1850 = vld [vmem:[%s2 + $0x80] sm:$0xff]
        %v1851 = vld [vmem:[%s2 + $0x88] sm:$0xff]
        %v1852 = vld [vmem:[%s2 + $0x90] sm:$0xff]
        %v1853 = vld [vmem:[%s2 + $0x98] sm:$0xff]
        %v1854 = vld [vmem:[%s2 + $0xa0] sm:$0xff]
        %v1855 = vld [vmem:[%s2 + $0xa8] sm:$0xff]
        %v1856 = vld [vmem:[%s2 + $0xb0] sm:$0xff]
        %v1857 = vld [vmem:[%s2 + $0xb8] sm:$0xff]
        %v1858 = vld [vmem:[%s2 + $0xc0] sm:$0xff]
        %v1859 = vld [vmem:[%s2 + $0xc8] sm:$0xff]
        %v1860 = vld [vmem:[%s2 + $0xd0] sm:$0xff]
        %v1861 = vld [vmem:[%s2 + $0xd8] sm:$0xff]
        %v1862 = vld [vmem:[%s2 + $0xe0] sm:$0xff]
        %v1863 = vld [vmem:[%s2 + $0xe8] sm:$0xff]
        %v1864 = vld [vmem:[%s2 + $0xf0] sm:$0xff]
        %v1865 = vld [vmem:[%s2 + $0xf8] sm:$0xff]
        %v1866 = vld [vmem:[%s2 + $0x100] sm:$0xff]
        %v1867 = vld [vmem:[%s2 + $0x108] sm:$0xff]
        %v1868 = vld [vmem:[%s2 + $0x110] sm:$0xff]
        %v1869 = vld [vmem:[%s2 + $0x118] sm:$0xff]
        %v1870 = vld [vmem:[%s2 + $0x120] sm:$0xff]
        %v1871 = vld [vmem:[%s2 + $0x128] sm:$0xff]
        %v1872 = vld [vmem:[%s2 + $0x130] sm:$0xff]
        %v1873 = vld [vmem:[%s2 + $0x138] sm:$0xff]
        %v1874 = vld [vmem:[%s2 + $0x140] sm:$0xff]
        %v1875 = vld [vmem:[%s2 + $0x148] sm:$0xff]
        %v1876 = vld [vmem:[%s2 + $0x150] sm:$0xff]
        %v1877 = vld [vmem:[%s2 + $0x158] sm:$0xff]
        %v1878 = vld [vmem:[%s2 + $0x160] sm:$0xff]
        %v1879 = vld [vmem:[%s2 + $0x168] sm:$0xff]
        %v1880 = vld [vmem:[%s2 + $0x170] sm:$0xff]
        %v1881 = vld [vmem:[%s2 + $0x178] sm:$0xff]
        %v1882 = vld [vmem:[%s2 + $0x180] sm:$0xff]
        %v1883 = vld [vmem:[%s2 + $0x188] sm:$0xff]
        %v1884 = vld [vmem:[%s2 + $0x190] sm:$0xff]
        %v1885 = vld [vmem:[%s2 + $0x198] sm:$0xff]
        %v1886 = vld [vmem:[%s2 + $0x1a0] sm:$0xff]
        %v1887 = vld [vmem:[%s2 + $0x1a8] sm:$0xff]
        %v1888 = vld [vmem:[%s2 + $0x1b0] sm:$0xff]
        %v1889 = vld [vmem:[%s2 + $0x1b8] sm:$0xff]
        %v1890 = vld [vmem:[%s2 + $0x1c0] sm:$0xff]
        %v1891 = vld [vmem:[%s2 + $0x1c8] sm:$0xff]
        %v1892 = vld [vmem:[%s2 + $0x1d0] sm:$0xff]
        %v1893 = vld [vmem:[%s2 + $0x1d8] sm:$0xff]
        %v1894 = vld [vmem:[%s2 + $0x1e0] sm:$0xff]
        %v1895 = vld [vmem:[%s2 + $0x1e8] sm:$0xff]
        %v1896 = vld [vmem:[%s2 + $0x1f0] sm:$0xff]
        %v1897 = vld [vmem:[%s2 + $0x1f8] sm:$0xff]
        %1898 = vmatprep.subr.mxu0 %v1835
        %1899 = vmatpush1.msra.mxu0 %v1834
        %1900 = vmatprep.subr.mxu0 %v1839
        %1901 = vmatpush1.msra.mxu0 %v1838
        %1902 = vmatprep.subr.mxu0 %v1843
        %1903 = vmatpush1.msra.mxu0 %v1842
        %1904 = vmatprep.subr.mxu0 %v1847
        %1905 = vmatpush1.msra.mxu0 %v1846
        %1906 = vmatprep.subr.mxu0 %v1851
        %1907 = vmatpush1.msra.mxu0 %v1850
        %1908 = vmatprep.subr.mxu0 %v1855
        %1909 = vmatpush1.msra.mxu0 %v1854
        %1910 = vmatprep.subr.mxu0 %v1859
        %1911 = vmatpush1.msra.mxu0 %v1858
        %1912 = vmatprep.subr.mxu0 %v1863
        %1913 = vmatpush1.msra.mxu0 %v1862
        %1914 = vmatprep.subr.mxu0 %v1867
        %1915 = vmatpush1.msra.mxu0 %v1866
        %1916 = vmatprep.subr.mxu0 %v1871
        %1917 = vmatpush1.msra.mxu0 %v1870
        %1918 = vmatprep.subr.mxu0 %v1875
        %1919 = vmatpush1.msra.mxu0 %v1874
        %1920 = vmatprep.subr.mxu0 %v1879
        %1921 = vmatpush1.msra.mxu0 %v1878
        %1922 = vmatprep.subr.mxu0 %v1883
        %1923 = vmatpush1.msra.mxu0 %v1882
        %1924 = vmatprep.subr.mxu0 %v1887
        %1925 = vmatpush1.msra.mxu0 %v1886
        %1926 = vmatprep.subr.mxu0 %v1891
        %1927 = vmatpush1.msra.mxu0 %v1890
        %1928 = vmatprep.subr.mxu0 %v1895
        %1929 = vmatpush1.msra.mxu0 %v1894
        %1930 = vmatprep.subr.mxu0 0.0
        %1931 = vmatpush1.msra.mxu0 0.0
        %1932 = vmatprep.subr.mxu0 0.0
        %1933 = vmatpush1.msra.mxu0 0.0
        %1934 = vmatprep.subr.mxu0 0.0
        %1935 = vmatpush1.msra.mxu0 0.0
        %1936 = vmatprep.subr.mxu0 0.0
        %1937 = vmatpush1.msra.mxu0 0.0
        %1938 = vmatprep.subr.mxu0 0.0
        %1939 = vmatpush1.msra.mxu0 0.0
        %1940 = vmatprep.subr.mxu0 0.0
        %1941 = vmatpush1.msra.mxu0 0.0
        %1942 = vmatprep.subr.mxu0 0.0
        %1943 = vmatpush1.msra.mxu0 0.0
        %1944 = vmatprep.subr.mxu0 0.0
        %1945 = vmatpush1.msra.mxu0 0.0
        %1946 = vmatprep.subr.mxu0 0.0
        %1947 = vmatpush1.msra.mxu0 0.0
        %1948 = vmatprep.subr.mxu0 0.0
        %1949 = vmatpush1.msra.mxu0 0.0
        %1950 = vmatprep.subr.mxu0 0.0
        %1951 = vmatpush1.msra.mxu0 0.0
        %1952 = vmatprep.subr.mxu0 0.0
        %1953 = vmatpush1.msra.mxu0 0.0
        %1954 = vmatprep.subr.mxu0 0.0
        %1955 = vmatpush1.msra.mxu0 0.0
        %1956 = vmatprep.subr.mxu0 0.0
        %1957 = vmatpush1.msra.mxu0 0.0
        %1958 = vmatprep.subr.mxu0 0.0
        %1959 = vmatpush1.msra.mxu0 0.0
        %1960 = vmatprep.subr.mxu0 0.0
        %1961 = vmatpush1.msra.mxu0 0.0
        %1962 = vmatprep.mubr.f32.mxu0 0.0
        %1963 = vmatmul.mubr.f32.gmra.mrb[0].mxu0 %v1824
        %v1964 = vpop.f32.mrb[0].mxu0
        %v1965 = vadd.f32 0.0, %v1964
        %v1966 = vpop.f32.mrb[0].mxu0
        %v1967 = vadd.f32 0.0, %v1966
        %1968 = vdwg.mxu0
        %1969 = vmatprep.subr.mxu0 %v1837
        %1970 = vmatpush1.msra.mxu0 %v1836
        %1971 = vmatprep.subr.mxu0 %v1841
        %1972 = vmatpush1.msra.mxu0 %v1840
        %1973 = vmatprep.subr.mxu0 %v1845
        %1974 = vmatpush1.msra.mxu0 %v1844
        %1975 = vmatprep.subr.mxu0 %v1849
        %1976 = vmatpush1.msra.mxu0 %v1848
        %1977 = vmatprep.subr.mxu0 %v1853
        %1978 = vmatpush1.msra.mxu0 %v1852
        %1979 = vmatprep.subr.mxu0 %v1857
        %1980 = vmatpush1.msra.mxu0 %v1856
        %1981 = vmatprep.subr.mxu0 %v1861
        %1982 = vmatpush1.msra.mxu0 %v1860
        %1983 = vmatprep.subr.mxu0 %v1865
        %1984 = vmatpush1.msra.mxu0 %v1864
        %1985 = vmatprep.subr.mxu0 %v1869
        %1986 = vmatpush1.msra.mxu0 %v1868
        %1987 = vmatprep.subr.mxu0 %v1873
        %1988 = vmatpush1.msra.mxu0 %v1872
        %1989 = vmatprep.subr.mxu0 %v1877
        %1990 = vmatpush1.msra.mxu0 %v1876
        %1991 = vmatprep.subr.mxu0 %v1881
        %1992 = vmatpush1.msra.mxu0 %v1880
        %1993 = vmatprep.subr.mxu0 %v1885
        %1994 = vmatpush1.msra.mxu0 %v1884
        %1995 = vmatprep.subr.mxu0 %v1889
        %1996 = vmatpush1.msra.mxu0 %v1888
        %1997 = vmatprep.subr.mxu0 %v1893
        %1998 = vmatpush1.msra.mxu0 %v1892
        %1999 = vmatprep.subr.mxu0 %v1897
        %2000 = vmatpush1.msra.mxu0 %v1896
        %2001 = vmatprep.subr.mxu0 0.0
        %2002 = vmatpush1.msra.mxu0 0.0
        %2003 = vmatprep.subr.mxu0 0.0
        %2004 = vmatpush1.msra.mxu0 0.0
        %2005 = vmatprep.subr.mxu0 0.0
        %2006 = vmatpush1.msra.mxu0 0.0
        %2007 = vmatprep.subr.mxu0 0.0
        %2008 = vmatpush1.msra.mxu0 0.0
        %2009 = vmatprep.subr.mxu0 0.0
        %2010 = vmatpush1.msra.mxu0 0.0
        %2011 = vmatprep.subr.mxu0 0.0
        %2012 = vmatpush1.msra.mxu0 0.0
        %2013 = vmatprep.subr.mxu0 0.0
        %2014 = vmatpush1.msra.mxu0 0.0
        %2015 = vmatprep.subr.mxu0 0.0
        %2016 = vmatpush1.msra.mxu0 0.0
        %2017 = vmatprep.subr.mxu0 0.0
        %2018 = vmatpush1.msra.mxu0 0.0
        %2019 = vmatprep.subr.mxu0 0.0
        %2020 = vmatpush1.msra.mxu0 0.0
        %2021 = vmatprep.subr.mxu0 0.0
        %2022 = vmatpush1.msra.mxu0 0.0
        %2023 = vmatprep.subr.mxu0 0.0
        %2024 = vmatpush1.msra.mxu0 0.0
        %2025 = vmatprep.subr.mxu0 0.0
        %2026 = vmatpush1.msra.mxu0 0.0
        %2027 = vmatprep.subr.mxu0 0.0
        %2028 = vmatpush1.msra.mxu0 0.0
        %2029 = vmatprep.subr.mxu0 0.0
        %2030 = vmatpush1.msra.mxu0 0.0
        %2031 = vmatprep.subr.mxu0 0.0
        %2032 = vmatpush1.msra.mxu0 0.0
        %2033 = vmatprep.mubr.f32.mxu0 0.0
        %2034 = vmatmul.mubr.f32.gmra.mrb[0].mxu0 %v1824
        %v2035 = vpop.f32.mrb[0].mxu0
        %v2036 = vadd.f32 0.0, %v2035
        %v2037 = vpop.f32.mrb[0].mxu0
        %v2038 = vadd.f32 0.0, %v2037
        %2039 = vdwg.mxu0
        %v2040 = vadd.f32 %v1830, %v1965
        %v2041 = vadd.f32 %v1831, %v1967
        %v2042 = vadd.f32 %v1832, %v2036
        %v2043 = vadd.f32 %v1833, %v2038
        %v2044 = vxor.u32 %v2040, 2147483648
        %v2045 = vmul.f32 %v2044, 1.442695
        %v2046 = vpow.pop %v2045
        %v2047 = vadd.f32 %v2046, 1.0
        %v2048 = vrcp.pop %v2047
        %v2049 = vmul.f32 1.0, %v2048
        %v2050 = vxor.u32 %v2041, 2147483648
        %v2051 = vmul.f32 %v2050, 1.442695
        %v2052 = vpow.pop %v2051
        %v2053 = vadd.f32 %v2052, 1.0
        %v2054 = vrcp.pop %v2053
        %v2055 = vmul.f32 1.0, %v2054
        %v2056 = vtanh.pop %v2042
        %v2057 = vxor.u32 %v2043, 2147483648
        %v2058 = vmul.f32 %v2057, 1.442695
        %v2059 = vpow.pop %v2058
        %v2060 = vadd.f32 %v2059, 1.0
        %v2061 = vrcp.pop %v2060
        %v2062 = vmul.f32 1.0, %v2061
        %v2063 = vmul.f32 %v2055, %v1825
        %v2064 = vmul.f32 %v2049, %v2056
        %v2065 = vadd.f32 %v2063, %v2064
        %v2066 = vtanh.pop %v2065
        %v2067 = vmul.f32 %v2062, %v2066
        %s2068 = sadd.s32 %s305, 6
        %v2069 = vstv %s2068
        %vm2070 = vcmp.gt.s32.totalorder %v317, %v2069
        %v2071 = vsel %vm2070, 1, 0
        %2072 = vset.pattern.permute.xlu0 0
        %2073 = vperm.xlu0 %2072, %v2071
        %v2074 = vpop.permute.xlu0 %2073
        %vm2075 = vcmp.eq.s32.totalorder %v2074, 1
        %v2076 = vsel %vm2075, %v2067, %v1824
        %v2077 = vsel %vm2075, %v2065, %v1825
        %v2078 = vsel %vm2075, %v2067, 0.0
        %s2079 = scalar_lea.vmem %s295, 48
        %2080 = vst [vmem:[%s2079] sm:$0xff] %v2078
        %s2081 = scalar_lea.vmem %s282, 224
        %v2082 = vld [vmem:[%s2081] sm:$0xff]
        %v2083 = vld [vmem:[%s2081 + $0x8] sm:$0xff]
        %v2084 = vld [vmem:[%s2081 + $0x10] sm:$0xff]
        %v2085 = vld [vmem:[%s2081 + $0x18] sm:$0xff]
        %v2086 = vld [vmem:[%s2] sm:$0xff]
        %v2087 = vld [vmem:[%s2 + $0x8] sm:$0xff]
        %v2088 = vld [vmem:[%s2 + $0x10] sm:$0xff]
        %v2089 = vld [vmem:[%s2 + $0x18] sm:$0xff]
        %v2090 = vld [vmem:[%s2 + $0x20] sm:$0xff]
        %v2091 = vld [vmem:[%s2 + $0x28] sm:$0xff]
        %v2092 = vld [vmem:[%s2 + $0x30] sm:$0xff]
        %v2093 = vld [vmem:[%s2 + $0x38] sm:$0xff]
        %v2094 = vld [vmem:[%s2 + $0x40] sm:$0xff]
        %v2095 = vld [vmem:[%s2 + $0x48] sm:$0xff]
        %v2096 = vld [vmem:[%s2 + $0x50] sm:$0xff]
        %v2097 = vld [vmem:[%s2 + $0x58] sm:$0xff]
        %v2098 = vld [vmem:[%s2 + $0x60] sm:$0xff]
        %v2099 = vld [vmem:[%s2 + $0x68] sm:$0xff]
        %v2100 = vld [vmem:[%s2 + $0x70] sm:$0xff]
        %v2101 = vld [vmem:[%s2 + $0x78] sm:$0xff]
        %v2102 = vld [vmem:[%s2 + $0x80] sm:$0xff]
        %v2103 = vld [vmem:[%s2 + $0x88] sm:$0xff]
        %v2104 = vld [vmem:[%s2 + $0x90] sm:$0xff]
        %v2105 = vld [vmem:[%s2 + $0x98] sm:$0xff]
        %v2106 = vld [vmem:[%s2 + $0xa0] sm:$0xff]
        %v2107 = vld [vmem:[%s2 + $0xa8] sm:$0xff]
        %v2108 = vld [vmem:[%s2 + $0xb0] sm:$0xff]
        %v2109 = vld [vmem:[%s2 + $0xb8] sm:$0xff]
        %v2110 = vld [vmem:[%s2 + $0xc0] sm:$0xff]
        %v2111 = vld [vmem:[%s2 + $0xc8] sm:$0xff]
        %v2112 = vld [vmem:[%s2 + $0xd0] sm:$0xff]
        %v2113 = vld [vmem:[%s2 + $0xd8] sm:$0xff]
        %v2114 = vld [vmem:[%s2 + $0xe0] sm:$0xff]
        %v2115 = vld [vmem:[%s2 + $0xe8] sm:$0xff]
        %v2116 = vld [vmem:[%s2 + $0xf0] sm:$0xff]
        %v2117 = vld [vmem:[%s2 + $0xf8] sm:$0xff]
        %v2118 = vld [vmem:[%s2 + $0x100] sm:$0xff]
        %v2119 = vld [vmem:[%s2 + $0x108] sm:$0xff]
        %v2120 = vld [vmem:[%s2 + $0x110] sm:$0xff]
        %v2121 = vld [vmem:[%s2 + $0x118] sm:$0xff]
        %v2122 = vld [vmem:[%s2 + $0x120] sm:$0xff]
        %v2123 = vld [vmem:[%s2 + $0x128] sm:$0xff]
        %v2124 = vld [vmem:[%s2 + $0x130] sm:$0xff]
        %v2125 = vld [vmem:[%s2 + $0x138] sm:$0xff]
        %v2126 = vld [vmem:[%s2 + $0x140] sm:$0xff]
        %v2127 = vld [vmem:[%s2 + $0x148] sm:$0xff]
        %v2128 = vld [vmem:[%s2 + $0x150] sm:$0xff]
        %v2129 = vld [vmem:[%s2 + $0x158] sm:$0xff]
        %v2130 = vld [vmem:[%s2 + $0x160] sm:$0xff]
        %v2131 = vld [vmem:[%s2 + $0x168] sm:$0xff]
        %v2132 = vld [vmem:[%s2 + $0x170] sm:$0xff]
        %v2133 = vld [vmem:[%s2 + $0x178] sm:$0xff]
        %v2134 = vld [vmem:[%s2 + $0x180] sm:$0xff]
        %v2135 = vld [vmem:[%s2 + $0x188] sm:$0xff]
        %v2136 = vld [vmem:[%s2 + $0x190] sm:$0xff]
        %v2137 = vld [vmem:[%s2 + $0x198] sm:$0xff]
        %v2138 = vld [vmem:[%s2 + $0x1a0] sm:$0xff]
        %v2139 = vld [vmem:[%s2 + $0x1a8] sm:$0xff]
        %v2140 = vld [vmem:[%s2 + $0x1b0] sm:$0xff]
        %v2141 = vld [vmem:[%s2 + $0x1b8] sm:$0xff]
        %v2142 = vld [vmem:[%s2 + $0x1c0] sm:$0xff]
        %v2143 = vld [vmem:[%s2 + $0x1c8] sm:$0xff]
        %v2144 = vld [vmem:[%s2 + $0x1d0] sm:$0xff]
        %v2145 = vld [vmem:[%s2 + $0x1d8] sm:$0xff]
        %v2146 = vld [vmem:[%s2 + $0x1e0] sm:$0xff]
        %v2147 = vld [vmem:[%s2 + $0x1e8] sm:$0xff]
        %v2148 = vld [vmem:[%s2 + $0x1f0] sm:$0xff]
        %v2149 = vld [vmem:[%s2 + $0x1f8] sm:$0xff]
        %2150 = vmatprep.subr.mxu0 %v2087
        %2151 = vmatpush1.msra.mxu0 %v2086
        %2152 = vmatprep.subr.mxu0 %v2091
        %2153 = vmatpush1.msra.mxu0 %v2090
        %2154 = vmatprep.subr.mxu0 %v2095
        %2155 = vmatpush1.msra.mxu0 %v2094
        %2156 = vmatprep.subr.mxu0 %v2099
        %2157 = vmatpush1.msra.mxu0 %v2098
        %2158 = vmatprep.subr.mxu0 %v2103
        %2159 = vmatpush1.msra.mxu0 %v2102
        %2160 = vmatprep.subr.mxu0 %v2107
        %2161 = vmatpush1.msra.mxu0 %v2106
        %2162 = vmatprep.subr.mxu0 %v2111
        %2163 = vmatpush1.msra.mxu0 %v2110
        %2164 = vmatprep.subr.mxu0 %v2115
        %2165 = vmatpush1.msra.mxu0 %v2114
        %2166 = vmatprep.subr.mxu0 %v2119
        %2167 = vmatpush1.msra.mxu0 %v2118
        %2168 = vmatprep.subr.mxu0 %v2123
        %2169 = vmatpush1.msra.mxu0 %v2122
        %2170 = vmatprep.subr.mxu0 %v2127
        %2171 = vmatpush1.msra.mxu0 %v2126
        %2172 = vmatprep.subr.mxu0 %v2131
        %2173 = vmatpush1.msra.mxu0 %v2130
        %2174 = vmatprep.subr.mxu0 %v2135
        %2175 = vmatpush1.msra.mxu0 %v2134
        %2176 = vmatprep.subr.mxu0 %v2139
        %2177 = vmatpush1.msra.mxu0 %v2138
        %2178 = vmatprep.subr.mxu0 %v2143
        %2179 = vmatpush1.msra.mxu0 %v2142
        %2180 = vmatprep.subr.mxu0 %v2147
        %2181 = vmatpush1.msra.mxu0 %v2146
        %2182 = vmatprep.subr.mxu0 0.0
        %2183 = vmatpush1.msra.mxu0 0.0
        %2184 = vmatprep.subr.mxu0 0.0
        %2185 = vmatpush1.msra.mxu0 0.0
        %2186 = vmatprep.subr.mxu0 0.0
        %2187 = vmatpush1.msra.mxu0 0.0
        %2188 = vmatprep.subr.mxu0 0.0
        %2189 = vmatpush1.msra.mxu0 0.0
        %2190 = vmatprep.subr.mxu0 0.0
        %2191 = vmatpush1.msra.mxu0 0.0
        %2192 = vmatprep.subr.mxu0 0.0
        %2193 = vmatpush1.msra.mxu0 0.0
        %2194 = vmatprep.subr.mxu0 0.0
        %2195 = vmatpush1.msra.mxu0 0.0
        %2196 = vmatprep.subr.mxu0 0.0
        %2197 = vmatpush1.msra.mxu0 0.0
        %2198 = vmatprep.subr.mxu0 0.0
        %2199 = vmatpush1.msra.mxu0 0.0
        %2200 = vmatprep.subr.mxu0 0.0
        %2201 = vmatpush1.msra.mxu0 0.0
        %2202 = vmatprep.subr.mxu0 0.0
        %2203 = vmatpush1.msra.mxu0 0.0
        %2204 = vmatprep.subr.mxu0 0.0
        %2205 = vmatpush1.msra.mxu0 0.0
        %2206 = vmatprep.subr.mxu0 0.0
        %2207 = vmatpush1.msra.mxu0 0.0
        %2208 = vmatprep.subr.mxu0 0.0
        %2209 = vmatpush1.msra.mxu0 0.0
        %2210 = vmatprep.subr.mxu0 0.0
        %2211 = vmatpush1.msra.mxu0 0.0
        %2212 = vmatprep.subr.mxu0 0.0
        %2213 = vmatpush1.msra.mxu0 0.0
        %2214 = vmatprep.mubr.f32.mxu0 0.0
        %2215 = vmatmul.mubr.f32.gmra.mrb[0].mxu0 %v2076
        %v2216 = vpop.f32.mrb[0].mxu0
        %v2217 = vadd.f32 0.0, %v2216
        %v2218 = vpop.f32.mrb[0].mxu0
        %v2219 = vadd.f32 0.0, %v2218
        %2220 = vdwg.mxu0
        %2221 = vmatprep.subr.mxu0 %v2089
        %2222 = vmatpush1.msra.mxu0 %v2088
        %2223 = vmatprep.subr.mxu0 %v2093
        %2224 = vmatpush1.msra.mxu0 %v2092
        %2225 = vmatprep.subr.mxu0 %v2097
        %2226 = vmatpush1.msra.mxu0 %v2096
        %2227 = vmatprep.subr.mxu0 %v2101
        %2228 = vmatpush1.msra.mxu0 %v2100
        %2229 = vmatprep.subr.mxu0 %v2105
        %2230 = vmatpush1.msra.mxu0 %v2104
        %2231 = vmatprep.subr.mxu0 %v2109
        %2232 = vmatpush1.msra.mxu0 %v2108
        %2233 = vmatprep.subr.mxu0 %v2113
        %2234 = vmatpush1.msra.mxu0 %v2112
        %2235 = vmatprep.subr.mxu0 %v2117
        %2236 = vmatpush1.msra.mxu0 %v2116
        %2237 = vmatprep.subr.mxu0 %v2121
        %2238 = vmatpush1.msra.mxu0 %v2120
        %2239 = vmatprep.subr.mxu0 %v2125
        %2240 = vmatpush1.msra.mxu0 %v2124
        %2241 = vmatprep.subr.mxu0 %v2129
        %2242 = vmatpush1.msra.mxu0 %v2128
        %2243 = vmatprep.subr.mxu0 %v2133
        %2244 = vmatpush1.msra.mxu0 %v2132
        %2245 = vmatprep.subr.mxu0 %v2137
        %2246 = vmatpush1.msra.mxu0 %v2136
        %2247 = vmatprep.subr.mxu0 %v2141
        %2248 = vmatpush1.msra.mxu0 %v2140
        %2249 = vmatprep.subr.mxu0 %v2145
        %2250 = vmatpush1.msra.mxu0 %v2144
        %2251 = vmatprep.subr.mxu0 %v2149
        %2252 = vmatpush1.msra.mxu0 %v2148
        %2253 = vmatprep.subr.mxu0 0.0
        %2254 = vmatpush1.msra.mxu0 0.0
        %2255 = vmatprep.subr.mxu0 0.0
        %2256 = vmatpush1.msra.mxu0 0.0
        %2257 = vmatprep.subr.mxu0 0.0
        %2258 = vmatpush1.msra.mxu0 0.0
        %2259 = vmatprep.subr.mxu0 0.0
        %2260 = vmatpush1.msra.mxu0 0.0
        %2261 = vmatprep.subr.mxu0 0.0
        %2262 = vmatpush1.msra.mxu0 0.0
        %2263 = vmatprep.subr.mxu0 0.0
        %2264 = vmatpush1.msra.mxu0 0.0
        %2265 = vmatprep.subr.mxu0 0.0
        %2266 = vmatpush1.msra.mxu0 0.0
        %2267 = vmatprep.subr.mxu0 0.0
        %2268 = vmatpush1.msra.mxu0 0.0
        %2269 = vmatprep.subr.mxu0 0.0
        %2270 = vmatpush1.msra.mxu0 0.0
        %2271 = vmatprep.subr.mxu0 0.0
        %2272 = vmatpush1.msra.mxu0 0.0
        %2273 = vmatprep.subr.mxu0 0.0
        %2274 = vmatpush1.msra.mxu0 0.0
        %2275 = vmatprep.subr.mxu0 0.0
        %2276 = vmatpush1.msra.mxu0 0.0
        %2277 = vmatprep.subr.mxu0 0.0
        %2278 = vmatpush1.msra.mxu0 0.0
        %2279 = vmatprep.subr.mxu0 0.0
        %2280 = vmatpush1.msra.mxu0 0.0
        %2281 = vmatprep.subr.mxu0 0.0
        %2282 = vmatpush1.msra.mxu0 0.0
        %2283 = vmatprep.subr.mxu0 0.0
        %2284 = vmatpush1.msra.mxu0 0.0
        %2285 = vmatprep.mubr.f32.mxu0 0.0
        %2286 = vmatmul.mubr.f32.gmra.mrb[0].mxu0 %v2076
        %v2287 = vpop.f32.mrb[0].mxu0
        %v2288 = vadd.f32 0.0, %v2287
        %v2289 = vpop.f32.mrb[0].mxu0
        %v2290 = vadd.f32 0.0, %v2289
        %2291 = vdwg.mxu0
        %v2292 = vadd.f32 %v2082, %v2217
        %v2293 = vadd.f32 %v2083, %v2219
        %v2294 = vadd.f32 %v2084, %v2288
        %v2295 = vadd.f32 %v2085, %v2290
        %v2296 = vxor.u32 %v2292, 2147483648
        %v2297 = vmul.f32 %v2296, 1.442695
        %v2298 = vpow.pop %v2297
        %v2299 = vadd.f32 %v2298, 1.0
        %v2300 = vrcp.pop %v2299
        %v2301 = vmul.f32 1.0, %v2300
        %v2302 = vxor.u32 %v2293, 2147483648
        %v2303 = vmul.f32 %v2302, 1.442695
        %v2304 = vpow.pop %v2303
        %v2305 = vadd.f32 %v2304, 1.0
        %v2306 = vrcp.pop %v2305
        %v2307 = vmul.f32 1.0, %v2306
        %v2308 = vtanh.pop %v2294
        %v2309 = vxor.u32 %v2295, 2147483648
        %v2310 = vmul.f32 %v2309, 1.442695
        %v2311 = vpow.pop %v2310
        %v2312 = vadd.f32 %v2311, 1.0
        %v2313 = vrcp.pop %v2312
        %v2314 = vmul.f32 1.0, %v2313
        %v2315 = vmul.f32 %v2307, %v2077
        %v2316 = vmul.f32 %v2301, %v2308
        %v2317 = vadd.f32 %v2315, %v2316
        %v2318 = vtanh.pop %v2317
        %v2319 = vmul.f32 %v2314, %v2318
        %s2320 = sadd.s32 %s305, 7
        %v2321 = vstv %s2320
        %vm2322 = vcmp.gt.s32.totalorder %v317, %v2321
        %v2323 = vsel %vm2322, 1, 0
        %2324 = vset.pattern.permute.xlu0 0
        %2325 = vperm.xlu0 %2324, %v2323
        %v2326 = vpop.permute.xlu0 %2325
        %vm2327 = vcmp.eq.s32.totalorder %v2326, 1
        %v2328 = vsel %vm2327, %v2319, %v2076
        %v2329 = vsel %vm2327, %v2317, %v2077
        %v2330 = vsel %vm2327, %v2319, 0.0
        %s2331 = scalar_lea.vmem %s295, 56
        %2332 = vst [vmem:[%s2331] sm:$0xff] %v2330
        %2333 = vst [vmem:[%s300] sm:$0xff] %v2328
        %2334 = vst [vmem:[%s304] sm:$0xff] %v2329
      $region40: #{rnn_with_bn_forward.3} parent=31 // pred_fallthru
        _
      %p2335 = scmp.le.s32.totalorder %s312, %s305
      // Predicated region
      $region41: #{rnn_with_bn_forward.3} parent=31 // pred_check
        %p2336 = pneg %p2335
      $region42: #{rnn_with_bn_forward.3} parent=31 // pred_check_branch
        %2338 = sbr.rel (%p2336) target = $region44
      $region43: #{rnn_with_bn_forward.3} parent=31 // pred_region
        %2339 = vst [vmem:[%s295] sm:$0xff] 0.0
        %2340 = vst [vmem:[%s295 + $0x8] sm:$0xff] 0.0
        %2341 = vst [vmem:[%s295 + $0x10] sm:$0xff] 0.0
        %2342 = vst [vmem:[%s295 + $0x18] sm:$0xff] 0.0
        %2343 = vst [vmem:[%s295 + $0x20] sm:$0xff] 0.0
        %2344 = vst [vmem:[%s295 + $0x28] sm:$0xff] 0.0
        %2345 = vst [vmem:[%s295 + $0x30] sm:$0xff] 0.0
        %2346 = vst [vmem:[%s295 + $0x38] sm:$0xff] 0.0
      $region44: #{rnn_with_bn_forward.3} parent=31 // pred_fallthru
        _
      %s2347 = smul.u32 8, %s24
      %p2348 = scmp.lt.s32.totalorder %s2347, 15
      %s2349 = scalar_select %p2348, %s2347, 15
      %p2350 = scmp.lt.s32.totalorder %s23, 0
      %s2351 = scalar_select %p2350, %s23, 0
      %s2352 = sadd.s32 %s2351, %s2349
      %s2353 = smul.addr %s2352, 8
      %s2354 = scalar_lea.vmem %s4, %s2353
      %p2355 = scmp.lt.s32.totalorder %s23, 0
      %s2356 = scalar_select %p2355, %s23, 0
      %s2357 = smul.addr %s2356, 8
      %s2358 = scalar_lea.vmem %s5, %s2357
      %p2359 = scmp.lt.s32.totalorder %s23, 0
      %s2360 = scalar_select %p2359, %s23, 0
      %s2361 = smul.addr %s2360, 8
      %s2362 = scalar_lea.vmem %s6, %s2361
      // Predicated region
      $region45: #{rnn_with_bn_forward.3} parent=31 // pred_check
        %p2363 = pneg %p126
      $region46: #{rnn_with_bn_forward.3} parent=31 // pred_check_branch
        %2365 = sbr.rel (%p2363) target = $region48
      $region47: #{rnn_with_bn_forward.3} parent=31 // pred_region
        %s2366 = smul.u32 8, %s24
      $region48: #{rnn_with_bn_forward.3} parent=31 // pred_fallthru
        _
      // Predicated region
      $region49: #{rnn_with_bn_forward.3} parent=31 // pred_check
        %p2367 = pneg %p152
      $region50: #{rnn_with_bn_forward.3} parent=31 // pred_check_branch
        %2369 = sbr.rel (%p2367) target = $region52
      $region51: #{rnn_with_bn_forward.3} parent=31 // pred_region
        _
      $region52: #{rnn_with_bn_forward.3} parent=31 // pred_fallthru
        _
      // Predicated region
      $region53: #{rnn_with_bn_forward.3} parent=31 // pred_check
        %p2370 = pneg %p178
      $region54: #{rnn_with_bn_forward.3} parent=31 // pred_check_branch
        %2372 = sbr.rel (%p2370) target = $region56
      $region55: #{rnn_with_bn_forward.3} parent=31 // pred_region
        _
      $region56: #{rnn_with_bn_forward.3} parent=31 // pred_fallthru
        _
      // Predicated region
      $region57: #{rnn_with_bn_forward.3} parent=31 // pred_check
        %p2373 = pneg %p152
      $region58: #{rnn_with_bn_forward.3} parent=31 // pred_check_branch
        %2375 = sbr.rel (%p2373) target = $region60
      $region59: #{rnn_with_bn_forward.3} parent=31 // pred_region
        %p2376 = scmp.lt.s32.totalorder %s23, 0
        %s2377 = scalar_select %p2376, %s23, 0
        %s2378 = smul.addr %s2377, 8
        %s2379 = scalar_lea.vmem %s5, %s2378
      $region60: #{rnn_with_bn_forward.3} parent=31 // pred_fallthru
        _
      // Predicated region
      $region61: #{rnn_with_bn_forward.3} parent=31 // pred_check
        %p2380 = pneg %p178
      $region62: #{rnn_with_bn_forward.3} parent=31 // pred_check_branch
        %2382 = sbr.rel (%p2380) target = $region64
      $region63: #{rnn_with_bn_forward.3} parent=31 // pred_region
        %p2383 = scmp.lt.s32.totalorder %s23, 0
        %s2384 = scalar_select %p2383, %s23, 0
        %s2385 = smul.addr %s2384, 8
        %s2386 = scalar_lea.vmem %s6, %s2385
      $region64: #{rnn_with_bn_forward.3} parent=31 // pred_fallthru
        _
    $region32: #{rnn_with_bn_forward.3} parent=5 // pred_fallthru
      _
    %p2387 = scmp.le.s32.totalorder 2, %s14
    // Predicated region
    $region65: #{rnn_with_bn_forward.3} parent=5 // pred_check
      %p2388 = pneg %p2387
    $region66: #{rnn_with_bn_forward.3} parent=5 // pred_check_branch
      %2390 = sbr.rel (%p2388) target = $region68
    $region67: #{rnn_with_bn_forward.3} parent=5 // pred_region
      %s2391 = ssub.s32 %s14, 2
      // Predicated region
      $region69: #{rnn_with_bn_forward.3} parent=67 // pred_check
        %p2392 = pneg %p132
      $region70: #{rnn_with_bn_forward.3} parent=67 // pred_check_branch
        %2394 = sbr.rel (%p2392) target = $region72
      $region71: #{rnn_with_bn_forward.3} parent=67 // pred_region
        %s2395 = smul.u32 8, %s26
        %p2396 = scmp.lt.s32.totalorder %s2395, 15
        %s2397 = scalar_select %p2396, %s2395, 15
        %p2398 = scmp.lt.s32.totalorder %s25, 0
        %s2399 = scalar_select %p2398, %s25, 0
        %s2400 = sadd.s32 %s2399, %s2397
        %s2401 = smul.addr %s2400, 8
        %s2402 = scalar_lea.vmem %s4, %s2401
      $region72: #{rnn_with_bn_forward.3} parent=67 // pred_fallthru
        _
    $region68: #{rnn_with_bn_forward.3} parent=5 // pred_fallthru
      _
  $region6: #{rnn_with_bn_forward.3} parent=0 // loop_footer
    %s18 = sadd.s32 1, %s14
  $region7: #{rnn_with_bn_forward.3} parent=0 // loop_footer_branch
    %13 = sbr.rel target = $region3
  $region8: #{rnn_with_bn_forward.3} parent=0 // loop_exit
    _

</llo_original>
